<compile_context>
chip_gen: v6e
topology: v6e:2x2x1
jax: 0.10.0
libtpu: 0.0.40
codegen_flags: <defaults>
</compile_context>

<pallas_src>
import functools

import jax
import jax.numpy as jnp
from jax.experimental import pallas as pl
from jax.experimental.pallas import tpu as pltpu


# ------------------------------ fused kernel --------------------------------

def _fused_agent_attention_kernel(
    x_ref, wq_ref, wk_ref, wv_ref, wproj_ref, beff_ref,
    pool_ref, maskA_ref, pb_ref, ab_ref, bones_ref, tapw_ref, o_ref,
    *, W,
):
    bt, n, c = x_ref.shape
    nt = bt * n

    # ---- q / k / v projections on the flattened (BT*n, c) slab ----
    x = x_ref[...].reshape(nt, c).astype(jnp.bfloat16)
    q = jnp.dot(x, wq_ref[...], preferred_element_type=jnp.float32)      # (nt, c)
    k = jnp.dot(x, wk_ref[...], preferred_element_type=jnp.float32)      # (nt, c)
    v = jnp.dot(x, wv_ref[...], preferred_element_type=jnp.float32)      # (nt, c)

    # ---- depthwise 3x3 conv on the whole slab: roll + FMA only ----
    # tapw_ref[t] = validity_mask * dwc_weight[t], precomputed; invalid
    # (image-boundary / cross-image) positions are already zeroed.
    dwc = jnp.zeros((nt, c), jnp.float32)
    tap = 0
    for dy in (-1, 0, 1):
        for dx in (-1, 0, 1):
            s = dy * W + dx
            shifted = v if s == 0 else pltpu.roll(v, (-s) % nt, axis=0)
            dwc = dwc + shifted * tapw_ref[tap]
            tap += 1

    pool = pool_ref[...]       # (hA, n)  bf16, scale folded in, tiled over heads
    maskA = maskA_ref[...]     # (hA, c)  f32 block mask (head block-diagonal)
    pb = pb_ref[...]           # (hA, n)  f32 position bias, heads stacked on sublanes
    ab = ab_ref[...]           # (n, hA)  f32 agent bias, heads stacked on lanes
    bones = bones_ref[...]     # (hA, hA) f32 block-ones (per-head sum matrix)

    # ---- two-stage agent attention, heads batched via block masking ----
    attn_out = []
    for bi in range(bt):
        lo = bi * n
        q_b = q[lo:lo + n].astype(jnp.bfloat16)                          # (n, c)
        k_b = k[lo:lo + n].astype(jnp.bfloat16)
        v_b = v[lo:lo + n].astype(jnp.bfloat16)

        # agent tokens for all heads, stacked (h*A + a) on sublanes and
        # block-masked on channels: row h*A+a only keeps head h's channels.
        agent = jnp.dot(pool, q_b, preferred_element_type=jnp.float32) * maskA
        agent_bf = agent.astype(jnp.bfloat16)                            # (hA, c)

        # stage 1: agent aggregation  softmax(agent_s @ k^T + pos_bias) @ v
        s1 = jax.lax.dot_general(agent_bf, k_b, (((1,), (1,)), ((), ())),
                                 preferred_element_type=jnp.float32) + pb  # (hA, n)
        s1 = s1 - jnp.max(s1, axis=-1, keepdims=True)
        e1 = jnp.exp(s1)
        p1 = e1 * pl.reciprocal(jnp.sum(e1, axis=-1, keepdims=True), approx=True)
        agent_v = jnp.dot(p1.astype(jnp.bfloat16), v_b,
                          preferred_element_type=jnp.float32) * maskA      # (hA, c)

        # stage 2: agent broadcast  softmax(q @ agent_s^T + agent_bias) @ agent_v
        s2 = jax.lax.dot_general(q_b, agent_bf, (((1,), (1,)), ((), ())),
                                 preferred_element_type=jnp.float32) + ab  # (n, hA)
        # per-row global max is constant within each head block -> exact softmax
        s2 = s2 - jnp.max(s2, axis=-1, keepdims=True)
        e2 = jnp.exp(s2)
        denom = jnp.dot(e2, bones, preferred_element_type=jnp.float32)     # per-head sums
        p2 = e2 * pl.reciprocal(denom, approx=True)
        attn_out.append(jnp.dot(p2.astype(jnp.bfloat16),
                                agent_v.astype(jnp.bfloat16),
                                preferred_element_type=jnp.float32))       # (n, c)

    x_attn = jnp.concatenate(attn_out, axis=0) if bt > 1 else attn_out[0]  # (nt, c)

    # ---- residual with dwc + output projection (dwc bias folded into beff) ----
    x_res = (x_attn + dwc).astype(jnp.bfloat16)
    out = jnp.dot(x_res, wproj_ref[...], preferred_element_type=jnp.float32)
    out = out + beff_ref[...]
    o_ref[...] = out.reshape(bt, n, c).astype(o_ref.dtype)


def agent_attention_forward(x, consts, *, H, W, block_batch=None):
    b, n, c = x.shape
    hA = consts["pool_stacked"].shape[0]

    # Batch tile: a divisor of b, capped at 8, keeping >= 2 grid steps when
    # possible (v7x has 2 TensorCores; 'parallel' shards the grid across them).
    if block_batch is None:
        cap = max(1, min(8, b // 2))
        bt = 1
        for d in range(cap, 0, -1):
            if b % d == 0:
                bt = d
                break
    else:
        bt = block_batch
    assert b % bt == 0, f"batch {b} must be divisible by block_batch {bt}"
    steps = b // bt

    # Tile the per-image masked tap weights over the batch tile (trace-time op).
    tapw = jnp.tile(consts["tapw"], (1, bt, 1))                          # (9, bt*n, c)

    kern = functools.partial(_fused_agent_attention_kernel, W=W)
    zero2 = lambda i: (0, 0)
    zero3 = lambda i: (0, 0, 0)

    return pl.pallas_call(
        kern,
        out_shape=jax.ShapeDtypeStruct((b, n, c), jnp.float32),
        grid=(steps,),
        in_specs=[
            pl.BlockSpec((bt, n, c), lambda i: (i, 0, 0)),               # x
            pl.BlockSpec((c, c), zero2),                                 # wq (bf16)
            pl.BlockSpec((c, c), zero2),                                 # wk (bf16)
            pl.BlockSpec((c, c), zero2),                                 # wv (bf16)
            pl.BlockSpec((c, c), zero2),                                 # wproj (bf16)
            pl.BlockSpec((1, c), zero2),                                 # b_eff
            pl.BlockSpec((hA, n), zero2),                                # pool_stacked
            pl.BlockSpec((hA, c), zero2),                                # mask_Ac
            pl.BlockSpec((hA, n), zero2),                                # pos_bias
            pl.BlockSpec((n, hA), zero2),                                # agent_bias
            pl.BlockSpec((hA, hA), zero2),                               # block_ones
            pl.BlockSpec((9, bt * n, c), zero3),                         # masked tap weights
        ],
        out_specs=pl.BlockSpec((bt, n, c), lambda i: (i, 0, 0)),
        compiler_params=pltpu.CompilerParams(dimension_semantics=("parallel",)),
    )(x, consts["wq"], consts["wk"], consts["wv"], consts["wproj"], consts["b_eff"],
      consts["pool_stacked"], consts["mask_Ac"], consts["pos_bias"],
      consts["agent_bias"], consts["block_ones"], tapw)


# --------------------- batch-independent constant prep ----------------------

def _bilinear_resize(x, out_h, out_w):
    """PyTorch F.interpolate(mode='bilinear', align_corners=False) on last 2 dims."""
    in_h, in_w = x.shape[-2], x.shape[-1]

    def src_idx(out_size, in_size):
        o = jnp.arange(out_size, dtype=jnp.float32)
        s = (o + 0.5) * (in_size / out_size) - 0.5
        s = jnp.maximum(s, 0.0)
        i0 = jnp.floor(s).astype(jnp.int32)
        i1 = jnp.minimum(i0 + 1, in_size - 1)
        w1 = s - i0.astype(jnp.float32)
        return i0, i1, 1.0 - w1, w1

    r0, r1, rw0, rw1 = src_idx(out_h, in_h)
    c0, c1, cw0, cw1 = src_idx(out_w, in_w)
    rows = x[..., r0, :] * rw0[:, None] + x[..., r1, :] * rw1[:, None]
    return rows[..., c0] * cw0 + rows[..., c1] * cw1


def _adaptive_pool_matrix(H, W, ps):
    """(ps*ps, H*W) matrix implementing nn.AdaptiveAvgPool2d((ps, ps))."""
    def bins(in_size, out_size):
        idx = jnp.arange(out_size)
        start = (idx * in_size) // out_size
        end = ((idx + 1) * in_size + out_size - 1) // out_size
        return start, end

    sy, ey = bins(H, ps)
    sx, ex = bins(W, ps)
    ys = jnp.arange(H)
    xs = jnp.arange(W)
    my = ((ys[None, :] >= sy[:, None]) & (ys[None, :] < ey[:, None])).astype(jnp.float32)
    mx = ((xs[None, :] >= sx[:, None]) & (xs[None, :] < ex[:, None])).astype(jnp.float32)
    my = my / (ey - sy)[:, None].astype(jnp.float32)
    mx = mx / (ex - sx)[:, None].astype(jnp.float32)
    return (my[:, None, :, None] * mx[None, :, None, :]).reshape(ps * ps, H * W)


def prepare_constants(params, H, W, num_heads, agent_num):
    """Everything that depends only on params / H / W — computed once."""
    n = H * W
    c = params["wq"].shape[0]
    head_dim = c // num_heads
    scale = head_dim ** (-0.5)
    A = agent_num
    hA = num_heads * A
    ps = int(round(agent_num ** 0.5))

    # projection weights, lane-0 aligned, bf16 for the MXU
    wq = params["wq"].astype(jnp.bfloat16)
    wk = params["wkv"][:, :c].astype(jnp.bfloat16)
    wv = params["wkv"][:, c:].astype(jnp.bfloat16)
    wproj = params["wproj"].astype(jnp.bfloat16)
    # fold the dwc bias through the proj: (x + dwc + b_dwc)Wp + bp = (x+dwc)Wp + (b_dwc Wp + bp)
    b_eff = (params["bproj"] + jnp.dot(params["b_dwc"], params["wproj"])).astype(jnp.float32)

    # adaptive-pool matrix with the attention scale folded in, tiled over heads
    pool_mat = _adaptive_pool_matrix(H, W, ps) * scale                    # (A, n)
    pool_stacked = jnp.tile(pool_mat, (num_heads, 1)).astype(jnp.bfloat16)  # (hA, n)

    # head block masks
    hidx = jnp.arange(hA) // A
    cidx = jnp.arange(c) // head_dim
    mask_Ac = (hidx[:, None] == cidx[None, :]).astype(jnp.float32)        # (hA, c)
    block_ones = (hidx[:, None] == hidx[None, :]).astype(jnp.float32)     # (hA, hA)

    # positional biases, stacked to match the head-stacked score layouts
    pb1 = _bilinear_resize(params["an_bias"], H, W).reshape(num_heads, A, n)
    pb2 = (params["ah_bias"] + params["aw_bias"]).reshape(num_heads, A, n)
    pos_bias = (pb1 + pb2).reshape(hA, n).astype(jnp.float32)             # (hA, n)

    ab1 = _bilinear_resize(params["na_bias"], H, W).reshape(num_heads, A, n)
    ab1 = jnp.transpose(ab1, (0, 2, 1))                                   # (heads, n, A)
    ab2 = (params["ha_bias"] + params["wa_bias"]).reshape(num_heads, n, A)
    agent_bias = jnp.transpose(ab1 + ab2, (1, 0, 2)).reshape(n, hA).astype(jnp.float32)

    # depthwise 3x3 conv: validity mask x tap weight, per image position
    pos = jnp.arange(n)
    row = pos // W
    col = pos % W
    taps = []
    for dy in (-1, 0, 1):
        for dx in (-1, 0, 1):
            t = (dy + 1) * 3 + (dx + 1)
            valid = ((row + dy >= 0) & (row + dy < H)
                     & (col + dx >= 0) & (col + dx < W))
            taps.append(valid[:, None].astype(jnp.float32) * params["w_dwc"][t:t + 1, :])
    tapw = jnp.stack(taps, axis=0)                                        # (9, n, c)

    return dict(
        wq=wq, wk=wk, wv=wv, wproj=wproj, b_eff=b_eff,
        pool_stacked=pool_stacked, mask_Ac=mask_Ac,
        pos_bias=pos_bias, agent_bias=agent_bias, block_ones=block_ones,
        tapw=tapw,
    )


def init_params(key, dim, num_heads, agent_num, window):
    wh, ww = window
    ks = jax.random.split(key, 12)

    def tn(k, shape, std=0.02):
        return std * jax.random.truncated_normal(k, -2.0, 2.0, shape, jnp.float32)

    return dict(
        wq=tn(ks[0], (dim, dim)),          # Linear q (no bias)
        wkv=tn(ks[1], (dim, 2 * dim)),     # Linear kv (no bias)
        wproj=tn(ks[2], (dim, dim)),       # Linear proj
        bproj=tn(ks[3], (1, dim)),
        w_dwc=tn(ks[4], (9, dim)),         # depthwise 3x3 weights, tap-major
        b_dwc=tn(ks[5], (1, dim)),
        an_bias=tn(ks[6], (num_heads, agent_num, 7, 7)),
        ah_bias=tn(ks[7], (1, num_heads, agent_num, wh, 1)),
        aw_bias=tn(ks[8], (1, num_heads, agent_num, 1, ww)),
        na_bias=tn(ks[9], (num_heads, agent_num, 7, 7)),
        ha_bias=tn(ks[10], (1, num_heads, wh, 1, agent_num)),
        wa_bias=tn(ks[11], (1, num_heads, 1, ww, agent_num)),
    )


# ---------------------------------- main ------------------------------------

if __name__ == "__main__":
    dim = 32
    num_heads = 4
    agent_num = 16          # pool_size = 4
    H = W = 8
    num_patches = H * W     # 64
    batch = 4               # -> BT=2, grid=(2,): exercises batch tiling + both v7x TCs

    key = jax.random.PRNGKey(0)
    kx, kp = jax.random.split(key)
    x = jax.random.normal(kx, (batch, num_patches, dim), jnp.float32)
    params = init_params(kp, dim, num_heads, agent_num, (H, W))
    consts = prepare_constants(params, H, W, num_heads, agent_num)

    out = agent_attention_forward(x, consts, H=H, W=W)
    jax.block_until_ready(out)
    assert out.shape == (batch, num_patches, dim)
    assert bool(jnp.isfinite(out).all())
    print("KERNEL_OK")
</pallas_src>

<mosaic_0001>
module attributes {stable_mosaic.version = 11 : i64} {
  func.func @_fused_agent_attention_kernel(%arg0: i32, %arg1: memref<2x64x32xf32, #tpu.memory_space<vmem>>, %arg2: memref<32x32xbf16, #tpu.memory_space<vmem>>, %arg3: memref<32x32xbf16, #tpu.memory_space<vmem>>, %arg4: memref<32x32xbf16, #tpu.memory_space<vmem>>, %arg5: memref<32x32xbf16, #tpu.memory_space<vmem>>, %arg6: memref<1x32xf32, #tpu.memory_space<vmem>>, %arg7: memref<64x64xbf16, #tpu.memory_space<vmem>>, %arg8: memref<64x32xf32, #tpu.memory_space<vmem>>, %arg9: memref<64x64xf32, #tpu.memory_space<vmem>>, %arg10: memref<64x64xf32, #tpu.memory_space<vmem>>, %arg11: memref<64x64xf32, #tpu.memory_space<vmem>>, %arg12: memref<9x128x32xf32, #tpu.memory_space<vmem>>, %arg13: memref<2x64x32xf32, #tpu.memory_space<vmem>>) attributes {dimension_semantics = [#tpu.dimension_semantics<parallel>], iteration_bounds = array<i64: 2>, scalar_prefetch = 0 : i64, scratch_operands = 0 : i64, tpu.core_type = #tpu.core_type<tc>, window_params = [{transform_indices = @transform_0, window_bounds = array<i64: 2, 64, 32>}, {pipeline_mode = #tpu.pipeline_mode<synchronous>, transform_indices = @transform_1, window_bounds = array<i64: 32, 32>}, {pipeline_mode = #tpu.pipeline_mode<synchronous>, transform_indices = @transform_2, window_bounds = array<i64: 32, 32>}, {pipeline_mode = #tpu.pipeline_mode<synchronous>, transform_indices = @transform_3, window_bounds = array<i64: 32, 32>}, {pipeline_mode = #tpu.pipeline_mode<synchronous>, transform_indices = @transform_4, window_bounds = array<i64: 32, 32>}, {pipeline_mode = #tpu.pipeline_mode<synchronous>, transform_indices = @transform_5, window_bounds = array<i64: 1, 32>}, {pipeline_mode = #tpu.pipeline_mode<synchronous>, transform_indices = @transform_6, window_bounds = array<i64: 64, 64>}, {pipeline_mode = #tpu.pipeline_mode<synchronous>, transform_indices = @transform_7, window_bounds = array<i64: 64, 32>}, {pipeline_mode = #tpu.pipeline_mode<synchronous>, transform_indices = @transform_8, window_bounds = array<i64: 64, 64>}, {pipeline_mode = #tpu.pipeline_mode<synchronous>, transform_indices = @transform_9, window_bounds = array<i64: 64, 64>}, {pipeline_mode = #tpu.pipeline_mode<synchronous>, transform_indices = @transform_10, window_bounds = array<i64: 64, 64>}, {pipeline_mode = #tpu.pipeline_mode<synchronous>, transform_indices = @transform_11, window_bounds = array<i64: 9, 128, 32>}, {transform_indices = @transform_12, window_bounds = array<i64: 2, 64, 32>}]} {
    %c0 = arith.constant 0 : index
    %c0_0 = arith.constant 0 : index
    %c0_1 = arith.constant 0 : index
    %0 = vector.load %arg1[%c0, %c0_0, %c0_1] : memref<2x64x32xf32, #tpu.memory_space<vmem>>, vector<2x64x32xf32>
    %1 = vector.shape_cast %0 : vector<2x64x32xf32> to vector<128x32xf32>
    %2 = arith.truncf %1 : vector<128x32xf32> to vector<128x32xbf16>
    %c0_2 = arith.constant 0 : index
    %c0_3 = arith.constant 0 : index
    %3 = vector.load %arg2[%c0_2, %c0_3] : memref<32x32xbf16, #tpu.memory_space<vmem>>, vector<32x32xbf16>
    %cst = arith.constant dense<0.000000e+00> : vector<128x32xf32>
    %4 = tpu.matmul %2, %3, %cst {dimension_numbers = #tpu.dot_dimension_numbers<[1], [0], [0], [1], [0, 0, 1, 1], [], []>} : vector<128x32xbf16>, vector<32x32xbf16>, vector<128x32xf32> -> vector<128x32xf32>
    %c0_4 = arith.constant 0 : index
    %c0_5 = arith.constant 0 : index
    %5 = vector.load %arg3[%c0_4, %c0_5] : memref<32x32xbf16, #tpu.memory_space<vmem>>, vector<32x32xbf16>
    %cst_6 = arith.constant dense<0.000000e+00> : vector<128x32xf32>
    %6 = tpu.matmul %2, %5, %cst_6 {dimension_numbers = #tpu.dot_dimension_numbers<[1], [0], [0], [1], [0, 0, 1, 1], [], []>} : vector<128x32xbf16>, vector<32x32xbf16>, vector<128x32xf32> -> vector<128x32xf32>
    %c0_7 = arith.constant 0 : index
    %c0_8 = arith.constant 0 : index
    %7 = vector.load %arg4[%c0_7, %c0_8] : memref<32x32xbf16, #tpu.memory_space<vmem>>, vector<32x32xbf16>
    %cst_9 = arith.constant dense<0.000000e+00> : vector<128x32xf32>
    %8 = tpu.matmul %2, %7, %cst_9 {dimension_numbers = #tpu.dot_dimension_numbers<[1], [0], [0], [1], [0, 0, 1, 1], [], []>} : vector<128x32xbf16>, vector<32x32xbf16>, vector<128x32xf32> -> vector<128x32xf32>
    %cst_10 = arith.constant 0.000000e+00 : f32
    %9 = vector.broadcast %cst_10 : f32 to vector<128x32xf32>
    %c9_i32 = arith.constant 9 : i32
    %10 = tpu.dynamic_rotate %8 by %c9_i32 dim 0 : vector<128x32xf32>, i32 -> vector<128x32xf32>
    %c0_11 = arith.constant 0 : index
    %c0_12 = arith.constant 0 : index
    %c0_13 = arith.constant 0 : index
    %11 = vector.load %arg12[%c0_11, %c0_12, %c0_13] : memref<9x128x32xf32, #tpu.memory_space<vmem>>, vector<1x128x32xf32>
    %12 = vector.shape_cast %11 : vector<1x128x32xf32> to vector<128x32xf32>
    %13 = arith.mulf %10, %12 : vector<128x32xf32>
    %14 = arith.addf %9, %13 : vector<128x32xf32>
    %c8_i32 = arith.constant 8 : i32
    %15 = tpu.dynamic_rotate %8 by %c8_i32 dim 0 : vector<128x32xf32>, i32 -> vector<128x32xf32>
    %c1 = arith.constant 1 : index
    %c0_14 = arith.constant 0 : index
    %c0_15 = arith.constant 0 : index
    %16 = vector.load %arg12[%c1, %c0_14, %c0_15] : memref<9x128x32xf32, #tpu.memory_space<vmem>>, vector<1x128x32xf32>
    %17 = vector.shape_cast %16 : vector<1x128x32xf32> to vector<128x32xf32>
    %18 = arith.mulf %15, %17 : vector<128x32xf32>
    %19 = arith.addf %14, %18 : vector<128x32xf32>
    %c7_i32 = arith.constant 7 : i32
    %20 = tpu.dynamic_rotate %8 by %c7_i32 dim 0 : vector<128x32xf32>, i32 -> vector<128x32xf32>
    %c2 = arith.constant 2 : index
    %c0_16 = arith.constant 0 : index
    %c0_17 = arith.constant 0 : index
    %21 = vector.load %arg12[%c2, %c0_16, %c0_17] : memref<9x128x32xf32, #tpu.memory_space<vmem>>, vector<1x128x32xf32>
    %22 = vector.shape_cast %21 : vector<1x128x32xf32> to vector<128x32xf32>
    %23 = arith.mulf %20, %22 : vector<128x32xf32>
    %24 = arith.addf %19, %23 : vector<128x32xf32>
    %c1_i32 = arith.constant 1 : i32
    %25 = tpu.dynamic_rotate %8 by %c1_i32 dim 0 : vector<128x32xf32>, i32 -> vector<128x32xf32>
    %c3 = arith.constant 3 : index
    %c0_18 = arith.constant 0 : index
    %c0_19 = arith.constant 0 : index
    %26 = vector.load %arg12[%c3, %c0_18, %c0_19] : memref<9x128x32xf32, #tpu.memory_space<vmem>>, vector<1x128x32xf32>
    %27 = vector.shape_cast %26 : vector<1x128x32xf32> to vector<128x32xf32>
    %28 = arith.mulf %25, %27 : vector<128x32xf32>
    %29 = arith.addf %24, %28 : vector<128x32xf32>
    %c4 = arith.constant 4 : index
    %c0_20 = arith.constant 0 : index
    %c0_21 = arith.constant 0 : index
    %30 = vector.load %arg12[%c4, %c0_20, %c0_21] : memref<9x128x32xf32, #tpu.memory_space<vmem>>, vector<1x128x32xf32>
    %31 = vector.shape_cast %30 : vector<1x128x32xf32> to vector<128x32xf32>
    %32 = arith.mulf %8, %31 : vector<128x32xf32>
    %33 = arith.addf %29, %32 : vector<128x32xf32>
    %c127_i32 = arith.constant 127 : i32
    %34 = tpu.dynamic_rotate %8 by %c127_i32 dim 0 : vector<128x32xf32>, i32 -> vector<128x32xf32>
    %c5 = arith.constant 5 : index
    %c0_22 = arith.constant 0 : index
    %c0_23 = arith.constant 0 : index
    %35 = vector.load %arg12[%c5, %c0_22, %c0_23] : memref<9x128x32xf32, #tpu.memory_space<vmem>>, vector<1x128x32xf32>
    %36 = vector.shape_cast %35 : vector<1x128x32xf32> to vector<128x32xf32>
    %37 = arith.mulf %34, %36 : vector<128x32xf32>
    %38 = arith.addf %33, %37 : vector<128x32xf32>
    %c121_i32 = arith.constant 121 : i32
    %39 = tpu.dynamic_rotate %8 by %c121_i32 dim 0 : vector<128x32xf32>, i32 -> vector<128x32xf32>
    %c6 = arith.constant 6 : index
    %c0_24 = arith.constant 0 : index
    %c0_25 = arith.constant 0 : index
    %40 = vector.load %arg12[%c6, %c0_24, %c0_25] : memref<9x128x32xf32, #tpu.memory_space<vmem>>, vector<1x128x32xf32>
    %41 = vector.shape_cast %40 : vector<1x128x32xf32> to vector<128x32xf32>
    %42 = arith.mulf %39, %41 : vector<128x32xf32>
    %43 = arith.addf %38, %42 : vector<128x32xf32>
    %c120_i32 = arith.constant 120 : i32
    %44 = tpu.dynamic_rotate %8 by %c120_i32 dim 0 : vector<128x32xf32>, i32 -> vector<128x32xf32>
    %c7 = arith.constant 7 : index
    %c0_26 = arith.constant 0 : index
    %c0_27 = arith.constant 0 : index
    %45 = vector.load %arg12[%c7, %c0_26, %c0_27] : memref<9x128x32xf32, #tpu.memory_space<vmem>>, vector<1x128x32xf32>
    %46 = vector.shape_cast %45 : vector<1x128x32xf32> to vector<128x32xf32>
    %47 = arith.mulf %44, %46 : vector<128x32xf32>
    %48 = arith.addf %43, %47 : vector<128x32xf32>
    %c119_i32 = arith.constant 119 : i32
    %49 = tpu.dynamic_rotate %8 by %c119_i32 dim 0 : vector<128x32xf32>, i32 -> vector<128x32xf32>
    %c8 = arith.constant 8 : index
    %c0_28 = arith.constant 0 : index
    %c0_29 = arith.constant 0 : index
    %50 = vector.load %arg12[%c8, %c0_28, %c0_29] : memref<9x128x32xf32, #tpu.memory_space<vmem>>, vector<1x128x32xf32>
    %51 = vector.shape_cast %50 : vector<1x128x32xf32> to vector<128x32xf32>
    %52 = arith.mulf %49, %51 : vector<128x32xf32>
    %53 = arith.addf %48, %52 : vector<128x32xf32>
    %c0_30 = arith.constant 0 : index
    %c0_31 = arith.constant 0 : index
    %54 = vector.load %arg7[%c0_30, %c0_31] : memref<64x64xbf16, #tpu.memory_space<vmem>>, vector<64x64xbf16>
    %c0_32 = arith.constant 0 : index
    %c0_33 = arith.constant 0 : index
    %55 = vector.load %arg8[%c0_32, %c0_33] : memref<64x32xf32, #tpu.memory_space<vmem>>, vector<64x32xf32>
    %c0_34 = arith.constant 0 : index
    %c0_35 = arith.constant 0 : index
    %56 = vector.load %arg9[%c0_34, %c0_35] : memref<64x64xf32, #tpu.memory_space<vmem>>, vector<64x64xf32>
    %c0_36 = arith.constant 0 : index
    %c0_37 = arith.constant 0 : index
    %57 = vector.load %arg10[%c0_36, %c0_37] : memref<64x64xf32, #tpu.memory_space<vmem>>, vector<64x64xf32>
    %c0_38 = arith.constant 0 : index
    %c0_39 = arith.constant 0 : index
    %58 = vector.load %arg11[%c0_38, %c0_39] : memref<64x64xf32, #tpu.memory_space<vmem>>, vector<64x64xf32>
    %59 = vector.extract_strided_slice %4 {offsets = [0, 0], sizes = [64, 32], strides = [1, 1]} : vector<128x32xf32> to vector<64x32xf32>
    %60 = arith.truncf %59 : vector<64x32xf32> to vector<64x32xbf16>
    %61 = vector.extract_strided_slice %6 {offsets = [0, 0], sizes = [64, 32], strides = [1, 1]} : vector<128x32xf32> to vector<64x32xf32>
    %62 = arith.truncf %61 : vector<64x32xf32> to vector<64x32xbf16>
    %63 = vector.extract_strided_slice %8 {offsets = [0, 0], sizes = [64, 32], strides = [1, 1]} : vector<128x32xf32> to vector<64x32xf32>
    %64 = arith.truncf %63 : vector<64x32xf32> to vector<64x32xbf16>
    %cst_40 = arith.constant dense<0.000000e+00> : vector<64x32xf32>
    %65 = tpu.matmul %54, %60, %cst_40 {dimension_numbers = #tpu.dot_dimension_numbers<[1], [0], [0], [1], [0, 0, 1, 1], [], []>} : vector<64x64xbf16>, vector<64x32xbf16>, vector<64x32xf32> -> vector<64x32xf32>
    %66 = arith.mulf %65, %55 : vector<64x32xf32>
    %67 = arith.truncf %66 : vector<64x32xf32> to vector<64x32xbf16>
    %cst_41 = arith.constant dense<0.000000e+00> : vector<64x64xf32>
    %68 = tpu.matmul %67, %62, %cst_41 {dimension_numbers = #tpu.dot_dimension_numbers<[1], [1], [0], [0], [0, 0, 1, 0], [], []>} : vector<64x32xbf16>, vector<64x32xbf16>, vector<64x64xf32> -> vector<64x64xf32>
    %69 = arith.addf %68, %56 : vector<64x64xf32>
    %cst_42 = arith.constant dense<0xFF800000> : vector<64xf32>
    %70 = vector.multi_reduction <maximumf>, %69, %cst_42 [1] : vector<64x64xf32> to vector<64xf32>
    %71 = vector.shape_cast %70 : vector<64xf32> to vector<64x1xf32>
    %72 = vector.broadcast %71 : vector<64x1xf32> to vector<64x64xf32>
    %73 = arith.subf %69, %72 : vector<64x64xf32>
    %74 = math.exp %73 : vector<64x64xf32>
    %cst_43 = arith.constant dense<0.000000e+00> : vector<64xf32>
    %75 = vector.multi_reduction <add>, %74, %cst_43 [1] : vector<64x64xf32> to vector<64xf32>
    %76 = vector.shape_cast %75 : vector<64xf32> to vector<64x1xf32>
    %77 = tpu.reciprocal %76 {approx = true} : vector<64x1xf32> -> vector<64x1xf32>
    %78 = vector.broadcast %77 : vector<64x1xf32> to vector<64x64xf32>
    %79 = arith.mulf %74, %78 : vector<64x64xf32>
    %80 = arith.truncf %79 : vector<64x64xf32> to vector<64x64xbf16>
    %cst_44 = arith.constant dense<0.000000e+00> : vector<64x32xf32>
    %81 = tpu.matmul %80, %64, %cst_44 {dimension_numbers = #tpu.dot_dimension_numbers<[1], [0], [0], [1], [0, 0, 1, 1], [], []>} : vector<64x64xbf16>, vector<64x32xbf16>, vector<64x32xf32> -> vector<64x32xf32>
    %82 = arith.mulf %81, %55 : vector<64x32xf32>
    %cst_45 = arith.constant dense<0.000000e+00> : vector<64x64xf32>
    %83 = tpu.matmul %60, %67, %cst_45 {dimension_numbers = #tpu.dot_dimension_numbers<[1], [1], [0], [0], [0, 0, 1, 0], [], []>} : vector<64x32xbf16>, vector<64x32xbf16>, vector<64x64xf32> -> vector<64x64xf32>
    %84 = arith.addf %83, %57 : vector<64x64xf32>
    %cst_46 = arith.constant dense<0xFF800000> : vector<64xf32>
    %85 = vector.multi_reduction <maximumf>, %84, %cst_46 [1] : vector<64x64xf32> to vector<64xf32>
    %86 = vector.shape_cast %85 : vector<64xf32> to vector<64x1xf32>
    %87 = vector.broadcast %86 : vector<64x1xf32> to vector<64x64xf32>
    %88 = arith.subf %84, %87 : vector<64x64xf32>
    %89 = math.exp %88 : vector<64x64xf32>
    %cst_47 = arith.constant dense<0.000000e+00> : vector<64x64xf32>
    %90 = tpu.matmul %89, %58, %cst_47 {dimension_numbers = #tpu.dot_dimension_numbers<[1], [0], [0], [1], [0, 0, 1, 1], [], []>} : vector<64x64xf32>, vector<64x64xf32>, vector<64x64xf32> -> vector<64x64xf32>
    %91 = tpu.reciprocal %90 {approx = true} : vector<64x64xf32> -> vector<64x64xf32>
    %92 = arith.mulf %89, %91 : vector<64x64xf32>
    %93 = arith.truncf %92 : vector<64x64xf32> to vector<64x64xbf16>
    %94 = arith.truncf %82 : vector<64x32xf32> to vector<64x32xbf16>
    %cst_48 = arith.constant dense<0.000000e+00> : vector<64x32xf32>
    %95 = tpu.matmul %93, %94, %cst_48 {dimension_numbers = #tpu.dot_dimension_numbers<[1], [0], [0], [1], [0, 0, 1, 1], [], []>} : vector<64x64xbf16>, vector<64x32xbf16>, vector<64x32xf32> -> vector<64x32xf32>
    %96 = vector.extract_strided_slice %4 {offsets = [64, 0], sizes = [64, 32], strides = [1, 1]} : vector<128x32xf32> to vector<64x32xf32>
    %97 = arith.truncf %96 : vector<64x32xf32> to vector<64x32xbf16>
    %98 = vector.extract_strided_slice %6 {offsets = [64, 0], sizes = [64, 32], strides = [1, 1]} : vector<128x32xf32> to vector<64x32xf32>
    %99 = arith.truncf %98 : vector<64x32xf32> to vector<64x32xbf16>
    %100 = vector.extract_strided_slice %8 {offsets = [64, 0], sizes = [64, 32], strides = [1, 1]} : vector<128x32xf32> to vector<64x32xf32>
    %101 = arith.truncf %100 : vector<64x32xf32> to vector<64x32xbf16>
    %cst_49 = arith.constant dense<0.000000e+00> : vector<64x32xf32>
    %102 = tpu.matmul %54, %97, %cst_49 {dimension_numbers = #tpu.dot_dimension_numbers<[1], [0], [0], [1], [0, 0, 1, 1], [], []>} : vector<64x64xbf16>, vector<64x32xbf16>, vector<64x32xf32> -> vector<64x32xf32>
    %103 = arith.mulf %102, %55 : vector<64x32xf32>
    %104 = arith.truncf %103 : vector<64x32xf32> to vector<64x32xbf16>
    %cst_50 = arith.constant dense<0.000000e+00> : vector<64x64xf32>
    %105 = tpu.matmul %104, %99, %cst_50 {dimension_numbers = #tpu.dot_dimension_numbers<[1], [1], [0], [0], [0, 0, 1, 0], [], []>} : vector<64x32xbf16>, vector<64x32xbf16>, vector<64x64xf32> -> vector<64x64xf32>
    %106 = arith.addf %105, %56 : vector<64x64xf32>
    %cst_51 = arith.constant dense<0xFF800000> : vector<64xf32>
    %107 = vector.multi_reduction <maximumf>, %106, %cst_51 [1] : vector<64x64xf32> to vector<64xf32>
    %108 = vector.shape_cast %107 : vector<64xf32> to vector<64x1xf32>
    %109 = vector.broadcast %108 : vector<64x1xf32> to vector<64x64xf32>
    %110 = arith.subf %106, %109 : vector<64x64xf32>
    %111 = math.exp %110 : vector<64x64xf32>
    %cst_52 = arith.constant dense<0.000000e+00> : vector<64xf32>
    %112 = vector.multi_reduction <add>, %111, %cst_52 [1] : vector<64x64xf32> to vector<64xf32>
    %113 = vector.shape_cast %112 : vector<64xf32> to vector<64x1xf32>
    %114 = tpu.reciprocal %113 {approx = true} : vector<64x1xf32> -> vector<64x1xf32>
    %115 = vector.broadcast %114 : vector<64x1xf32> to vector<64x64xf32>
    %116 = arith.mulf %111, %115 : vector<64x64xf32>
    %117 = arith.truncf %116 : vector<64x64xf32> to vector<64x64xbf16>
    %cst_53 = arith.constant dense<0.000000e+00> : vector<64x32xf32>
    %118 = tpu.matmul %117, %101, %cst_53 {dimension_numbers = #tpu.dot_dimension_numbers<[1], [0], [0], [1], [0, 0, 1, 1], [], []>} : vector<64x64xbf16>, vector<64x32xbf16>, vector<64x32xf32> -> vector<64x32xf32>
    %119 = arith.mulf %118, %55 : vector<64x32xf32>
    %cst_54 = arith.constant dense<0.000000e+00> : vector<64x64xf32>
    %120 = tpu.matmul %97, %104, %cst_54 {dimension_numbers = #tpu.dot_dimension_numbers<[1], [1], [0], [0], [0, 0, 1, 0], [], []>} : vector<64x32xbf16>, vector<64x32xbf16>, vector<64x64xf32> -> vector<64x64xf32>
    %121 = arith.addf %120, %57 : vector<64x64xf32>
    %cst_55 = arith.constant dense<0xFF800000> : vector<64xf32>
    %122 = vector.multi_reduction <maximumf>, %121, %cst_55 [1] : vector<64x64xf32> to vector<64xf32>
    %123 = vector.shape_cast %122 : vector<64xf32> to vector<64x1xf32>
    %124 = vector.broadcast %123 : vector<64x1xf32> to vector<64x64xf32>
    %125 = arith.subf %121, %124 : vector<64x64xf32>
    %126 = math.exp %125 : vector<64x64xf32>
    %cst_56 = arith.constant dense<0.000000e+00> : vector<64x64xf32>
    %127 = tpu.matmul %126, %58, %cst_56 {dimension_numbers = #tpu.dot_dimension_numbers<[1], [0], [0], [1], [0, 0, 1, 1], [], []>} : vector<64x64xf32>, vector<64x64xf32>, vector<64x64xf32> -> vector<64x64xf32>
    %128 = tpu.reciprocal %127 {approx = true} : vector<64x64xf32> -> vector<64x64xf32>
    %129 = arith.mulf %126, %128 : vector<64x64xf32>
    %130 = arith.truncf %129 : vector<64x64xf32> to vector<64x64xbf16>
    %131 = arith.truncf %119 : vector<64x32xf32> to vector<64x32xbf16>
    %cst_57 = arith.constant dense<0.000000e+00> : vector<64x32xf32>
    %132 = tpu.matmul %130, %131, %cst_57 {dimension_numbers = #tpu.dot_dimension_numbers<[1], [0], [0], [1], [0, 0, 1, 1], [], []>} : vector<64x64xbf16>, vector<64x32xbf16>, vector<64x32xf32> -> vector<64x32xf32>
    %133 = tpu.concatenate %95, %132 in 0 : vector<64x32xf32>, vector<64x32xf32> -> vector<128x32xf32>
    %134 = arith.addf %133, %53 : vector<128x32xf32>
    %135 = arith.truncf %134 : vector<128x32xf32> to vector<128x32xbf16>
    %c0_58 = arith.constant 0 : index
    %c0_59 = arith.constant 0 : index
    %136 = vector.load %arg5[%c0_58, %c0_59] : memref<32x32xbf16, #tpu.memory_space<vmem>>, vector<32x32xbf16>
    %cst_60 = arith.constant dense<0.000000e+00> : vector<128x32xf32>
    %137 = tpu.matmul %135, %136, %cst_60 {dimension_numbers = #tpu.dot_dimension_numbers<[1], [0], [0], [1], [0, 0, 1, 1], [], []>} : vector<128x32xbf16>, vector<32x32xbf16>, vector<128x32xf32> -> vector<128x32xf32>
    %c0_61 = arith.constant 0 : index
    %c0_62 = arith.constant 0 : index
    %138 = vector.load %arg6[%c0_61, %c0_62] : memref<1x32xf32, #tpu.memory_space<vmem>>, vector<1x32xf32>
    %139 = vector.broadcast %138 : vector<1x32xf32> to vector<128x32xf32>
    %140 = arith.addf %137, %139 : vector<128x32xf32>
    %141 = vector.shape_cast %140 : vector<128x32xf32> to vector<2x64x32xf32>
    %c0_63 = arith.constant 0 : index
    %c0_64 = arith.constant 0 : index
    %c0_65 = arith.constant 0 : index
    %142 = vector.load %arg13[%c0_63, %c0_64, %c0_65] : memref<2x64x32xf32, #tpu.memory_space<vmem>>, vector<2x64x32xf32>
    tpu.vector_store %arg13[%c0_63, %c0_64, %c0_65], %141 {strides = array<i32>} : memref<2x64x32xf32, #tpu.memory_space<vmem>>, vector<2x64x32xf32>,
    return
  }
  func.func @transform_0(%arg0: i32) -> (i32, i32, i32) {
    %c0_i32 = arith.constant 0 : i32
    %c0_i32_0 = arith.constant 0 : i32
    %c0_i32_1 = arith.constant 0 : i32
    return %arg0, %c0_i32, %c0_i32_0 : i32, i32, i32
  }
  func.func @transform_1(%arg0: i32) -> (i32, i32) {
    %c0_i32 = arith.constant 0 : i32
    %c0_i32_0 = arith.constant 0 : i32
    %c0_i32_1 = arith.constant 0 : i32
    return %c0_i32, %c0_i32_0 : i32, i32
  }
  func.func @transform_2(%arg0: i32) -> (i32, i32) {
    %c0_i32 = arith.constant 0 : i32
    %c0_i32_0 = arith.constant 0 : i32
    %c0_i32_1 = arith.constant 0 : i32
    return %c0_i32, %c0_i32_0 : i32, i32
  }
  func.func @transform_3(%arg0: i32) -> (i32, i32) {
    %c0_i32 = arith.constant 0 : i32
    %c0_i32_0 = arith.constant 0 : i32
    %c0_i32_1 = arith.constant 0 : i32
    return %c0_i32, %c0_i32_0 : i32, i32
  }
  func.func @transform_4(%arg0: i32) -> (i32, i32) {
    %c0_i32 = arith.constant 0 : i32
    %c0_i32_0 = arith.constant 0 : i32
    %c0_i32_1 = arith.constant 0 : i32
    return %c0_i32, %c0_i32_0 : i32, i32
  }
  func.func @transform_5(%arg0: i32) -> (i32, i32) {
    %c0_i32 = arith.constant 0 : i32
    %c0_i32_0 = arith.constant 0 : i32
    %c0_i32_1 = arith.constant 0 : i32
    return %c0_i32, %c0_i32_0 : i32, i32
  }
  func.func @transform_6(%arg0: i32) -> (i32, i32) {
    %c0_i32 = arith.constant 0 : i32
    %c0_i32_0 = arith.constant 0 : i32
    %c0_i32_1 = arith.constant 0 : i32
    return %c0_i32, %c0_i32_0 : i32, i32
  }
  func.func @transform_7(%arg0: i32) -> (i32, i32) {
    %c0_i32 = arith.constant 0 : i32
    %c0_i32_0 = arith.constant 0 : i32
    %c0_i32_1 = arith.constant 0 : i32
    return %c0_i32, %c0_i32_0 : i32, i32
  }
  func.func @transform_8(%arg0: i32) -> (i32, i32) {
    %c0_i32 = arith.constant 0 : i32
    %c0_i32_0 = arith.constant 0 : i32
    %c0_i32_1 = arith.constant 0 : i32
    return %c0_i32, %c0_i32_0 : i32, i32
  }
  func.func @transform_9(%arg0: i32) -> (i32, i32) {
    %c0_i32 = arith.constant 0 : i32
    %c0_i32_0 = arith.constant 0 : i32
    %c0_i32_1 = arith.constant 0 : i32
    return %c0_i32, %c0_i32_0 : i32, i32
  }
  func.func @transform_10(%arg0: i32) -> (i32, i32) {
    %c0_i32 = arith.constant 0 : i32
    %c0_i32_0 = arith.constant 0 : i32
    %c0_i32_1 = arith.constant 0 : i32
    return %c0_i32, %c0_i32_0 : i32, i32
  }
  func.func @transform_11(%arg0: i32) -> (i32, i32, i32) {
    %c0_i32 = arith.constant 0 : i32
    %c0_i32_0 = arith.constant 0 : i32
    %c0_i32_1 = arith.constant 0 : i32
    %c0_i32_2 = arith.constant 0 : i32
    return %c0_i32, %c0_i32_0, %c0_i32_1 : i32, i32, i32
  }
  func.func @transform_12(%arg0: i32) -> (i32, i32, i32) {
    %c0_i32 = arith.constant 0 : i32
    %c0_i32_0 = arith.constant 0 : i32
    %c0_i32_1 = arith.constant 0 : i32
    return %arg0, %c0_i32, %c0_i32_0 : i32, i32, i32
  }
}

</mosaic_0001>

<llo_original>
// kernel: tpu_custom_call.1
$region0: #{tpu_custom_call.1}
  #allocation0 [shape = 'u32[]', space=smem, size = 0x4, offset = 0x4, fixed_abs, tag = 'smem constant byte address 0x4 - core index']
  #allocation1 [shape = 'u32[144,128]{1,0:T(1,128)}', space=vmem, size = 0x12000, scoped, tag = 'internal scratch']
  %s0 = inlined_call_operand.vmem [shape: f32[4,64,32], index: 0, kind: input, shape index: {}]
  %s1 = inlined_call_operand.vmem [shape: bf16[32,32], index: 1, kind: input, shape index: {}]
  %s2 = inlined_call_operand.vmem [shape: bf16[32,32], index: 2, kind: input, shape index: {}]
  %s3 = inlined_call_operand.vmem [shape: bf16[32,32], index: 3, kind: input, shape index: {}]
  %s4 = inlined_call_operand.vmem [shape: bf16[32,32], index: 4, kind: input, shape index: {}]
  %s5 = inlined_call_operand.vmem [shape: f32[1,32], index: 5, kind: input, shape index: {}]
  %s6 = inlined_call_operand.vmem [shape: bf16[64,64], index: 6, kind: input, shape index: {}]
  %s7 = inlined_call_operand.vmem [shape: f32[64,32], index: 7, kind: input, shape index: {}]
  %s8 = inlined_call_operand.vmem [shape: f32[64,64], index: 8, kind: input, shape index: {}]
  %s9 = inlined_call_operand.vmem [shape: f32[64,64], index: 9, kind: input, shape index: {}]
  %s10 = inlined_call_operand.vmem [shape: f32[64,64], index: 10, kind: input, shape index: {}]
  %s11 = inlined_call_operand.vmem [shape: f32[9,128,32], index: 11, kind: input, shape index: {}]
  %s12 = inlined_call_operand.vmem [shape: f32[4,64,32], index: 12, kind: output, shape index: {}]
  %s13 = sld [smem:[#allocation0]]
  $region81: #{tpu_custom_call.1} parent=0
    _
  %s15 = ssub.s32 1, %s13
  %s16 = scalar_select 0, %s15, %s13
  loop: start=0, step=1, limit=4
  $region2: #{tpu_custom_call.1} parent=0 // loop_pre_header
    _
  $region3: #{tpu_custom_call.1} parent=0 // loop_header
    %s18 = sphi 0, %s22
    %p19 = scmp.ge.s32.totalorder %s18, 4
    %s28 = sphi 0, %s30
    %s31 = sphi 0, %s28
    %s32 = sphi 0, %s31
    %s48 = sphi 0, %s32
    %s52 = sphi 0, %s52
    %s54 = sphi 0, %s52
    %s55 = sphi 0, %s54
    %s69 = sphi 0, %s55
    %s73 = sphi 0, %s73
    %s75 = sphi 0, %s73
    %s76 = sphi 0, %s75
    %s90 = sphi 0, %s76
    %s94 = sphi 0, %s94
    %s96 = sphi 0, %s94
    %s97 = sphi 0, %s96
    %s111 = sphi 0, %s97
    %s115 = sphi 0, %s115
    %s117 = sphi 0, %s115
    %s118 = sphi 0, %s117
    %s132 = sphi 0, %s118
    %s136 = sphi 0, %s136
    %s138 = sphi 0, %s136
    %s139 = sphi 0, %s138
    %s153 = sphi 0, %s139
    %s157 = sphi 0, %s157
    %s159 = sphi 0, %s157
    %s160 = sphi 0, %s159
    %s174 = sphi 0, %s160
    %s178 = sphi 0, %s178
    %s180 = sphi 0, %s178
    %s181 = sphi 0, %s180
    %s195 = sphi 0, %s181
    %s199 = sphi 0, %s199
    %s201 = sphi 0, %s199
    %s202 = sphi 0, %s201
    %s216 = sphi 0, %s202
    %s220 = sphi 0, %s220
    %s222 = sphi 0, %s220
    %s223 = sphi 0, %s222
    %s237 = sphi 0, %s223
    %s241 = sphi 0, %s241
    %s243 = sphi 0, %s241
    %s244 = sphi 0, %s243
    %s258 = sphi 0, %s244
    %s262 = sphi 0, %s262
    %s264 = sphi 0, %s262
    %s265 = sphi 0, %s264
    %s279 = sphi 0, %s265
    %s285 = sphi 0, %s287
    %s288 = sphi 0, %s285
    %s289 = sphi 0, %s288
    %s305 = sphi 0, %s289
  $region4: #{tpu_custom_call.1} parent=0 // loop_header_branch
    %21 = sbr.rel (%p19) target = $region8
  $region5: #{tpu_custom_call.1} parent=0 // loop_body
    %s23 = ssub.s32 %s18, 1
    %s24 = ssub.s32 %s18, 2
    %s25 = sadd.s32 %s18, 1
    %s26 = ssub.s32 %s18, %s25
    %p27 = scmp.eq.s32.totalorder %s26, 0
    %s29 = sadd.s32 %s28, 1
    %s30 = scalar_select %p27, %s28, %s29
    %p33 = pneg %p27
    %p34 = scmp.eq.s32.totalorder %s18, 1
    %p35 = por %p33, %p34
    %p36 = scmp.ne.s32.totalorder %s28, %s31
    %p37 = scmp.eq.s32.totalorder %s18, 0
    %p38 = por %p36, %p37
    %p39 = scmp.ne.s32.totalorder %s28, %s31
    %p40 = scmp.eq.s32.totalorder %s23, 1
    %p41 = por %p39, %p40
    %p42 = scmp.ne.s32.totalorder %s31, %s32
    %p43 = scmp.eq.s32.totalorder %s23, 0
    %p44 = por %p42, %p43
    %p45 = scmp.ne.s32.totalorder %s31, %s32
    %p46 = scmp.eq.s32.totalorder %s24, 1
    %p47 = por %p45, %p46
    %p49 = scmp.ne.s32.totalorder %s32, %s48
    %p50 = scmp.eq.s32.totalorder %s24, 0
    %p51 = por %p49, %p50
    %s53 = sadd.s32 %s52, 1
    %p56 = scmp.eq.s32.totalorder %s18, 1
    %p57 = scmp.ne.s32.totalorder %s52, %s54
    %p58 = scmp.eq.s32.totalorder %s18, 0
    %p59 = por %p57, %p58
    %p60 = scmp.ne.s32.totalorder %s52, %s54
    %p61 = scmp.eq.s32.totalorder %s23, 1
    %p62 = por %p60, %p61
    %p63 = scmp.ne.s32.totalorder %s54, %s55
    %p64 = scmp.eq.s32.totalorder %s23, 0
    %p65 = por %p63, %p64
    %p66 = scmp.ne.s32.totalorder %s54, %s55
    %p67 = scmp.eq.s32.totalorder %s24, 1
    %p68 = por %p66, %p67
    %p70 = scmp.ne.s32.totalorder %s55, %s69
    %p71 = scmp.eq.s32.totalorder %s24, 0
    %p72 = por %p70, %p71
    %s74 = sadd.s32 %s73, 1
    %p77 = scmp.eq.s32.totalorder %s18, 1
    %p78 = scmp.ne.s32.totalorder %s73, %s75
    %p79 = scmp.eq.s32.totalorder %s18, 0
    %p80 = por %p78, %p79
    %p81 = scmp.ne.s32.totalorder %s73, %s75
    %p82 = scmp.eq.s32.totalorder %s23, 1
    %p83 = por %p81, %p82
    %p84 = scmp.ne.s32.totalorder %s75, %s76
    %p85 = scmp.eq.s32.totalorder %s23, 0
    %p86 = por %p84, %p85
    %p87 = scmp.ne.s32.totalorder %s75, %s76
    %p88 = scmp.eq.s32.totalorder %s24, 1
    %p89 = por %p87, %p88
    %p91 = scmp.ne.s32.totalorder %s76, %s90
    %p92 = scmp.eq.s32.totalorder %s24, 0
    %p93 = por %p91, %p92
    %s95 = sadd.s32 %s94, 1
    %p98 = scmp.eq.s32.totalorder %s18, 1
    %p99 = scmp.ne.s32.totalorder %s94, %s96
    %p100 = scmp.eq.s32.totalorder %s18, 0
    %p101 = por %p99, %p100
    %p102 = scmp.ne.s32.totalorder %s94, %s96
    %p103 = scmp.eq.s32.totalorder %s23, 1
    %p104 = por %p102, %p103
    %p105 = scmp.ne.s32.totalorder %s96, %s97
    %p106 = scmp.eq.s32.totalorder %s23, 0
    %p107 = por %p105, %p106
    %p108 = scmp.ne.s32.totalorder %s96, %s97
    %p109 = scmp.eq.s32.totalorder %s24, 1
    %p110 = por %p108, %p109
    %p112 = scmp.ne.s32.totalorder %s97, %s111
    %p113 = scmp.eq.s32.totalorder %s24, 0
    %p114 = por %p112, %p113
    %s116 = sadd.s32 %s115, 1
    %p119 = scmp.eq.s32.totalorder %s18, 1
    %p120 = scmp.ne.s32.totalorder %s115, %s117
    %p121 = scmp.eq.s32.totalorder %s18, 0
    %p122 = por %p120, %p121
    %p123 = scmp.ne.s32.totalorder %s115, %s117
    %p124 = scmp.eq.s32.totalorder %s23, 1
    %p125 = por %p123, %p124
    %p126 = scmp.ne.s32.totalorder %s117, %s118
    %p127 = scmp.eq.s32.totalorder %s23, 0
    %p128 = por %p126, %p127
    %p129 = scmp.ne.s32.totalorder %s117, %s118
    %p130 = scmp.eq.s32.totalorder %s24, 1
    %p131 = por %p129, %p130
    %p133 = scmp.ne.s32.totalorder %s118, %s132
    %p134 = scmp.eq.s32.totalorder %s24, 0
    %p135 = por %p133, %p134
    %s137 = sadd.s32 %s136, 1
    %p140 = scmp.eq.s32.totalorder %s18, 1
    %p141 = scmp.ne.s32.totalorder %s136, %s138
    %p142 = scmp.eq.s32.totalorder %s18, 0
    %p143 = por %p141, %p142
    %p144 = scmp.ne.s32.totalorder %s136, %s138
    %p145 = scmp.eq.s32.totalorder %s23, 1
    %p146 = por %p144, %p145
    %p147 = scmp.ne.s32.totalorder %s138, %s139
    %p148 = scmp.eq.s32.totalorder %s23, 0
    %p149 = por %p147, %p148
    %p150 = scmp.ne.s32.totalorder %s138, %s139
    %p151 = scmp.eq.s32.totalorder %s24, 1
    %p152 = por %p150, %p151
    %p154 = scmp.ne.s32.totalorder %s139, %s153
    %p155 = scmp.eq.s32.totalorder %s24, 0
    %p156 = por %p154, %p155
    %s158 = sadd.s32 %s157, 1
    %p161 = scmp.eq.s32.totalorder %s18, 1
    %p162 = scmp.ne.s32.totalorder %s157, %s159
    %p163 = scmp.eq.s32.totalorder %s18, 0
    %p164 = por %p162, %p163
    %p165 = scmp.ne.s32.totalorder %s157, %s159
    %p166 = scmp.eq.s32.totalorder %s23, 1
    %p167 = por %p165, %p166
    %p168 = scmp.ne.s32.totalorder %s159, %s160
    %p169 = scmp.eq.s32.totalorder %s23, 0
    %p170 = por %p168, %p169
    %p171 = scmp.ne.s32.totalorder %s159, %s160
    %p172 = scmp.eq.s32.totalorder %s24, 1
    %p173 = por %p171, %p172
    %p175 = scmp.ne.s32.totalorder %s160, %s174
    %p176 = scmp.eq.s32.totalorder %s24, 0
    %p177 = por %p175, %p176
    %s179 = sadd.s32 %s178, 1
    %p182 = scmp.eq.s32.totalorder %s18, 1
    %p183 = scmp.ne.s32.totalorder %s178, %s180
    %p184 = scmp.eq.s32.totalorder %s18, 0
    %p185 = por %p183, %p184
    %p186 = scmp.ne.s32.totalorder %s178, %s180
    %p187 = scmp.eq.s32.totalorder %s23, 1
    %p188 = por %p186, %p187
    %p189 = scmp.ne.s32.totalorder %s180, %s181
    %p190 = scmp.eq.s32.totalorder %s23, 0
    %p191 = por %p189, %p190
    %p192 = scmp.ne.s32.totalorder %s180, %s181
    %p193 = scmp.eq.s32.totalorder %s24, 1
    %p194 = por %p192, %p193
    %p196 = scmp.ne.s32.totalorder %s181, %s195
    %p197 = scmp.eq.s32.totalorder %s24, 0
    %p198 = por %p196, %p197
    %s200 = sadd.s32 %s199, 1
    %p203 = scmp.eq.s32.totalorder %s18, 1
    %p204 = scmp.ne.s32.totalorder %s199, %s201
    %p205 = scmp.eq.s32.totalorder %s18, 0
    %p206 = por %p204, %p205
    %p207 = scmp.ne.s32.totalorder %s199, %s201
    %p208 = scmp.eq.s32.totalorder %s23, 1
    %p209 = por %p207, %p208
    %p210 = scmp.ne.s32.totalorder %s201, %s202
    %p211 = scmp.eq.s32.totalorder %s23, 0
    %p212 = por %p210, %p211
    %p213 = scmp.ne.s32.totalorder %s201, %s202
    %p214 = scmp.eq.s32.totalorder %s24, 1
    %p215 = por %p213, %p214
    %p217 = scmp.ne.s32.totalorder %s202, %s216
    %p218 = scmp.eq.s32.totalorder %s24, 0
    %p219 = por %p217, %p218
    %s221 = sadd.s32 %s220, 1
    %p224 = scmp.eq.s32.totalorder %s18, 1
    %p225 = scmp.ne.s32.totalorder %s220, %s222
    %p226 = scmp.eq.s32.totalorder %s18, 0
    %p227 = por %p225, %p226
    %p228 = scmp.ne.s32.totalorder %s220, %s222
    %p229 = scmp.eq.s32.totalorder %s23, 1
    %p230 = por %p228, %p229
    %p231 = scmp.ne.s32.totalorder %s222, %s223
    %p232 = scmp.eq.s32.totalorder %s23, 0
    %p233 = por %p231, %p232
    %p234 = scmp.ne.s32.totalorder %s222, %s223
    %p235 = scmp.eq.s32.totalorder %s24, 1
    %p236 = por %p234, %p235
    %p238 = scmp.ne.s32.totalorder %s223, %s237
    %p239 = scmp.eq.s32.totalorder %s24, 0
    %p240 = por %p238, %p239
    %s242 = sadd.s32 %s241, 1
    %p245 = scmp.eq.s32.totalorder %s18, 1
    %p246 = scmp.ne.s32.totalorder %s241, %s243
    %p247 = scmp.eq.s32.totalorder %s18, 0
    %p248 = por %p246, %p247
    %p249 = scmp.ne.s32.totalorder %s241, %s243
    %p250 = scmp.eq.s32.totalorder %s23, 1
    %p251 = por %p249, %p250
    %p252 = scmp.ne.s32.totalorder %s243, %s244
    %p253 = scmp.eq.s32.totalorder %s23, 0
    %p254 = por %p252, %p253
    %p255 = scmp.ne.s32.totalorder %s243, %s244
    %p256 = scmp.eq.s32.totalorder %s24, 1
    %p257 = por %p255, %p256
    %p259 = scmp.ne.s32.totalorder %s244, %s258
    %p260 = scmp.eq.s32.totalorder %s24, 0
    %p261 = por %p259, %p260
    %s263 = sadd.s32 %s262, 1
    %p266 = scmp.eq.s32.totalorder %s18, 1
    %p267 = scmp.ne.s32.totalorder %s262, %s264
    %p268 = scmp.eq.s32.totalorder %s18, 0
    %p269 = por %p267, %p268
    %p270 = scmp.ne.s32.totalorder %s262, %s264
    %p271 = scmp.eq.s32.totalorder %s23, 1
    %p272 = por %p270, %p271
    %p273 = scmp.ne.s32.totalorder %s264, %s265
    %p274 = scmp.eq.s32.totalorder %s23, 0
    %p275 = por %p273, %p274
    %p276 = scmp.ne.s32.totalorder %s264, %s265
    %p277 = scmp.eq.s32.totalorder %s24, 1
    %p278 = por %p276, %p277
    %p280 = scmp.ne.s32.totalorder %s265, %s279
    %p281 = scmp.eq.s32.totalorder %s24, 0
    %p282 = por %p280, %p281
    %s283 = ssub.s32 %s18, %s25
    %p284 = scmp.eq.s32.totalorder %s283, 0
    %s286 = sadd.s32 %s285, 1
    %s287 = scalar_select %p284, %s285, %s286
    %p290 = pneg %p284
    %p291 = scmp.eq.s32.totalorder %s18, 1
    %p292 = por %p290, %p291
    %p293 = scmp.ne.s32.totalorder %s285, %s288
    %p294 = scmp.eq.s32.totalorder %s18, 0
    %p295 = por %p293, %p294
    %p296 = scmp.ne.s32.totalorder %s285, %s288
    %p297 = scmp.eq.s32.totalorder %s23, 1
    %p298 = por %p296, %p297
    %p299 = scmp.ne.s32.totalorder %s288, %s289
    %p300 = scmp.eq.s32.totalorder %s23, 0
    %p301 = por %p299, %p300
    %p302 = scmp.ne.s32.totalorder %s288, %s289
    %p303 = scmp.eq.s32.totalorder %s24, 1
    %p304 = por %p302, %p303
    %p306 = scmp.ne.s32.totalorder %s289, %s305
    %p307 = scmp.eq.s32.totalorder %s24, 0
    %p308 = por %p306, %p307
    %p309 = scmp.le.s32.totalorder 1, %s18
    %p310 = scmp.lt.s32.totalorder %s18, 3
    %p311 = pnand %p309, %p310
    %p312 = pneg %p311
    // Predicated region
    $region9: #{tpu_custom_call.1} parent=5 // pred_check
      _
    $region10: #{tpu_custom_call.1} parent=5 // pred_check_branch
      %314 = sbr.rel (%p311) target = $region12
    $region11: #{tpu_custom_call.1} parent=5 // pred_region
      %s315 = ssub.s32 %s18, 1
      // Predicated region
      $region13: #{tpu_custom_call.1} parent=11 // pred_check
        %p316 = pneg %p65
      $region14: #{tpu_custom_call.1} parent=11 // pred_check_branch
        %318 = sbr.rel (%p316) target = $region16
      $region15: #{tpu_custom_call.1} parent=11 // pred_region
        _
      $region16: #{tpu_custom_call.1} parent=11 // pred_fallthru
        _
      // Predicated region
      $region17: #{tpu_custom_call.1} parent=11 // pred_check
        %p319 = pneg %p86
      $region18: #{tpu_custom_call.1} parent=11 // pred_check_branch
        %321 = sbr.rel (%p319) target = $region20
      $region19: #{tpu_custom_call.1} parent=11 // pred_region
        _
      $region20: #{tpu_custom_call.1} parent=11 // pred_fallthru
        _
      // Predicated region
      $region21: #{tpu_custom_call.1} parent=11 // pred_check
        %p322 = pneg %p107
      $region22: #{tpu_custom_call.1} parent=11 // pred_check_branch
        %324 = sbr.rel (%p322) target = $region24
      $region23: #{tpu_custom_call.1} parent=11 // pred_region
        _
      $region24: #{tpu_custom_call.1} parent=11 // pred_fallthru
        _
      // Predicated region
      $region25: #{tpu_custom_call.1} parent=11 // pred_check
        %p325 = pneg %p128
      $region26: #{tpu_custom_call.1} parent=11 // pred_check_branch
        %327 = sbr.rel (%p325) target = $region28
      $region27: #{tpu_custom_call.1} parent=11 // pred_region
        _
      $region28: #{tpu_custom_call.1} parent=11 // pred_fallthru
        _
      // Predicated region
      $region29: #{tpu_custom_call.1} parent=11 // pred_check
        %p328 = pneg %p149
      $region30: #{tpu_custom_call.1} parent=11 // pred_check_branch
        %330 = sbr.rel (%p328) target = $region32
      $region31: #{tpu_custom_call.1} parent=11 // pred_region
        _
      $region32: #{tpu_custom_call.1} parent=11 // pred_fallthru
        _
      // Predicated region
      $region33: #{tpu_custom_call.1} parent=11 // pred_check
        %p331 = pneg %p170
      $region34: #{tpu_custom_call.1} parent=11 // pred_check_branch
        %333 = sbr.rel (%p331) target = $region36
      $region35: #{tpu_custom_call.1} parent=11 // pred_region
        _
      $region36: #{tpu_custom_call.1} parent=11 // pred_fallthru
        _
      // Predicated region
      $region37: #{tpu_custom_call.1} parent=11 // pred_check
        %p334 = pneg %p191
      $region38: #{tpu_custom_call.1} parent=11 // pred_check_branch
        %336 = sbr.rel (%p334) target = $region40
      $region39: #{tpu_custom_call.1} parent=11 // pred_region
        _
      $region40: #{tpu_custom_call.1} parent=11 // pred_fallthru
        _
      // Predicated region
      $region41: #{tpu_custom_call.1} parent=11 // pred_check
        %p337 = pneg %p212
      $region42: #{tpu_custom_call.1} parent=11 // pred_check_branch
        %339 = sbr.rel (%p337) target = $region44
      $region43: #{tpu_custom_call.1} parent=11 // pred_region
        _
      $region44: #{tpu_custom_call.1} parent=11 // pred_fallthru
        _
      // Predicated region
      $region45: #{tpu_custom_call.1} parent=11 // pred_check
        %p340 = pneg %p233
      $region46: #{tpu_custom_call.1} parent=11 // pred_check_branch
        %342 = sbr.rel (%p340) target = $region48
      $region47: #{tpu_custom_call.1} parent=11 // pred_region
        _
      $region48: #{tpu_custom_call.1} parent=11 // pred_fallthru
        _
      // Predicated region
      $region49: #{tpu_custom_call.1} parent=11 // pred_check
        %p343 = pneg %p254
      $region50: #{tpu_custom_call.1} parent=11 // pred_check_branch
        %345 = sbr.rel (%p343) target = $region52
      $region51: #{tpu_custom_call.1} parent=11 // pred_region
        _
      $region52: #{tpu_custom_call.1} parent=11 // pred_fallthru
        _
      // Predicated region
      $region53: #{tpu_custom_call.1} parent=11 // pred_check
        %p346 = pneg %p275
      $region54: #{tpu_custom_call.1} parent=11 // pred_check_branch
        %348 = sbr.rel (%p346) target = $region56
      $region55: #{tpu_custom_call.1} parent=11 // pred_region
        _
      $region56: #{tpu_custom_call.1} parent=11 // pred_fallthru
        _
    $region12: #{tpu_custom_call.1} parent=5 // pred_fallthru
      _
    %p349 = scmp.lt.s32.totalorder %s18, 2
    // Predicated region
    $region57: #{tpu_custom_call.1} parent=5 // pred_check
      %p350 = pneg %p349
    $region58: #{tpu_custom_call.1} parent=5 // pred_check_branch
      %352 = sbr.rel (%p350) target = $region60
    $region59: #{tpu_custom_call.1} parent=5 // pred_region
      // Predicated region
      $region61: #{tpu_custom_call.1} parent=59 // pred_check
        %p353 = pneg %p38
      $region62: #{tpu_custom_call.1} parent=59 // pred_check_branch
        %355 = sbr.rel (%p353) target = $region64
      $region63: #{tpu_custom_call.1} parent=59 // pred_region
        %s356 = smul.u32 2, %s18
        %p357 = scmp.lt.s32.totalorder %s356, 3
        %s358 = scalar_select %p357, %s356, 3
        %s359 = smul.addr %s358, 8
        %s360 = smul.addr %s359, 8
        %s361 = scalar_lea.vmem %s0, %s360
        %s362 = smul.u32 2, %s18
      $region64: #{tpu_custom_call.1} parent=59 // pred_fallthru
        _
    $region60: #{tpu_custom_call.1} parent=5 // pred_fallthru
      _
    %p363 = scmp.le.s32.totalorder 1, %s18
    %p364 = scmp.lt.s32.totalorder %s18, 3
    %p365 = pnand %p363, %p364
    %p366 = pneg %p365
    // Predicated region
    $region65: #{tpu_custom_call.1} parent=5 // pred_check
      _
    $region66: #{tpu_custom_call.1} parent=5 // pred_check_branch
      %368 = sbr.rel (%p365) target = $region68
    $region67: #{tpu_custom_call.1} parent=5 // pred_region
      %s369 = ssub.s32 %s18, 1
      %s370 = smul.u32 2, %s23
      %p371 = scmp.lt.s32.totalorder %s370, 3
      %s372 = scalar_select %p371, %s370, 3
      %s373 = smul.addr %s372, 8
      %s374 = smul.addr %s373, 8
      %s375 = scalar_lea.vmem %s0, %s374
      %p376 = pneg %p44
      %p377 = pneg %p41
      %p378 = pneg %p65
      %p379 = pneg %p62
      %p380 = pneg %p86
      %p381 = pneg %p83
      %p382 = pneg %p107
      %p383 = pneg %p104
      %p384 = pneg %p128
      %p385 = pneg %p125
      %p386 = pneg %p149
      %p387 = pneg %p146
      %p388 = pneg %p170
      %p389 = pneg %p167
      %p390 = pneg %p191
      %p391 = pneg %p188
      %p392 = pneg %p212
      %p393 = pneg %p209
      %p394 = pneg %p233
      %p395 = pneg %p230
      %p396 = pneg %p254
      %p397 = pneg %p251
      %p398 = pneg %p275
      %p399 = pneg %p272
      %p400 = pneg %p301
      %p401 = pneg %p298
      %s402 = smul.u32 2, %s23
      %p403 = scmp.lt.s32.totalorder %s402, 3
      %s404 = scalar_select %p403, %s402, 3
      %s405 = smul.addr %s404, 8
      %s406 = smul.addr %s405, 8
      %s407 = scalar_lea.vmem %s12, %s406
      %s408 = smul.u32 2, %s23
      %p409 = scmp.lt.s32.totalorder %s408, 3
      %s410 = scalar_select %p409, %s408, 3
      %s411 = smul.addr %s410, 8
      %s412 = smul.addr %s411, 8
      %s413 = scalar_lea.vmem %s0, %s412
      %s414 = smul.u32 2, %s23
      %s415 = smul.u32 2, %s23
      %p416 = scmp.lt.s32.totalorder %s415, 3
      %s417 = scalar_select %p416, %s415, 3
      %s418 = smul.addr %s417, 8
      %s419 = smul.addr %s418, 8
      %s420 = scalar_lea.vmem %s12, %s419
      %s421 = smul.u32 2, %s23
      %v423 = vld [vmem:[%s413] sm:$0xff]
      %v424 = vld [vmem:[%s413 + $0x8] sm:$0xff]
      %v425 = vld [vmem:[%s413 + $0x10] sm:$0xff]
      %v426 = vld [vmem:[%s413 + $0x18] sm:$0xff]
      %v427 = vld [vmem:[%s413 + $0x20] sm:$0xff]
      %v428 = vld [vmem:[%s413 + $0x28] sm:$0xff]
      %v429 = vld [vmem:[%s413 + $0x30] sm:$0xff]
      %v430 = vld [vmem:[%s413 + $0x38] sm:$0xff]
      %v431 = vld [vmem:[%s413 + $0x40] sm:$0xff]
      %v432 = vld [vmem:[%s413 + $0x48] sm:$0xff]
      %v433 = vld [vmem:[%s413 + $0x50] sm:$0xff]
      %v434 = vld [vmem:[%s413 + $0x58] sm:$0xff]
      %v435 = vld [vmem:[%s413 + $0x60] sm:$0xff]
      %v436 = vld [vmem:[%s413 + $0x68] sm:$0xff]
      %v437 = vld [vmem:[%s413 + $0x70] sm:$0xff]
      %v438 = vld [vmem:[%s413 + $0x78] sm:$0xff]
      %v439 = vpack.c.bf16 %v424, %v423
      %v440 = vpack.c.bf16 %v426, %v425
      %v441 = vpack.c.bf16 %v428, %v427
      %v442 = vpack.c.bf16 %v430, %v429
      %v443 = vpack.c.bf16 %v432, %v431
      %v444 = vpack.c.bf16 %v434, %v433
      %v445 = vpack.c.bf16 %v436, %v435
      %v446 = vpack.c.bf16 %v438, %v437
      %v447 = vld [vmem:[%s1] sm:$0xf]
      %v448 = vld [vmem:[%s1 + $0x4] sm:$0xf]
      %v449 = vld [vmem:[%s1 + $0x8] sm:$0xf]
      %v450 = vld [vmem:[%s1 + $0xc] sm:$0xf]
      %v455 = vunpack.c.l.b16 %v447
      %v456 = vunpack.c.l.b16 %v448
      %v457 = vunpack.c.l.b16 %v449
      %v458 = vunpack.c.l.b16 %v450
      %v459 = vpack.c.b16 %v456, %v455
      %v460 = vpack.c.b16 %v458, %v457
      %vm463 = vcmask 261120
      %v465 = vsel %vm463, %v439, 0
      %v468 = vsel %vm463, %v440, 0
      %v471 = vsel %vm463, %v441, 0
      %v474 = vsel %vm463, %v442, 0
      %v477 = vsel %vm463, %v443, 0
      %v480 = vsel %vm463, %v444, 0
      %v483 = vsel %vm463, %v445, 0
      %v486 = vsel %vm463, %v446, 0
      %488 = vmatprep.subr.bf16.mxu0 0
      %489 = vmatpush1.bf16.msra.mxu0 0
      %490 = vmatprep.subr.bf16.mxu0 0
      %491 = vmatpush1.bf16.msra.mxu0 0
      %492 = vmatprep.subr.bf16.mxu0 0
      %493 = vmatpush1.bf16.msra.mxu0 0
      %494 = vmatprep.subr.bf16.mxu0 0
      %495 = vmatpush1.bf16.msra.mxu0 0
      %496 = vmatprep.subr.bf16.mxu0 0
      %497 = vmatpush1.bf16.msra.mxu0 0
      %498 = vmatprep.subr.bf16.mxu0 0
      %499 = vmatpush1.bf16.msra.mxu0 0
      %500 = vmatprep.subr.bf16.mxu0 0
      %501 = vmatpush1.bf16.msra.mxu0 %v460
      %502 = vmatprep.subr.bf16.mxu0 0
      %503 = vmatpush1.bf16.msra.mxu0 %v459
      %504 = vmatprep.subr.bf16.mxu0 0
      %505 = vmatpush2.bf16.msra.mxu0 0
      %506 = vmatprep.subr.bf16.mxu0 0
      %507 = vmatpush2.bf16.msra.mxu0 0
      %508 = vmatprep.subr.bf16.mxu0 0
      %509 = vmatpush2.bf16.msra.mxu0 0
      %510 = vmatprep.subr.bf16.mxu0 0
      %511 = vmatpush2.bf16.msra.mxu0 0
      %512 = vmatprep.subr.bf16.mxu0 0
      %513 = vmatpush2.bf16.msra.mxu0 0
      %514 = vmatprep.subr.bf16.mxu0 0
      %515 = vmatpush2.bf16.msra.mxu0 0
      %516 = vmatprep.subr.bf16.mxu0 0
      %517 = vmatpush2.bf16.msra.mxu0 0
      %518 = vmatprep.subr.bf16.mxu0 0
      %519 = vmatpush2.bf16.msra.mxu0 0
      %520 = vmatprep.mubr.bf16.mxu0 0
      %521 = vmatmul.mubr.bf16.gmra.mxu0 %v465
      %v522 = vpop.f32.mrf.mxu0
      %v523 = vadd.f32 0.0, %v522
      %v524 = vpop.f32.mrf.mxu0
      %v525 = vpop.f32.mrf.mxu0
      %v526 = vadd.f32 0.0, %v525
      %v527 = vpop.f32.mrf.mxu0
      %528 = vmatprep.mubr.bf16.mxu0 0
      %529 = vmatmul.mubr.bf16.gmra.mxu0 %v468
      %v530 = vpop.f32.mrf.mxu0
      %v531 = vadd.f32 0.0, %v530
      %v532 = vpop.f32.mrf.mxu0
      %v533 = vpop.f32.mrf.mxu0
      %v534 = vadd.f32 0.0, %v533
      %v535 = vpop.f32.mrf.mxu0
      %536 = vmatprep.mubr.bf16.mxu0 0
      %537 = vmatmul.mubr.bf16.gmra.mxu0 %v471
      %v538 = vpop.f32.mrf.mxu0
      %v539 = vadd.f32 0.0, %v538
      %v540 = vpop.f32.mrf.mxu0
      %v541 = vpop.f32.mrf.mxu0
      %v542 = vadd.f32 0.0, %v541
      %v543 = vpop.f32.mrf.mxu0
      %544 = vmatprep.mubr.bf16.mxu0 0
      %545 = vmatmul.mubr.bf16.gmra.mxu0 %v474
      %v546 = vpop.f32.mrf.mxu0
      %v547 = vadd.f32 0.0, %v546
      %v548 = vpop.f32.mrf.mxu0
      %v549 = vpop.f32.mrf.mxu0
      %v550 = vadd.f32 0.0, %v549
      %v551 = vpop.f32.mrf.mxu0
      %552 = vmatprep.mubr.bf16.mxu0 0
      %553 = vmatmul.mubr.bf16.gmra.mxu0 %v477
      %v554 = vpop.f32.mrf.mxu0
      %v555 = vadd.f32 0.0, %v554
      %v556 = vpop.f32.mrf.mxu0
      %v557 = vpop.f32.mrf.mxu0
      %v558 = vadd.f32 0.0, %v557
      %v559 = vpop.f32.mrf.mxu0
      %560 = vmatprep.mubr.bf16.mxu0 0
      %561 = vmatmul.mubr.bf16.gmra.mxu0 %v480
      %v562 = vpop.f32.mrf.mxu0
      %v563 = vadd.f32 0.0, %v562
      %v564 = vpop.f32.mrf.mxu0
      %v565 = vpop.f32.mrf.mxu0
      %v566 = vadd.f32 0.0, %v565
      %v567 = vpop.f32.mrf.mxu0
      %568 = vmatprep.mubr.bf16.mxu0 0
      %569 = vmatmul.mubr.bf16.gmra.mxu0 %v483
      %v570 = vpop.f32.mrf.mxu0
      %v571 = vadd.f32 0.0, %v570
      %v572 = vpop.f32.mrf.mxu0
      %v573 = vpop.f32.mrf.mxu0
      %v574 = vadd.f32 0.0, %v573
      %v575 = vpop.f32.mrf.mxu0
      %576 = vmatprep.mubr.bf16.mxu0 0
      %577 = vmatmul.mubr.bf16.gmra.mxu0 %v486
      %v578 = vpop.f32.mrf.mxu0
      %v579 = vadd.f32 0.0, %v578
      %v580 = vpop.f32.mrf.mxu0
      %v581 = vpop.f32.mrf.mxu0
      %v582 = vadd.f32 0.0, %v581
      %v583 = vpop.f32.mrf.mxu0
      %584 = vdwg.mxu0
      %v585 = vld [vmem:[%s2] sm:$0xf]
      %v586 = vld [vmem:[%s2 + $0x4] sm:$0xf]
      %v587 = vld [vmem:[%s2 + $0x8] sm:$0xf]
      %v588 = vld [vmem:[%s2 + $0xc] sm:$0xf]
      %v593 = vunpack.c.l.b16 %v585
      %v594 = vunpack.c.l.b16 %v586
      %v595 = vunpack.c.l.b16 %v587
      %v596 = vunpack.c.l.b16 %v588
      %v597 = vpack.c.b16 %v594, %v593
      %v598 = vpack.c.b16 %v596, %v595
      %601 = vmatprep.subr.bf16.mxu0 0
      %602 = vmatpush1.bf16.msra.mxu0 0
      %603 = vmatprep.subr.bf16.mxu0 0
      %604 = vmatpush1.bf16.msra.mxu0 0
      %605 = vmatprep.subr.bf16.mxu0 0
      %606 = vmatpush1.bf16.msra.mxu0 0
      %607 = vmatprep.subr.bf16.mxu0 0
      %608 = vmatpush1.bf16.msra.mxu0 0
      %609 = vmatprep.subr.bf16.mxu0 0
      %610 = vmatpush1.bf16.msra.mxu0 0
      %611 = vmatprep.subr.bf16.mxu0 0
      %612 = vmatpush1.bf16.msra.mxu0 0
      %613 = vmatprep.subr.bf16.mxu0 0
      %614 = vmatpush1.bf16.msra.mxu0 %v598
      %615 = vmatprep.subr.bf16.mxu0 0
      %616 = vmatpush1.bf16.msra.mxu0 %v597
      %617 = vmatprep.subr.bf16.mxu0 0
      %618 = vmatpush2.bf16.msra.mxu0 0
      %619 = vmatprep.subr.bf16.mxu0 0
      %620 = vmatpush2.bf16.msra.mxu0 0
      %621 = vmatprep.subr.bf16.mxu0 0
      %622 = vmatpush2.bf16.msra.mxu0 0
      %623 = vmatprep.subr.bf16.mxu0 0
      %624 = vmatpush2.bf16.msra.mxu0 0
      %625 = vmatprep.subr.bf16.mxu0 0
      %626 = vmatpush2.bf16.msra.mxu0 0
      %627 = vmatprep.subr.bf16.mxu0 0
      %628 = vmatpush2.bf16.msra.mxu0 0
      %629 = vmatprep.subr.bf16.mxu0 0
      %630 = vmatpush2.bf16.msra.mxu0 0
      %631 = vmatprep.subr.bf16.mxu0 0
      %632 = vmatpush2.bf16.msra.mxu0 0
      %633 = vmatprep.mubr.bf16.mxu0 0
      %634 = vmatmul.mubr.bf16.gmra.mxu0 %v465
      %v635 = vpop.f32.mrf.mxu0
      %v636 = vadd.f32 0.0, %v635
      %v637 = vpop.f32.mrf.mxu0
      %v638 = vpop.f32.mrf.mxu0
      %v639 = vadd.f32 0.0, %v638
      %v640 = vpop.f32.mrf.mxu0
      %641 = vmatprep.mubr.bf16.mxu0 0
      %642 = vmatmul.mubr.bf16.gmra.mxu0 %v468
      %v643 = vpop.f32.mrf.mxu0
      %v644 = vadd.f32 0.0, %v643
      %v645 = vpop.f32.mrf.mxu0
      %v646 = vpop.f32.mrf.mxu0
      %v647 = vadd.f32 0.0, %v646
      %v648 = vpop.f32.mrf.mxu0
      %649 = vmatprep.mubr.bf16.mxu0 0
      %650 = vmatmul.mubr.bf16.gmra.mxu0 %v471
      %v651 = vpop.f32.mrf.mxu0
      %v652 = vadd.f32 0.0, %v651
      %v653 = vpop.f32.mrf.mxu0
      %v654 = vpop.f32.mrf.mxu0
      %v655 = vadd.f32 0.0, %v654
      %v656 = vpop.f32.mrf.mxu0
      %657 = vmatprep.mubr.bf16.mxu0 0
      %658 = vmatmul.mubr.bf16.gmra.mxu0 %v474
      %v659 = vpop.f32.mrf.mxu0
      %v660 = vadd.f32 0.0, %v659
      %v661 = vpop.f32.mrf.mxu0
      %v662 = vpop.f32.mrf.mxu0
      %v663 = vadd.f32 0.0, %v662
      %v664 = vpop.f32.mrf.mxu0
      %665 = vmatprep.mubr.bf16.mxu0 0
      %666 = vmatmul.mubr.bf16.gmra.mxu0 %v477
      %v667 = vpop.f32.mrf.mxu0
      %v668 = vadd.f32 0.0, %v667
      %v669 = vpop.f32.mrf.mxu0
      %v670 = vpop.f32.mrf.mxu0
      %v671 = vadd.f32 0.0, %v670
      %v672 = vpop.f32.mrf.mxu0
      %673 = vmatprep.mubr.bf16.mxu0 0
      %674 = vmatmul.mubr.bf16.gmra.mxu0 %v480
      %v675 = vpop.f32.mrf.mxu0
      %v676 = vadd.f32 0.0, %v675
      %v677 = vpop.f32.mrf.mxu0
      %v678 = vpop.f32.mrf.mxu0
      %v679 = vadd.f32 0.0, %v678
      %v680 = vpop.f32.mrf.mxu0
      %681 = vmatprep.mubr.bf16.mxu0 0
      %682 = vmatmul.mubr.bf16.gmra.mxu0 %v483
      %v683 = vpop.f32.mrf.mxu0
      %v684 = vadd.f32 0.0, %v683
      %v685 = vpop.f32.mrf.mxu0
      %v686 = vpop.f32.mrf.mxu0
      %v687 = vadd.f32 0.0, %v686
      %v688 = vpop.f32.mrf.mxu0
      %689 = vmatprep.mubr.bf16.mxu0 0
      %690 = vmatmul.mubr.bf16.gmra.mxu0 %v486
      %v691 = vpop.f32.mrf.mxu0
      %v692 = vadd.f32 0.0, %v691
      %v693 = vpop.f32.mrf.mxu0
      %v694 = vpop.f32.mrf.mxu0
      %v695 = vadd.f32 0.0, %v694
      %v696 = vpop.f32.mrf.mxu0
      %697 = vdwg.mxu0
      %v698 = vld [vmem:[%s3] sm:$0xf]
      %v699 = vld [vmem:[%s3 + $0x4] sm:$0xf]
      %v700 = vld [vmem:[%s3 + $0x8] sm:$0xf]
      %v701 = vld [vmem:[%s3 + $0xc] sm:$0xf]
      %v706 = vunpack.c.l.b16 %v698
      %v707 = vunpack.c.l.b16 %v699
      %v708 = vunpack.c.l.b16 %v700
      %v709 = vunpack.c.l.b16 %v701
      %v710 = vpack.c.b16 %v707, %v706
      %v711 = vpack.c.b16 %v709, %v708
      %714 = vmatprep.subr.bf16.mxu0 0
      %715 = vmatpush1.bf16.msra.mxu0 0
      %716 = vmatprep.subr.bf16.mxu0 0
      %717 = vmatpush1.bf16.msra.mxu0 0
      %718 = vmatprep.subr.bf16.mxu0 0
      %719 = vmatpush1.bf16.msra.mxu0 0
      %720 = vmatprep.subr.bf16.mxu0 0
      %721 = vmatpush1.bf16.msra.mxu0 0
      %722 = vmatprep.subr.bf16.mxu0 0
      %723 = vmatpush1.bf16.msra.mxu0 0
      %724 = vmatprep.subr.bf16.mxu0 0
      %725 = vmatpush1.bf16.msra.mxu0 0
      %726 = vmatprep.subr.bf16.mxu0 0
      %727 = vmatpush1.bf16.msra.mxu0 %v711
      %728 = vmatprep.subr.bf16.mxu0 0
      %729 = vmatpush1.bf16.msra.mxu0 %v710
      %730 = vmatprep.subr.bf16.mxu0 0
      %731 = vmatpush2.bf16.msra.mxu0 0
      %732 = vmatprep.subr.bf16.mxu0 0
      %733 = vmatpush2.bf16.msra.mxu0 0
      %734 = vmatprep.subr.bf16.mxu0 0
      %735 = vmatpush2.bf16.msra.mxu0 0
      %736 = vmatprep.subr.bf16.mxu0 0
      %737 = vmatpush2.bf16.msra.mxu0 0
      %738 = vmatprep.subr.bf16.mxu0 0
      %739 = vmatpush2.bf16.msra.mxu0 0
      %740 = vmatprep.subr.bf16.mxu0 0
      %741 = vmatpush2.bf16.msra.mxu0 0
      %742 = vmatprep.subr.bf16.mxu0 0
      %743 = vmatpush2.bf16.msra.mxu0 0
      %744 = vmatprep.subr.bf16.mxu0 0
      %745 = vmatpush2.bf16.msra.mxu0 0
      %746 = vmatprep.mubr.bf16.mxu0 0
      %747 = vmatmul.mubr.bf16.gmra.mxu0 %v465
      %v748 = vpop.f32.mrf.mxu0
      %v749 = vadd.f32 0.0, %v748
      %v750 = vpop.f32.mrf.mxu0
      %v751 = vpop.f32.mrf.mxu0
      %v752 = vadd.f32 0.0, %v751
      %v753 = vpop.f32.mrf.mxu0
      %754 = vmatprep.mubr.bf16.mxu0 0
      %755 = vmatmul.mubr.bf16.gmra.mxu0 %v468
      %v756 = vpop.f32.mrf.mxu0
      %v757 = vadd.f32 0.0, %v756
      %v758 = vpop.f32.mrf.mxu0
      %v759 = vpop.f32.mrf.mxu0
      %v760 = vadd.f32 0.0, %v759
      %v761 = vpop.f32.mrf.mxu0
      %762 = vmatprep.mubr.bf16.mxu0 0
      %763 = vmatmul.mubr.bf16.gmra.mxu0 %v471
      %v764 = vpop.f32.mrf.mxu0
      %v765 = vadd.f32 0.0, %v764
      %v766 = vpop.f32.mrf.mxu0
      %v767 = vpop.f32.mrf.mxu0
      %v768 = vadd.f32 0.0, %v767
      %v769 = vpop.f32.mrf.mxu0
      %770 = vmatprep.mubr.bf16.mxu0 0
      %771 = vmatmul.mubr.bf16.gmra.mxu0 %v474
      %v772 = vpop.f32.mrf.mxu0
      %v773 = vadd.f32 0.0, %v772
      %v774 = vpop.f32.mrf.mxu0
      %v775 = vpop.f32.mrf.mxu0
      %v776 = vadd.f32 0.0, %v775
      %v777 = vpop.f32.mrf.mxu0
      %778 = vmatprep.mubr.bf16.mxu0 0
      %779 = vmatmul.mubr.bf16.gmra.mxu0 %v477
      %v780 = vpop.f32.mrf.mxu0
      %v781 = vadd.f32 0.0, %v780
      %v782 = vpop.f32.mrf.mxu0
      %v783 = vpop.f32.mrf.mxu0
      %v784 = vadd.f32 0.0, %v783
      %v785 = vpop.f32.mrf.mxu0
      %786 = vmatprep.mubr.bf16.mxu0 0
      %787 = vmatmul.mubr.bf16.gmra.mxu0 %v480
      %v788 = vpop.f32.mrf.mxu0
      %v789 = vadd.f32 0.0, %v788
      %v790 = vpop.f32.mrf.mxu0
      %v791 = vpop.f32.mrf.mxu0
      %v792 = vadd.f32 0.0, %v791
      %v793 = vpop.f32.mrf.mxu0
      %794 = vmatprep.mubr.bf16.mxu0 0
      %795 = vmatmul.mubr.bf16.gmra.mxu0 %v483
      %v796 = vpop.f32.mrf.mxu0
      %v797 = vadd.f32 0.0, %v796
      %v798 = vpop.f32.mrf.mxu0
      %v799 = vpop.f32.mrf.mxu0
      %v800 = vadd.f32 0.0, %v799
      %v801 = vpop.f32.mrf.mxu0
      %802 = vmatprep.mubr.bf16.mxu0 0
      %803 = vmatmul.mubr.bf16.gmra.mxu0 %v486
      %v804 = vpop.f32.mrf.mxu0
      %v805 = vadd.f32 0.0, %v804
      %v806 = vpop.f32.mrf.mxu0
      %v807 = vpop.f32.mrf.mxu0
      %v808 = vadd.f32 0.0, %v807
      %v809 = vpop.f32.mrf.mxu0
      %810 = vdwg.mxu0
      %v811 = vrot.slane %v749, 7
      %v812 = vrot.slane %v752, 7
      %v813 = vrot.slane %v757, 7
      %v814 = vrot.slane %v760, 7
      %v815 = vrot.slane %v765, 7
      %v816 = vrot.slane %v768, 7
      %v817 = vrot.slane %v773, 7
      %v818 = vrot.slane %v776, 7
      %v819 = vrot.slane %v781, 7
      %v820 = vrot.slane %v784, 7
      %v821 = vrot.slane %v789, 7
      %v822 = vrot.slane %v792, 7
      %v823 = vrot.slane %v797, 7
      %v824 = vrot.slane %v800, 7
      %v825 = vrot.slane %v805, 7
      %v826 = vrot.slane %v808, 7
      %v827 = vlaneseq
      %v828 = vshrl.u32 %v827, 7
      %vm829 = vcmp.lt.s32.totalorder %v828, 1
      %v830 = vsel %vm829, %v825, %v826
      %v831 = vsel %vm829, %v824, %v825
      %v832 = vsel %vm829, %v823, %v824
      %v833 = vsel %vm829, %v822, %v823
      %v834 = vsel %vm829, %v821, %v822
      %v835 = vsel %vm829, %v820, %v821
      %v836 = vsel %vm829, %v819, %v820
      %v837 = vsel %vm829, %v818, %v819
      %v838 = vsel %vm829, %v817, %v818
      %v839 = vsel %vm829, %v816, %v817
      %v840 = vsel %vm829, %v815, %v816
      %v841 = vsel %vm829, %v814, %v815
      %v842 = vsel %vm829, %v813, %v814
      %v843 = vsel %vm829, %v812, %v813
      %v844 = vsel %vm829, %v811, %v812
      %v845 = vsel %vm829, %v826, %v811
      %v846 = vld [vmem:[%s11] sm:$0xff]
      %v847 = vld [vmem:[%s11 + $0x8] sm:$0xff]
      %v848 = vld [vmem:[%s11 + $0x10] sm:$0xff]
      %v849 = vld [vmem:[%s11 + $0x18] sm:$0xff]
      %v850 = vld [vmem:[%s11 + $0x20] sm:$0xff]
      %v851 = vld [vmem:[%s11 + $0x28] sm:$0xff]
      %v852 = vld [vmem:[%s11 + $0x30] sm:$0xff]
      %v853 = vld [vmem:[%s11 + $0x38] sm:$0xff]
      %v854 = vld [vmem:[%s11 + $0x40] sm:$0xff]
      %v855 = vld [vmem:[%s11 + $0x48] sm:$0xff]
      %v856 = vld [vmem:[%s11 + $0x50] sm:$0xff]
      %v857 = vld [vmem:[%s11 + $0x58] sm:$0xff]
      %v858 = vld [vmem:[%s11 + $0x60] sm:$0xff]
      %v859 = vld [vmem:[%s11 + $0x68] sm:$0xff]
      %v860 = vld [vmem:[%s11 + $0x70] sm:$0xff]
      %v861 = vld [vmem:[%s11 + $0x78] sm:$0xff]
      %v862 = vmul.f32 %v830, %v846
      %v863 = vmul.f32 %v845, %v847
      %v864 = vmul.f32 %v844, %v848
      %v865 = vmul.f32 %v843, %v849
      %v866 = vmul.f32 %v842, %v850
      %v867 = vmul.f32 %v841, %v851
      %v868 = vmul.f32 %v840, %v852
      %v869 = vmul.f32 %v839, %v853
      %v870 = vmul.f32 %v838, %v854
      %v871 = vmul.f32 %v837, %v855
      %v872 = vmul.f32 %v836, %v856
      %v873 = vmul.f32 %v835, %v857
      %v874 = vmul.f32 %v834, %v858
      %v875 = vmul.f32 %v833, %v859
      %v876 = vmul.f32 %v832, %v860
      %v877 = vmul.f32 %v831, %v861
      %v878 = vadd.f32 %v862, 0.0
      %v879 = vadd.f32 %v863, 0.0
      %v880 = vadd.f32 %v864, 0.0
      %v881 = vadd.f32 %v865, 0.0
      %v882 = vadd.f32 %v866, 0.0
      %v883 = vadd.f32 %v867, 0.0
      %v884 = vadd.f32 %v868, 0.0
      %v885 = vadd.f32 %v869, 0.0
      %v886 = vadd.f32 %v870, 0.0
      %v887 = vadd.f32 %v871, 0.0
      %v888 = vadd.f32 %v872, 0.0
      %v889 = vadd.f32 %v873, 0.0
      %v890 = vadd.f32 %v874, 0.0
      %v891 = vadd.f32 %v875, 0.0
      %v892 = vadd.f32 %v876, 0.0
      %v893 = vadd.f32 %v877, 0.0
      %s894 = scalar_lea.vmem %s11, 128
      %v895 = vld [vmem:[%s894] sm:$0xff]
      %v896 = vld [vmem:[%s894 + $0x8] sm:$0xff]
      %v897 = vld [vmem:[%s894 + $0x10] sm:$0xff]
      %v898 = vld [vmem:[%s894 + $0x18] sm:$0xff]
      %v899 = vld [vmem:[%s894 + $0x20] sm:$0xff]
      %v900 = vld [vmem:[%s894 + $0x28] sm:$0xff]
      %v901 = vld [vmem:[%s894 + $0x30] sm:$0xff]
      %v902 = vld [vmem:[%s894 + $0x38] sm:$0xff]
      %v903 = vld [vmem:[%s894 + $0x40] sm:$0xff]
      %v904 = vld [vmem:[%s894 + $0x48] sm:$0xff]
      %v905 = vld [vmem:[%s894 + $0x50] sm:$0xff]
      %v906 = vld [vmem:[%s894 + $0x58] sm:$0xff]
      %v907 = vld [vmem:[%s894 + $0x60] sm:$0xff]
      %v908 = vld [vmem:[%s894 + $0x68] sm:$0xff]
      %v909 = vld [vmem:[%s894 + $0x70] sm:$0xff]
      %v910 = vld [vmem:[%s894 + $0x78] sm:$0xff]
      %v911 = vmul.f32 %v808, %v895
      %v912 = vmul.f32 %v749, %v896
      %v913 = vmul.f32 %v752, %v897
      %v914 = vmul.f32 %v757, %v898
      %v915 = vmul.f32 %v760, %v899
      %v916 = vmul.f32 %v765, %v900
      %v917 = vmul.f32 %v768, %v901
      %v918 = vmul.f32 %v773, %v902
      %v919 = vmul.f32 %v776, %v903
      %v920 = vmul.f32 %v781, %v904
      %v921 = vmul.f32 %v784, %v905
      %v922 = vmul.f32 %v789, %v906
      %v923 = vmul.f32 %v792, %v907
      %v924 = vmul.f32 %v797, %v908
      %v925 = vmul.f32 %v800, %v909
      %v926 = vmul.f32 %v805, %v910
      %v927 = vadd.f32 %v878, %v911
      %v928 = vadd.f32 %v879, %v912
      %v929 = vadd.f32 %v880, %v913
      %v930 = vadd.f32 %v881, %v914
      %v931 = vadd.f32 %v882, %v915
      %v932 = vadd.f32 %v883, %v916
      %v933 = vadd.f32 %v884, %v917
      %v934 = vadd.f32 %v885, %v918
      %v935 = vadd.f32 %v886, %v919
      %v936 = vadd.f32 %v887, %v920
      %v937 = vadd.f32 %v888, %v921
      %v938 = vadd.f32 %v889, %v922
      %v939 = vadd.f32 %v890, %v923
      %v940 = vadd.f32 %v891, %v924
      %v941 = vadd.f32 %v892, %v925
      %v942 = vadd.f32 %v893, %v926
      %v943 = vrot.slane %v749, 1
      %v944 = vrot.slane %v752, 1
      %v945 = vrot.slane %v757, 1
      %v946 = vrot.slane %v760, 1
      %v947 = vrot.slane %v765, 1
      %v948 = vrot.slane %v768, 1
      %v949 = vrot.slane %v773, 1
      %v950 = vrot.slane %v776, 1
      %v951 = vrot.slane %v781, 1
      %v952 = vrot.slane %v784, 1
      %v953 = vrot.slane %v789, 1
      %v954 = vrot.slane %v792, 1
      %v955 = vrot.slane %v797, 1
      %v956 = vrot.slane %v800, 1
      %v957 = vrot.slane %v805, 1
      %v958 = vrot.slane %v808, 1
      %vm959 = vcmp.lt.s32.totalorder %v828, 7
      %v960 = vsel %vm959, %v957, %v958
      %v961 = vsel %vm959, %v956, %v957
      %v962 = vsel %vm959, %v955, %v956
      %v963 = vsel %vm959, %v954, %v955
      %v964 = vsel %vm959, %v953, %v954
      %v965 = vsel %vm959, %v952, %v953
      %v966 = vsel %vm959, %v951, %v952
      %v967 = vsel %vm959, %v950, %v951
      %v968 = vsel %vm959, %v949, %v950
      %v969 = vsel %vm959, %v948, %v949
      %v970 = vsel %vm959, %v947, %v948
      %v971 = vsel %vm959, %v946, %v947
      %v972 = vsel %vm959, %v945, %v946
      %v973 = vsel %vm959, %v944, %v945
      %v974 = vsel %vm959, %v943, %v944
      %v975 = vsel %vm959, %v958, %v943
      %s976 = scalar_lea.vmem %s11, 256
      %v977 = vld [vmem:[%s976] sm:$0xff]
      %v978 = vld [vmem:[%s976 + $0x8] sm:$0xff]
      %v979 = vld [vmem:[%s976 + $0x10] sm:$0xff]
      %v980 = vld [vmem:[%s976 + $0x18] sm:$0xff]
      %v981 = vld [vmem:[%s976 + $0x20] sm:$0xff]
      %v982 = vld [vmem:[%s976 + $0x28] sm:$0xff]
      %v983 = vld [vmem:[%s976 + $0x30] sm:$0xff]
      %v984 = vld [vmem:[%s976 + $0x38] sm:$0xff]
      %v985 = vld [vmem:[%s976 + $0x40] sm:$0xff]
      %v986 = vld [vmem:[%s976 + $0x48] sm:$0xff]
      %v987 = vld [vmem:[%s976 + $0x50] sm:$0xff]
      %v988 = vld [vmem:[%s976 + $0x58] sm:$0xff]
      %v989 = vld [vmem:[%s976 + $0x60] sm:$0xff]
      %v990 = vld [vmem:[%s976 + $0x68] sm:$0xff]
      %v991 = vld [vmem:[%s976 + $0x70] sm:$0xff]
      %v992 = vld [vmem:[%s976 + $0x78] sm:$0xff]
      %v993 = vmul.f32 %v975, %v977
      %v994 = vmul.f32 %v974, %v978
      %v995 = vmul.f32 %v973, %v979
      %v996 = vmul.f32 %v972, %v980
      %v997 = vmul.f32 %v971, %v981
      %v998 = vmul.f32 %v970, %v982
      %v999 = vmul.f32 %v969, %v983
      %v1000 = vmul.f32 %v968, %v984
      %v1001 = vmul.f32 %v967, %v985
      %v1002 = vmul.f32 %v966, %v986
      %v1003 = vmul.f32 %v965, %v987
      %v1004 = vmul.f32 %v964, %v988
      %v1005 = vmul.f32 %v963, %v989
      %v1006 = vmul.f32 %v962, %v990
      %v1007 = vmul.f32 %v961, %v991
      %v1008 = vmul.f32 %v960, %v992
      %v1009 = vadd.f32 %v927, %v993
      %v1010 = vadd.f32 %v928, %v994
      %v1011 = vadd.f32 %v929, %v995
      %v1012 = vadd.f32 %v930, %v996
      %v1013 = vadd.f32 %v931, %v997
      %v1014 = vadd.f32 %v932, %v998
      %v1015 = vadd.f32 %v933, %v999
      %v1016 = vadd.f32 %v934, %v1000
      %v1017 = vadd.f32 %v935, %v1001
      %v1018 = vadd.f32 %v936, %v1002
      %v1019 = vadd.f32 %v937, %v1003
      %v1020 = vadd.f32 %v938, %v1004
      %v1021 = vadd.f32 %v939, %v1005
      %v1022 = vadd.f32 %v940, %v1006
      %v1023 = vadd.f32 %v941, %v1007
      %v1024 = vadd.f32 %v942, %v1008
      %s1025 = scalar_lea.vmem %s11, 384
      %v1026 = vld [vmem:[%s1025] sm:$0xff]
      %v1027 = vld [vmem:[%s1025 + $0x8] sm:$0xff]
      %v1028 = vld [vmem:[%s1025 + $0x10] sm:$0xff]
      %v1029 = vld [vmem:[%s1025 + $0x18] sm:$0xff]
      %v1030 = vld [vmem:[%s1025 + $0x20] sm:$0xff]
      %v1031 = vld [vmem:[%s1025 + $0x28] sm:$0xff]
      %v1032 = vld [vmem:[%s1025 + $0x30] sm:$0xff]
      %v1033 = vld [vmem:[%s1025 + $0x38] sm:$0xff]
      %v1034 = vld [vmem:[%s1025 + $0x40] sm:$0xff]
      %v1035 = vld [vmem:[%s1025 + $0x48] sm:$0xff]
      %v1036 = vld [vmem:[%s1025 + $0x50] sm:$0xff]
      %v1037 = vld [vmem:[%s1025 + $0x58] sm:$0xff]
      %v1038 = vld [vmem:[%s1025 + $0x60] sm:$0xff]
      %v1039 = vld [vmem:[%s1025 + $0x68] sm:$0xff]
      %v1040 = vld [vmem:[%s1025 + $0x70] sm:$0xff]
      %v1041 = vld [vmem:[%s1025 + $0x78] sm:$0xff]
      %v1042 = vmul.f32 %v845, %v1026
      %v1043 = vmul.f32 %v844, %v1027
      %v1044 = vmul.f32 %v843, %v1028
      %v1045 = vmul.f32 %v842, %v1029
      %v1046 = vmul.f32 %v841, %v1030
      %v1047 = vmul.f32 %v840, %v1031
      %v1048 = vmul.f32 %v839, %v1032
      %v1049 = vmul.f32 %v838, %v1033
      %v1050 = vmul.f32 %v837, %v1034
      %v1051 = vmul.f32 %v836, %v1035
      %v1052 = vmul.f32 %v835, %v1036
      %v1053 = vmul.f32 %v834, %v1037
      %v1054 = vmul.f32 %v833, %v1038
      %v1055 = vmul.f32 %v832, %v1039
      %v1056 = vmul.f32 %v831, %v1040
      %v1057 = vmul.f32 %v830, %v1041
      %v1058 = vadd.f32 %v1009, %v1042
      %v1059 = vadd.f32 %v1010, %v1043
      %v1060 = vadd.f32 %v1011, %v1044
      %v1061 = vadd.f32 %v1012, %v1045
      %v1062 = vadd.f32 %v1013, %v1046
      %v1063 = vadd.f32 %v1014, %v1047
      %v1064 = vadd.f32 %v1015, %v1048
      %v1065 = vadd.f32 %v1016, %v1049
      %v1066 = vadd.f32 %v1017, %v1050
      %v1067 = vadd.f32 %v1018, %v1051
      %v1068 = vadd.f32 %v1019, %v1052
      %v1069 = vadd.f32 %v1020, %v1053
      %v1070 = vadd.f32 %v1021, %v1054
      %v1071 = vadd.f32 %v1022, %v1055
      %v1072 = vadd.f32 %v1023, %v1056
      %v1073 = vadd.f32 %v1024, %v1057
      %s1074 = scalar_lea.vmem %s11, 512
      %v1075 = vld [vmem:[%s1074] sm:$0xff]
      %v1076 = vld [vmem:[%s1074 + $0x8] sm:$0xff]
      %v1077 = vld [vmem:[%s1074 + $0x10] sm:$0xff]
      %v1078 = vld [vmem:[%s1074 + $0x18] sm:$0xff]
      %v1079 = vld [vmem:[%s1074 + $0x20] sm:$0xff]
      %v1080 = vld [vmem:[%s1074 + $0x28] sm:$0xff]
      %v1081 = vld [vmem:[%s1074 + $0x30] sm:$0xff]
      %v1082 = vld [vmem:[%s1074 + $0x38] sm:$0xff]
      %v1083 = vld [vmem:[%s1074 + $0x40] sm:$0xff]
      %v1084 = vld [vmem:[%s1074 + $0x48] sm:$0xff]
      %v1085 = vld [vmem:[%s1074 + $0x50] sm:$0xff]
      %v1086 = vld [vmem:[%s1074 + $0x58] sm:$0xff]
      %v1087 = vld [vmem:[%s1074 + $0x60] sm:$0xff]
      %v1088 = vld [vmem:[%s1074 + $0x68] sm:$0xff]
      %v1089 = vld [vmem:[%s1074 + $0x70] sm:$0xff]
      %v1090 = vld [vmem:[%s1074 + $0x78] sm:$0xff]
      %v1091 = vmul.f32 %v749, %v1075
      %v1092 = vmul.f32 %v752, %v1076
      %v1093 = vmul.f32 %v757, %v1077
      %v1094 = vmul.f32 %v760, %v1078
      %v1095 = vmul.f32 %v765, %v1079
      %v1096 = vmul.f32 %v768, %v1080
      %v1097 = vmul.f32 %v773, %v1081
      %v1098 = vmul.f32 %v776, %v1082
      %v1099 = vmul.f32 %v781, %v1083
      %v1100 = vmul.f32 %v784, %v1084
      %v1101 = vmul.f32 %v789, %v1085
      %v1102 = vmul.f32 %v792, %v1086
      %v1103 = vmul.f32 %v797, %v1087
      %v1104 = vmul.f32 %v800, %v1088
      %v1105 = vmul.f32 %v805, %v1089
      %v1106 = vmul.f32 %v808, %v1090
      %v1107 = vadd.f32 %v1058, %v1091
      %v1108 = vadd.f32 %v1059, %v1092
      %v1109 = vadd.f32 %v1060, %v1093
      %v1110 = vadd.f32 %v1061, %v1094
      %v1111 = vadd.f32 %v1062, %v1095
      %v1112 = vadd.f32 %v1063, %v1096
      %v1113 = vadd.f32 %v1064, %v1097
      %v1114 = vadd.f32 %v1065, %v1098
      %v1115 = vadd.f32 %v1066, %v1099
      %v1116 = vadd.f32 %v1067, %v1100
      %v1117 = vadd.f32 %v1068, %v1101
      %v1118 = vadd.f32 %v1069, %v1102
      %v1119 = vadd.f32 %v1070, %v1103
      %v1120 = vadd.f32 %v1071, %v1104
      %v1121 = vadd.f32 %v1072, %v1105
      %v1122 = vadd.f32 %v1073, %v1106
      %s1123 = scalar_lea.vmem %s11, 640
      %v1124 = vld [vmem:[%s1123] sm:$0xff]
      %v1125 = vld [vmem:[%s1123 + $0x8] sm:$0xff]
      %v1126 = vld [vmem:[%s1123 + $0x10] sm:$0xff]
      %v1127 = vld [vmem:[%s1123 + $0x18] sm:$0xff]
      %v1128 = vld [vmem:[%s1123 + $0x20] sm:$0xff]
      %v1129 = vld [vmem:[%s1123 + $0x28] sm:$0xff]
      %v1130 = vld [vmem:[%s1123 + $0x30] sm:$0xff]
      %v1131 = vld [vmem:[%s1123 + $0x38] sm:$0xff]
      %v1132 = vld [vmem:[%s1123 + $0x40] sm:$0xff]
      %v1133 = vld [vmem:[%s1123 + $0x48] sm:$0xff]
      %v1134 = vld [vmem:[%s1123 + $0x50] sm:$0xff]
      %v1135 = vld [vmem:[%s1123 + $0x58] sm:$0xff]
      %v1136 = vld [vmem:[%s1123 + $0x60] sm:$0xff]
      %v1137 = vld [vmem:[%s1123 + $0x68] sm:$0xff]
      %v1138 = vld [vmem:[%s1123 + $0x70] sm:$0xff]
      %v1139 = vld [vmem:[%s1123 + $0x78] sm:$0xff]
      %v1140 = vmul.f32 %v974, %v1124
      %v1141 = vmul.f32 %v973, %v1125
      %v1142 = vmul.f32 %v972, %v1126
      %v1143 = vmul.f32 %v971, %v1127
      %v1144 = vmul.f32 %v970, %v1128
      %v1145 = vmul.f32 %v969, %v1129
      %v1146 = vmul.f32 %v968, %v1130
      %v1147 = vmul.f32 %v967, %v1131
      %v1148 = vmul.f32 %v966, %v1132
      %v1149 = vmul.f32 %v965, %v1133
      %v1150 = vmul.f32 %v964, %v1134
      %v1151 = vmul.f32 %v963, %v1135
      %v1152 = vmul.f32 %v962, %v1136
      %v1153 = vmul.f32 %v961, %v1137
      %v1154 = vmul.f32 %v960, %v1138
      %v1155 = vmul.f32 %v975, %v1139
      %v1156 = vadd.f32 %v1107, %v1140
      %v1157 = vadd.f32 %v1108, %v1141
      %v1158 = vadd.f32 %v1109, %v1142
      %v1159 = vadd.f32 %v1110, %v1143
      %v1160 = vadd.f32 %v1111, %v1144
      %v1161 = vadd.f32 %v1112, %v1145
      %v1162 = vadd.f32 %v1113, %v1146
      %v1163 = vadd.f32 %v1114, %v1147
      %v1164 = vadd.f32 %v1115, %v1148
      %v1165 = vadd.f32 %v1116, %v1149
      %v1166 = vadd.f32 %v1117, %v1150
      %v1167 = vadd.f32 %v1118, %v1151
      %v1168 = vadd.f32 %v1119, %v1152
      %v1169 = vadd.f32 %v1120, %v1153
      %v1170 = vadd.f32 %v1121, %v1154
      %v1171 = vadd.f32 %v1122, %v1155
      %s1172 = scalar_lea.vmem %s11, 768
      %v1173 = vld [vmem:[%s1172] sm:$0xff]
      %v1174 = vld [vmem:[%s1172 + $0x8] sm:$0xff]
      %v1175 = vld [vmem:[%s1172 + $0x10] sm:$0xff]
      %v1176 = vld [vmem:[%s1172 + $0x18] sm:$0xff]
      %v1177 = vld [vmem:[%s1172 + $0x20] sm:$0xff]
      %v1178 = vld [vmem:[%s1172 + $0x28] sm:$0xff]
      %v1179 = vld [vmem:[%s1172 + $0x30] sm:$0xff]
      %v1180 = vld [vmem:[%s1172 + $0x38] sm:$0xff]
      %v1181 = vld [vmem:[%s1172 + $0x40] sm:$0xff]
      %v1182 = vld [vmem:[%s1172 + $0x48] sm:$0xff]
      %v1183 = vld [vmem:[%s1172 + $0x50] sm:$0xff]
      %v1184 = vld [vmem:[%s1172 + $0x58] sm:$0xff]
      %v1185 = vld [vmem:[%s1172 + $0x60] sm:$0xff]
      %v1186 = vld [vmem:[%s1172 + $0x68] sm:$0xff]
      %v1187 = vld [vmem:[%s1172 + $0x70] sm:$0xff]
      %v1188 = vld [vmem:[%s1172 + $0x78] sm:$0xff]
      %v1189 = vmul.f32 %v844, %v1173
      %v1190 = vmul.f32 %v843, %v1174
      %v1191 = vmul.f32 %v842, %v1175
      %v1192 = vmul.f32 %v841, %v1176
      %v1193 = vmul.f32 %v840, %v1177
      %v1194 = vmul.f32 %v839, %v1178
      %v1195 = vmul.f32 %v838, %v1179
      %v1196 = vmul.f32 %v837, %v1180
      %v1197 = vmul.f32 %v836, %v1181
      %v1198 = vmul.f32 %v835, %v1182
      %v1199 = vmul.f32 %v834, %v1183
      %v1200 = vmul.f32 %v833, %v1184
      %v1201 = vmul.f32 %v832, %v1185
      %v1202 = vmul.f32 %v831, %v1186
      %v1203 = vmul.f32 %v830, %v1187
      %v1204 = vmul.f32 %v845, %v1188
      %v1205 = vadd.f32 %v1156, %v1189
      %v1206 = vadd.f32 %v1157, %v1190
      %v1207 = vadd.f32 %v1158, %v1191
      %v1208 = vadd.f32 %v1159, %v1192
      %v1209 = vadd.f32 %v1160, %v1193
      %v1210 = vadd.f32 %v1161, %v1194
      %v1211 = vadd.f32 %v1162, %v1195
      %v1212 = vadd.f32 %v1163, %v1196
      %v1213 = vadd.f32 %v1164, %v1197
      %v1214 = vadd.f32 %v1165, %v1198
      %v1215 = vadd.f32 %v1166, %v1199
      %v1216 = vadd.f32 %v1167, %v1200
      %v1217 = vadd.f32 %v1168, %v1201
      %v1218 = vadd.f32 %v1169, %v1202
      %v1219 = vadd.f32 %v1170, %v1203
      %v1220 = vadd.f32 %v1171, %v1204
      %s1221 = scalar_lea.vmem %s11, 896
      %v1222 = vld [vmem:[%s1221] sm:$0xff]
      %v1223 = vld [vmem:[%s1221 + $0x8] sm:$0xff]
      %v1224 = vld [vmem:[%s1221 + $0x10] sm:$0xff]
      %v1225 = vld [vmem:[%s1221 + $0x18] sm:$0xff]
      %v1226 = vld [vmem:[%s1221 + $0x20] sm:$0xff]
      %v1227 = vld [vmem:[%s1221 + $0x28] sm:$0xff]
      %v1228 = vld [vmem:[%s1221 + $0x30] sm:$0xff]
      %v1229 = vld [vmem:[%s1221 + $0x38] sm:$0xff]
      %v1230 = vld [vmem:[%s1221 + $0x40] sm:$0xff]
      %v1231 = vld [vmem:[%s1221 + $0x48] sm:$0xff]
      %v1232 = vld [vmem:[%s1221 + $0x50] sm:$0xff]
      %v1233 = vld [vmem:[%s1221 + $0x58] sm:$0xff]
      %v1234 = vld [vmem:[%s1221 + $0x60] sm:$0xff]
      %v1235 = vld [vmem:[%s1221 + $0x68] sm:$0xff]
      %v1236 = vld [vmem:[%s1221 + $0x70] sm:$0xff]
      %v1237 = vld [vmem:[%s1221 + $0x78] sm:$0xff]
      %v1238 = vmul.f32 %v752, %v1222
      %v1239 = vmul.f32 %v757, %v1223
      %v1240 = vmul.f32 %v760, %v1224
      %v1241 = vmul.f32 %v765, %v1225
      %v1242 = vmul.f32 %v768, %v1226
      %v1243 = vmul.f32 %v773, %v1227
      %v1244 = vmul.f32 %v776, %v1228
      %v1245 = vmul.f32 %v781, %v1229
      %v1246 = vmul.f32 %v784, %v1230
      %v1247 = vmul.f32 %v789, %v1231
      %v1248 = vmul.f32 %v792, %v1232
      %v1249 = vmul.f32 %v797, %v1233
      %v1250 = vmul.f32 %v800, %v1234
      %v1251 = vmul.f32 %v805, %v1235
      %v1252 = vmul.f32 %v808, %v1236
      %v1253 = vmul.f32 %v749, %v1237
      %v1254 = vadd.f32 %v1205, %v1238
      %v1255 = vadd.f32 %v1206, %v1239
      %v1256 = vadd.f32 %v1207, %v1240
      %v1257 = vadd.f32 %v1208, %v1241
      %v1258 = vadd.f32 %v1209, %v1242
      %v1259 = vadd.f32 %v1210, %v1243
      %v1260 = vadd.f32 %v1211, %v1244
      %v1261 = vadd.f32 %v1212, %v1245
      %v1262 = vadd.f32 %v1213, %v1246
      %v1263 = vadd.f32 %v1214, %v1247
      %v1264 = vadd.f32 %v1215, %v1248
      %v1265 = vadd.f32 %v1216, %v1249
      %v1266 = vadd.f32 %v1217, %v1250
      %v1267 = vadd.f32 %v1218, %v1251
      %v1268 = vadd.f32 %v1219, %v1252
      %v1269 = vadd.f32 %v1220, %v1253
      %s1270 = scalar_lea.vmem %s11, 1024
      %v1271 = vld [vmem:[%s1270] sm:$0xff]
      %v1272 = vld [vmem:[%s1270 + $0x8] sm:$0xff]
      %v1273 = vld [vmem:[%s1270 + $0x10] sm:$0xff]
      %v1274 = vld [vmem:[%s1270 + $0x18] sm:$0xff]
      %v1275 = vld [vmem:[%s1270 + $0x20] sm:$0xff]
      %v1276 = vld [vmem:[%s1270 + $0x28] sm:$0xff]
      %v1277 = vld [vmem:[%s1270 + $0x30] sm:$0xff]
      %v1278 = vld [vmem:[%s1270 + $0x38] sm:$0xff]
      %v1279 = vld [vmem:[%s1270 + $0x40] sm:$0xff]
      %v1280 = vld [vmem:[%s1270 + $0x48] sm:$0xff]
      %v1281 = vld [vmem:[%s1270 + $0x50] sm:$0xff]
      %v1282 = vld [vmem:[%s1270 + $0x58] sm:$0xff]
      %v1283 = vld [vmem:[%s1270 + $0x60] sm:$0xff]
      %v1284 = vld [vmem:[%s1270 + $0x68] sm:$0xff]
      %v1285 = vld [vmem:[%s1270 + $0x70] sm:$0xff]
      %v1286 = vld [vmem:[%s1270 + $0x78] sm:$0xff]
      %v1287 = vmul.f32 %v973, %v1271
      %v1288 = vmul.f32 %v972, %v1272
      %v1289 = vmul.f32 %v971, %v1273
      %v1290 = vmul.f32 %v970, %v1274
      %v1291 = vmul.f32 %v969, %v1275
      %v1292 = vmul.f32 %v968, %v1276
      %v1293 = vmul.f32 %v967, %v1277
      %v1294 = vmul.f32 %v966, %v1278
      %v1295 = vmul.f32 %v965, %v1279
      %v1296 = vmul.f32 %v964, %v1280
      %v1297 = vmul.f32 %v963, %v1281
      %v1298 = vmul.f32 %v962, %v1282
      %v1299 = vmul.f32 %v961, %v1283
      %v1300 = vmul.f32 %v960, %v1284
      %v1301 = vmul.f32 %v975, %v1285
      %v1302 = vmul.f32 %v974, %v1286
      %v1303 = vadd.f32 %v1254, %v1287
      %v1304 = vadd.f32 %v1255, %v1288
      %v1305 = vadd.f32 %v1256, %v1289
      %v1306 = vadd.f32 %v1257, %v1290
      %v1307 = vadd.f32 %v1258, %v1291
      %v1308 = vadd.f32 %v1259, %v1292
      %v1309 = vadd.f32 %v1260, %v1293
      %v1310 = vadd.f32 %v1261, %v1294
      %v1311 = vadd.f32 %v1262, %v1295
      %v1312 = vadd.f32 %v1263, %v1296
      %v1313 = vadd.f32 %v1264, %v1297
      %v1314 = vadd.f32 %v1265, %v1298
      %v1315 = vadd.f32 %v1266, %v1299
      %v1316 = vadd.f32 %v1267, %v1300
      %v1317 = vadd.f32 %v1268, %v1301
      %v1318 = vadd.f32 %v1269, %v1302
      %v1319 = vld [vmem:[%s6] sm:$0xf]
      %v1320 = vld [vmem:[%s6 + $0x4] sm:$0xf]
      %v1321 = vld [vmem:[%s6 + $0x8] sm:$0xf]
      %v1322 = vld [vmem:[%s6 + $0xc] sm:$0xf]
      %v1323 = vld [vmem:[%s6 + $0x10] sm:$0xf]
      %v1324 = vld [vmem:[%s6 + $0x14] sm:$0xf]
      %v1325 = vld [vmem:[%s6 + $0x18] sm:$0xf]
      %v1326 = vld [vmem:[%s6 + $0x1c] sm:$0xf]
      %v1327 = vld [vmem:[%s7] sm:$0xff]
      %v1328 = vld [vmem:[%s7 + $0x8] sm:$0xff]
      %v1329 = vld [vmem:[%s7 + $0x10] sm:$0xff]
      %v1330 = vld [vmem:[%s7 + $0x18] sm:$0xff]
      %v1331 = vld [vmem:[%s7 + $0x20] sm:$0xff]
      %v1332 = vld [vmem:[%s7 + $0x28] sm:$0xff]
      %v1333 = vld [vmem:[%s7 + $0x30] sm:$0xff]
      %v1334 = vld [vmem:[%s7 + $0x38] sm:$0xff]
      %v1335 = vld [vmem:[%s8] sm:$0xff]
      %v1336 = vld [vmem:[%s8 + $0x8] sm:$0xff]
      %v1337 = vld [vmem:[%s8 + $0x10] sm:$0xff]
      %v1338 = vld [vmem:[%s8 + $0x18] sm:$0xff]
      %v1339 = vld [vmem:[%s8 + $0x20] sm:$0xff]
      %v1340 = vld [vmem:[%s8 + $0x28] sm:$0xff]
      %v1341 = vld [vmem:[%s8 + $0x30] sm:$0xff]
      %v1342 = vld [vmem:[%s8 + $0x38] sm:$0xff]
      %v1343 = vld [vmem:[%s9] sm:$0xff]
      %v1344 = vld [vmem:[%s9 + $0x8] sm:$0xff]
      %v1345 = vld [vmem:[%s9 + $0x10] sm:$0xff]
      %v1346 = vld [vmem:[%s9 + $0x18] sm:$0xff]
      %v1347 = vld [vmem:[%s9 + $0x20] sm:$0xff]
      %v1348 = vld [vmem:[%s9 + $0x28] sm:$0xff]
      %v1349 = vld [vmem:[%s9 + $0x30] sm:$0xff]
      %v1350 = vld [vmem:[%s9 + $0x38] sm:$0xff]
      %v1351 = vld [vmem:[%s10] sm:$0xff]
      %v1352 = vld [vmem:[%s10 + $0x8] sm:$0xff]
      %v1353 = vld [vmem:[%s10 + $0x10] sm:$0xff]
      %v1354 = vld [vmem:[%s10 + $0x18] sm:$0xff]
      %v1355 = vld [vmem:[%s10 + $0x20] sm:$0xff]
      %v1356 = vld [vmem:[%s10 + $0x28] sm:$0xff]
      %v1357 = vld [vmem:[%s10 + $0x30] sm:$0xff]
      %v1358 = vld [vmem:[%s10 + $0x38] sm:$0xff]
      %v1359 = vpack.c.bf16 %v526, %v523
      %v1360 = vpack.c.bf16 %v534, %v531
      %v1361 = vpack.c.bf16 %v542, %v539
      %v1362 = vpack.c.bf16 %v550, %v547
      %v1363 = vpack.c.bf16 %v639, %v636
      %v1364 = vpack.c.bf16 %v647, %v644
      %v1365 = vpack.c.bf16 %v655, %v652
      %v1366 = vpack.c.bf16 %v663, %v660
      %v1367 = vpack.c.bf16 %v752, %v749
      %v1368 = vpack.c.bf16 %v760, %v757
      %v1369 = vpack.c.bf16 %v768, %v765
      %v1370 = vpack.c.bf16 %v776, %v773
      %v1379 = vunpack.c.l.b16 %v1319
      %v1380 = vunpack.c.l.b16 %v1320
      %v1381 = vunpack.c.l.b16 %v1321
      %v1382 = vunpack.c.l.b16 %v1322
      %v1383 = vunpack.c.l.b16 %v1323
      %v1384 = vunpack.c.l.b16 %v1324
      %v1385 = vunpack.c.l.b16 %v1325
      %v1386 = vunpack.c.l.b16 %v1326
      %v1387 = vpack.c.b16 %v1380, %v1379
      %v1388 = vpack.c.b16 %v1382, %v1381
      %v1389 = vpack.c.b16 %v1384, %v1383
      %v1390 = vpack.c.b16 %v1386, %v1385
      %vm1391 = vcmask 523264
      %v1393 = vsel %vm1391, %v1387, 0
      %v1396 = vsel %vm1391, %v1388, 0
      %v1399 = vsel %vm1391, %v1389, 0
      %v1402 = vsel %vm1391, %v1390, 0
      %1404 = vmatprep.subr.bf16.mxu0 0
      %1405 = vmatpush1.bf16.msra.mxu0 0
      %1406 = vmatprep.subr.bf16.mxu0 0
      %1407 = vmatpush1.bf16.msra.mxu0 0
      %1408 = vmatprep.subr.bf16.mxu0 0
      %1409 = vmatpush1.bf16.msra.mxu0 0
      %1410 = vmatprep.subr.bf16.mxu0 0
      %1411 = vmatpush1.bf16.msra.mxu0 0
      %1412 = vmatprep.subr.bf16.mxu0 0
      %1413 = vmatpush1.bf16.msra.mxu0 %v1362
      %1414 = vmatprep.subr.bf16.mxu0 0
      %1415 = vmatpush1.bf16.msra.mxu0 %v1361
      %1416 = vmatprep.subr.bf16.mxu0 0
      %1417 = vmatpush1.bf16.msra.mxu0 %v1360
      %1418 = vmatprep.subr.bf16.mxu0 0
      %1419 = vmatpush1.bf16.msra.mxu0 %v1359
      %1420 = vmatprep.subr.bf16.mxu0 0
      %1421 = vmatpush2.bf16.msra.mxu0 0
      %1422 = vmatprep.subr.bf16.mxu0 0
      %1423 = vmatpush2.bf16.msra.mxu0 0
      %1424 = vmatprep.subr.bf16.mxu0 0
      %1425 = vmatpush2.bf16.msra.mxu0 0
      %1426 = vmatprep.subr.bf16.mxu0 0
      %1427 = vmatpush2.bf16.msra.mxu0 0
      %1428 = vmatprep.subr.bf16.mxu0 0
      %1429 = vmatpush2.bf16.msra.mxu0 0
      %1430 = vmatprep.subr.bf16.mxu0 0
      %1431 = vmatpush2.bf16.msra.mxu0 0
      %1432 = vmatprep.subr.bf16.mxu0 0
      %1433 = vmatpush2.bf16.msra.mxu0 0
      %1434 = vmatprep.subr.bf16.mxu0 0
      %1435 = vmatpush2.bf16.msra.mxu0 0
      %1436 = vmatprep.mubr.bf16.mxu0 0
      %1437 = vmatmul.mubr.bf16.gmra.mxu0 %v1393
      %v1438 = vpop.f32.mrf.mxu0
      %v1439 = vadd.f32 0.0, %v1438
      %v1440 = vpop.f32.mrf.mxu0
      %v1441 = vpop.f32.mrf.mxu0
      %v1442 = vadd.f32 0.0, %v1441
      %v1443 = vpop.f32.mrf.mxu0
      %1444 = vmatprep.mubr.bf16.mxu0 0
      %1445 = vmatmul.mubr.bf16.gmra.mxu0 %v1396
      %v1446 = vpop.f32.mrf.mxu0
      %v1447 = vadd.f32 0.0, %v1446
      %v1448 = vpop.f32.mrf.mxu0
      %v1449 = vpop.f32.mrf.mxu0
      %v1450 = vadd.f32 0.0, %v1449
      %v1451 = vpop.f32.mrf.mxu0
      %1452 = vmatprep.mubr.bf16.mxu0 0
      %1453 = vmatmul.mubr.bf16.gmra.mxu0 %v1399
      %v1454 = vpop.f32.mrf.mxu0
      %v1455 = vadd.f32 0.0, %v1454
      %v1456 = vpop.f32.mrf.mxu0
      %v1457 = vpop.f32.mrf.mxu0
      %v1458 = vadd.f32 0.0, %v1457
      %v1459 = vpop.f32.mrf.mxu0
      %1460 = vmatprep.mubr.bf16.mxu0 0
      %1461 = vmatmul.mubr.bf16.gmra.mxu0 %v1402
      %v1462 = vpop.f32.mrf.mxu0
      %v1463 = vadd.f32 0.0, %v1462
      %v1464 = vpop.f32.mrf.mxu0
      %v1465 = vpop.f32.mrf.mxu0
      %v1466 = vadd.f32 0.0, %v1465
      %v1467 = vpop.f32.mrf.mxu0
      %1468 = vdwg.mxu0
      %v1469 = vmul.f32 %v1439, %v1327
      %v1470 = vmul.f32 %v1442, %v1328
      %v1471 = vmul.f32 %v1447, %v1329
      %v1472 = vmul.f32 %v1450, %v1330
      %v1473 = vmul.f32 %v1455, %v1331
      %v1474 = vmul.f32 %v1458, %v1332
      %v1475 = vmul.f32 %v1463, %v1333
      %v1476 = vmul.f32 %v1466, %v1334
      %v1477 = vpack.c.bf16 %v1470, %v1469
      %v1478 = vpack.c.bf16 %v1472, %v1471
      %v1479 = vpack.c.bf16 %v1474, %v1473
      %v1480 = vpack.c.bf16 %v1476, %v1475
      %v1482 = vsel %vm463, %v1477, 0
      %v1485 = vsel %vm463, %v1478, 0
      %v1488 = vsel %vm463, %v1479, 0
      %v1491 = vsel %vm463, %v1480, 0
      %v1494 = vsel %vm463, %v1363, 0
      %v1497 = vsel %vm463, %v1364, 0
      %v1500 = vsel %vm463, %v1365, 0
      %v1503 = vsel %vm463, %v1366, 0
      %1505 = vmatprep.subr.bf16.mxu0 0
      %1506 = vmatpush1.bf16.xpose.msra.mxu0 0
      %1507 = vmatprep.subr.bf16.mxu0 0
      %1508 = vmatpush1.bf16.xpose.msra.mxu0 0
      %1509 = vmatprep.subr.bf16.mxu0 0
      %1510 = vmatpush1.bf16.xpose.msra.mxu0 0
      %1511 = vmatprep.subr.bf16.mxu0 0
      %1512 = vmatpush1.bf16.xpose.msra.mxu0 0
      %1513 = vmatprep.subr.bf16.mxu0 0
      %1514 = vmatpush1.bf16.xpose.msra.mxu0 %v1503
      %1515 = vmatprep.subr.bf16.mxu0 0
      %1516 = vmatpush1.bf16.xpose.msra.mxu0 %v1500
      %1517 = vmatprep.subr.bf16.mxu0 0
      %1518 = vmatpush1.bf16.xpose.msra.mxu0 %v1497
      %1519 = vmatprep.subr.bf16.mxu0 0
      %1520 = vmatpush1.bf16.xpose.msra.mxu0 %v1494
      %1521 = vmatprep.subr.bf16.mxu0 0
      %1522 = vmatpush2.bf16.xpose.msra.mxu0 0
      %1523 = vmatprep.subr.bf16.mxu0 0
      %1524 = vmatpush2.bf16.xpose.msra.mxu0 0
      %1525 = vmatprep.subr.bf16.mxu0 0
      %1526 = vmatpush2.bf16.xpose.msra.mxu0 0
      %1527 = vmatprep.subr.bf16.mxu0 0
      %1528 = vmatpush2.bf16.xpose.msra.mxu0 0
      %1529 = vmatprep.subr.bf16.mxu0 0
      %1530 = vmatpush2.bf16.xpose.msra.mxu0 0
      %1531 = vmatprep.subr.bf16.mxu0 0
      %1532 = vmatpush2.bf16.xpose.msra.mxu0 0
      %1533 = vmatprep.subr.bf16.mxu0 0
      %1534 = vmatpush2.bf16.xpose.msra.mxu0 0
      %1535 = vmatprep.subr.bf16.mxu0 0
      %1536 = vmatpush2.bf16.xpose.msra.mxu0 0
      %1537 = vmatprep.mubr.bf16.mxu0 0
      %1538 = vmatmul.mubr.bf16.gmra.mxu0 %v1482
      %v1539 = vpop.f32.mrf.mxu0
      %v1540 = vadd.f32 %v1335, %v1539
      %v1541 = vpop.f32.mrf.mxu0
      %v1542 = vpop.f32.mrf.mxu0
      %v1543 = vadd.f32 %v1336, %v1542
      %v1544 = vpop.f32.mrf.mxu0
      %1545 = vmatprep.mubr.bf16.mxu0 0
      %1546 = vmatmul.mubr.bf16.gmra.mxu0 %v1485
      %v1547 = vpop.f32.mrf.mxu0
      %v1548 = vadd.f32 %v1337, %v1547
      %v1549 = vpop.f32.mrf.mxu0
      %v1550 = vpop.f32.mrf.mxu0
      %v1551 = vadd.f32 %v1338, %v1550
      %v1552 = vpop.f32.mrf.mxu0
      %1553 = vmatprep.mubr.bf16.mxu0 0
      %1554 = vmatmul.mubr.bf16.gmra.mxu0 %v1488
      %v1555 = vpop.f32.mrf.mxu0
      %v1556 = vadd.f32 %v1339, %v1555
      %v1557 = vpop.f32.mrf.mxu0
      %v1558 = vpop.f32.mrf.mxu0
      %v1559 = vadd.f32 %v1340, %v1558
      %v1560 = vpop.f32.mrf.mxu0
      %1561 = vmatprep.mubr.bf16.mxu0 0
      %1562 = vmatmul.mubr.bf16.gmra.mxu0 %v1491
      %v1563 = vpop.f32.mrf.mxu0
      %v1564 = vadd.f32 %v1341, %v1563
      %v1565 = vpop.f32.mrf.mxu0
      %v1566 = vpop.f32.mrf.mxu0
      %v1567 = vadd.f32 %v1342, %v1566
      %v1568 = vpop.f32.mrf.mxu0
      %1569 = vdwg.mxu0
      %v1570 = vsel %vm1391, %v1540, -inf
      %1571 = vmax.xlane.f32.xlu0 %v1570
      %v1572 = vpop.xlane.xlu0 %1571
      %v1573 = vsel %vm1391, %v1543, -inf
      %1574 = vmax.xlane.f32.xlu0 %v1573
      %v1575 = vpop.xlane.xlu0 %1574
      %v1576 = vsel %vm1391, %v1548, -inf
      %1577 = vmax.xlane.f32.xlu0 %v1576
      %v1578 = vpop.xlane.xlu0 %1577
      %v1579 = vsel %vm1391, %v1551, -inf
      %1580 = vmax.xlane.f32.xlu0 %v1579
      %v1581 = vpop.xlane.xlu0 %1580
      %v1582 = vsel %vm1391, %v1556, -inf
      %1583 = vmax.xlane.f32.xlu0 %v1582
      %v1584 = vpop.xlane.xlu0 %1583
      %v1585 = vsel %vm1391, %v1559, -inf
      %1586 = vmax.xlane.f32.xlu0 %v1585
      %v1587 = vpop.xlane.xlu0 %1586
      %v1588 = vsel %vm1391, %v1564, -inf
      %1589 = vmax.xlane.f32.xlu0 %v1588
      %v1590 = vpop.xlane.xlu0 %1589
      %v1591 = vsel %vm1391, %v1567, -inf
      %1592 = vmax.xlane.f32.xlu0 %v1591
      %v1593 = vpop.xlane.xlu0 %1592
      %v1594 = vsub.f32 %v1540, %v1572
      %v1595 = vsub.f32 %v1543, %v1575
      %v1596 = vsub.f32 %v1548, %v1578
      %v1597 = vsub.f32 %v1551, %v1581
      %v1598 = vsub.f32 %v1556, %v1584
      %v1599 = vsub.f32 %v1559, %v1587
      %v1600 = vsub.f32 %v1564, %v1590
      %v1601 = vsub.f32 %v1567, %v1593
      %v1602 = vmul.f32 %v1594, 1.442695
      %v1603 = vpow.pop %v1602
      %v1604 = vmul.f32 %v1595, 1.442695
      %v1605 = vpow.pop %v1604
      %v1606 = vmul.f32 %v1596, 1.442695
      %v1607 = vpow.pop %v1606
      %v1608 = vmul.f32 %v1597, 1.442695
      %v1609 = vpow.pop %v1608
      %v1610 = vmul.f32 %v1598, 1.442695
      %v1611 = vpow.pop %v1610
      %v1612 = vmul.f32 %v1599, 1.442695
      %v1613 = vpow.pop %v1612
      %v1614 = vmul.f32 %v1600, 1.442695
      %v1615 = vpow.pop %v1614
      %v1616 = vmul.f32 %v1601, 1.442695
      %v1617 = vpow.pop %v1616
      %v1618 = vsel %vm1391, %v1603, 0.0
      %1619 = vadd.xlane.f32.xlu0 %v1618
      %v1620 = vpop.xlane.xlu0 %1619
      %v1621 = vsel %vm1391, %v1605, 0.0
      %1622 = vadd.xlane.f32.xlu0 %v1621
      %v1623 = vpop.xlane.xlu0 %1622
      %v1624 = vsel %vm1391, %v1607, 0.0
      %1625 = vadd.xlane.f32.xlu0 %v1624
      %v1626 = vpop.xlane.xlu0 %1625
      %v1627 = vsel %vm1391, %v1609, 0.0
      %1628 = vadd.xlane.f32.xlu0 %v1627
      %v1629 = vpop.xlane.xlu0 %1628
      %v1630 = vsel %vm1391, %v1611, 0.0
      %1631 = vadd.xlane.f32.xlu0 %v1630
      %v1632 = vpop.xlane.xlu0 %1631
      %v1633 = vsel %vm1391, %v1613, 0.0
      %1634 = vadd.xlane.f32.xlu0 %v1633
      %v1635 = vpop.xlane.xlu0 %1634
      %v1636 = vsel %vm1391, %v1615, 0.0
      %1637 = vadd.xlane.f32.xlu0 %v1636
      %v1638 = vpop.xlane.xlu0 %1637
      %v1639 = vsel %vm1391, %v1617, 0.0
      %1640 = vadd.xlane.f32.xlu0 %v1639
      %v1641 = vpop.xlane.xlu0 %1640
      %v1642 = vrcp.pop %v1620
      %v1643 = vrcp.pop %v1623
      %v1644 = vrcp.pop %v1626
      %v1645 = vrcp.pop %v1629
      %v1646 = vrcp.pop %v1632
      %v1647 = vrcp.pop %v1635
      %v1648 = vrcp.pop %v1638
      %v1649 = vrcp.pop %v1641
      %v1650 = vmul.f32 %v1603, %v1642
      %v1651 = vmul.f32 %v1605, %v1643
      %v1652 = vmul.f32 %v1607, %v1644
      %v1653 = vmul.f32 %v1609, %v1645
      %v1654 = vmul.f32 %v1611, %v1646
      %v1655 = vmul.f32 %v1613, %v1647
      %v1656 = vmul.f32 %v1615, %v1648
      %v1657 = vmul.f32 %v1617, %v1649
      %v1658 = vpack.c.bf16 %v1651, %v1650
      %v1659 = vpack.c.bf16 %v1653, %v1652
      %v1660 = vpack.c.bf16 %v1655, %v1654
      %v1661 = vpack.c.bf16 %v1657, %v1656
      %v1663 = vsel %vm1391, %v1658, 0
      %v1666 = vsel %vm1391, %v1659, 0
      %v1669 = vsel %vm1391, %v1660, 0
      %v1672 = vsel %vm1391, %v1661, 0
      %1674 = vmatprep.subr.bf16.mxu0 0
      %1675 = vmatpush1.bf16.msra.mxu0 0
      %1676 = vmatprep.subr.bf16.mxu0 0
      %1677 = vmatpush1.bf16.msra.mxu0 0
      %1678 = vmatprep.subr.bf16.mxu0 0
      %1679 = vmatpush1.bf16.msra.mxu0 0
      %1680 = vmatprep.subr.bf16.mxu0 0
      %1681 = vmatpush1.bf16.msra.mxu0 0
      %1682 = vmatprep.subr.bf16.mxu0 0
      %1683 = vmatpush1.bf16.msra.mxu0 %v1370
      %1684 = vmatprep.subr.bf16.mxu0 0
      %1685 = vmatpush1.bf16.msra.mxu0 %v1369
      %1686 = vmatprep.subr.bf16.mxu0 0
      %1687 = vmatpush1.bf16.msra.mxu0 %v1368
      %1688 = vmatprep.subr.bf16.mxu0 0
      %1689 = vmatpush1.bf16.msra.mxu0 %v1367
      %1690 = vmatprep.subr.bf16.mxu0 0
      %1691 = vmatpush2.bf16.msra.mxu0 0
      %1692 = vmatprep.subr.bf16.mxu0 0
      %1693 = vmatpush2.bf16.msra.mxu0 0
      %1694 = vmatprep.subr.bf16.mxu0 0
      %1695 = vmatpush2.bf16.msra.mxu0 0
      %1696 = vmatprep.subr.bf16.mxu0 0
      %1697 = vmatpush2.bf16.msra.mxu0 0
      %1698 = vmatprep.subr.bf16.mxu0 0
      %1699 = vmatpush2.bf16.msra.mxu0 0
      %1700 = vmatprep.subr.bf16.mxu0 0
      %1701 = vmatpush2.bf16.msra.mxu0 0
      %1702 = vmatprep.subr.bf16.mxu0 0
      %1703 = vmatpush2.bf16.msra.mxu0 0
      %1704 = vmatprep.subr.bf16.mxu0 0
      %1705 = vmatpush2.bf16.msra.mxu0 0
      %1706 = vmatprep.mubr.bf16.mxu0 0
      %1707 = vmatmul.mubr.bf16.gmra.mxu0 %v1663
      %v1708 = vpop.f32.mrf.mxu0
      %v1709 = vadd.f32 0.0, %v1708
      %v1710 = vpop.f32.mrf.mxu0
      %v1711 = vpop.f32.mrf.mxu0
      %v1712 = vadd.f32 0.0, %v1711
      %v1713 = vpop.f32.mrf.mxu0
      %1714 = vmatprep.mubr.bf16.mxu0 0
      %1715 = vmatmul.mubr.bf16.gmra.mxu0 %v1666
      %v1716 = vpop.f32.mrf.mxu0
      %v1717 = vadd.f32 0.0, %v1716
      %v1718 = vpop.f32.mrf.mxu0
      %v1719 = vpop.f32.mrf.mxu0
      %v1720 = vadd.f32 0.0, %v1719
      %v1721 = vpop.f32.mrf.mxu0
      %1722 = vmatprep.mubr.bf16.mxu0 0
      %1723 = vmatmul.mubr.bf16.gmra.mxu0 %v1669
      %v1724 = vpop.f32.mrf.mxu0
      %v1725 = vadd.f32 0.0, %v1724
      %v1726 = vpop.f32.mrf.mxu0
      %v1727 = vpop.f32.mrf.mxu0
      %v1728 = vadd.f32 0.0, %v1727
      %v1729 = vpop.f32.mrf.mxu0
      %1730 = vmatprep.mubr.bf16.mxu0 0
      %1731 = vmatmul.mubr.bf16.gmra.mxu0 %v1672
      %v1732 = vpop.f32.mrf.mxu0
      %v1733 = vadd.f32 0.0, %v1732
      %v1734 = vpop.f32.mrf.mxu0
      %v1735 = vpop.f32.mrf.mxu0
      %v1736 = vadd.f32 0.0, %v1735
      %v1737 = vpop.f32.mrf.mxu0
      %1738 = vdwg.mxu0
      %v1739 = vmul.f32 %v1709, %v1327
      %v1740 = vmul.f32 %v1712, %v1328
      %v1741 = vmul.f32 %v1717, %v1329
      %v1742 = vmul.f32 %v1720, %v1330
      %v1743 = vmul.f32 %v1725, %v1331
      %v1744 = vmul.f32 %v1728, %v1332
      %v1745 = vmul.f32 %v1733, %v1333
      %v1746 = vmul.f32 %v1736, %v1334
      %v1748 = vsel %vm463, %v1359, 0
      %v1751 = vsel %vm463, %v1360, 0
      %v1754 = vsel %vm463, %v1361, 0
      %v1757 = vsel %vm463, %v1362, 0
      %1759 = vmatprep.subr.bf16.mxu0 0
      %1760 = vmatpush1.bf16.xpose.msra.mxu0 0
      %1761 = vmatprep.subr.bf16.mxu0 0
      %1762 = vmatpush1.bf16.xpose.msra.mxu0 0
      %1763 = vmatprep.subr.bf16.mxu0 0
      %1764 = vmatpush1.bf16.xpose.msra.mxu0 0
      %1765 = vmatprep.subr.bf16.mxu0 0
      %1766 = vmatpush1.bf16.xpose.msra.mxu0 0
      %1767 = vmatprep.subr.bf16.mxu0 0
      %1768 = vmatpush1.bf16.xpose.msra.mxu0 %v1491
      %1769 = vmatprep.subr.bf16.mxu0 0
      %1770 = vmatpush1.bf16.xpose.msra.mxu0 %v1488
      %1771 = vmatprep.subr.bf16.mxu0 0
      %1772 = vmatpush1.bf16.xpose.msra.mxu0 %v1485
      %1773 = vmatprep.subr.bf16.mxu0 0
      %1774 = vmatpush1.bf16.xpose.msra.mxu0 %v1482
      %1775 = vmatprep.subr.bf16.mxu0 0
      %1776 = vmatpush2.bf16.xpose.msra.mxu0 0
      %1777 = vmatprep.subr.bf16.mxu0 0
      %1778 = vmatpush2.bf16.xpose.msra.mxu0 0
      %1779 = vmatprep.subr.bf16.mxu0 0
      %1780 = vmatpush2.bf16.xpose.msra.mxu0 0
      %1781 = vmatprep.subr.bf16.mxu0 0
      %1782 = vmatpush2.bf16.xpose.msra.mxu0 0
      %1783 = vmatprep.subr.bf16.mxu0 0
      %1784 = vmatpush2.bf16.xpose.msra.mxu0 0
      %1785 = vmatprep.subr.bf16.mxu0 0
      %1786 = vmatpush2.bf16.xpose.msra.mxu0 0
      %1787 = vmatprep.subr.bf16.mxu0 0
      %1788 = vmatpush2.bf16.xpose.msra.mxu0 0
      %1789 = vmatprep.subr.bf16.mxu0 0
      %1790 = vmatpush2.bf16.xpose.msra.mxu0 0
      %1791 = vmatprep.mubr.bf16.mxu0 0
      %1792 = vmatmul.mubr.bf16.gmra.mxu0 %v1748
      %v1793 = vpop.f32.mrf.mxu0
      %v1794 = vadd.f32 %v1343, %v1793
      %v1795 = vpop.f32.mrf.mxu0
      %v1796 = vpop.f32.mrf.mxu0
      %v1797 = vadd.f32 %v1344, %v1796
      %v1798 = vpop.f32.mrf.mxu0
      %1799 = vmatprep.mubr.bf16.mxu0 0
      %1800 = vmatmul.mubr.bf16.gmra.mxu0 %v1751
      %v1801 = vpop.f32.mrf.mxu0
      %v1802 = vadd.f32 %v1345, %v1801
      %v1803 = vpop.f32.mrf.mxu0
      %v1804 = vpop.f32.mrf.mxu0
      %v1805 = vadd.f32 %v1346, %v1804
      %v1806 = vpop.f32.mrf.mxu0
      %1807 = vmatprep.mubr.bf16.mxu0 0
      %1808 = vmatmul.mubr.bf16.gmra.mxu0 %v1754
      %v1809 = vpop.f32.mrf.mxu0
      %v1810 = vadd.f32 %v1347, %v1809
      %v1811 = vpop.f32.mrf.mxu0
      %v1812 = vpop.f32.mrf.mxu0
      %v1813 = vadd.f32 %v1348, %v1812
      %v1814 = vpop.f32.mrf.mxu0
      %1815 = vmatprep.mubr.bf16.mxu0 0
      %1816 = vmatmul.mubr.bf16.gmra.mxu0 %v1757
      %v1817 = vpop.f32.mrf.mxu0
      %v1818 = vadd.f32 %v1349, %v1817
      %v1819 = vpop.f32.mrf.mxu0
      %v1820 = vpop.f32.mrf.mxu0
      %v1821 = vadd.f32 %v1350, %v1820
      %v1822 = vpop.f32.mrf.mxu0
      %1823 = vdwg.mxu0
      %v1824 = vsel %vm1391, %v1794, -inf
      %1825 = vmax.xlane.f32.xlu0 %v1824
      %v1826 = vpop.xlane.xlu0 %1825
      %v1827 = vsel %vm1391, %v1797, -inf
      %1828 = vmax.xlane.f32.xlu0 %v1827
      %v1829 = vpop.xlane.xlu0 %1828
      %v1830 = vsel %vm1391, %v1802, -inf
      %1831 = vmax.xlane.f32.xlu0 %v1830
      %v1832 = vpop.xlane.xlu0 %1831
      %v1833 = vsel %vm1391, %v1805, -inf
      %1834 = vmax.xlane.f32.xlu0 %v1833
      %v1835 = vpop.xlane.xlu0 %1834
      %v1836 = vsel %vm1391, %v1810, -inf
      %1837 = vmax.xlane.f32.xlu0 %v1836
      %v1838 = vpop.xlane.xlu0 %1837
      %v1839 = vsel %vm1391, %v1813, -inf
      %1840 = vmax.xlane.f32.xlu0 %v1839
      %v1841 = vpop.xlane.xlu0 %1840
      %v1842 = vsel %vm1391, %v1818, -inf
      %1843 = vmax.xlane.f32.xlu0 %v1842
      %v1844 = vpop.xlane.xlu0 %1843
      %v1845 = vsel %vm1391, %v1821, -inf
      %1846 = vmax.xlane.f32.xlu0 %v1845
      %v1847 = vpop.xlane.xlu0 %1846
      %v1848 = vsub.f32 %v1794, %v1826
      %v1849 = vsub.f32 %v1797, %v1829
      %v1850 = vsub.f32 %v1802, %v1832
      %v1851 = vsub.f32 %v1805, %v1835
      %v1852 = vsub.f32 %v1810, %v1838
      %v1853 = vsub.f32 %v1813, %v1841
      %v1854 = vsub.f32 %v1818, %v1844
      %v1855 = vsub.f32 %v1821, %v1847
      %v1856 = vmul.f32 %v1848, 1.442695
      %v1857 = vpow.pop %v1856
      %v1858 = vmul.f32 %v1849, 1.442695
      %v1859 = vpow.pop %v1858
      %v1860 = vmul.f32 %v1850, 1.442695
      %v1861 = vpow.pop %v1860
      %v1862 = vmul.f32 %v1851, 1.442695
      %v1863 = vpow.pop %v1862
      %v1864 = vmul.f32 %v1852, 1.442695
      %v1865 = vpow.pop %v1864
      %v1866 = vmul.f32 %v1853, 1.442695
      %v1867 = vpow.pop %v1866
      %v1868 = vmul.f32 %v1854, 1.442695
      %v1869 = vpow.pop %v1868
      %v1870 = vmul.f32 %v1855, 1.442695
      %v1871 = vpow.pop %v1870
      %v1873 = vsel %vm1391, %v1857, 0
      %v1876 = vsel %vm1391, %v1859, 0
      %v1879 = vsel %vm1391, %v1861, 0
      %v1882 = vsel %vm1391, %v1863, 0
      %v1885 = vsel %vm1391, %v1865, 0
      %v1888 = vsel %vm1391, %v1867, 0
      %v1891 = vsel %vm1391, %v1869, 0
      %v1894 = vsel %vm1391, %v1871, 0
      %1896 = vmatprep.subr.mxu0 0.0
      %1897 = vmatpush1.msra.mxu0 0.0
      %1898 = vmatprep.subr.mxu0 0.0
      %1899 = vmatpush1.msra.mxu0 0.0
      %1900 = vmatprep.subr.mxu0 0.0
      %1901 = vmatpush1.msra.mxu0 0.0
      %1902 = vmatprep.subr.mxu0 0.0
      %1903 = vmatpush1.msra.mxu0 0.0
      %1904 = vmatprep.subr.mxu0 0.0
      %1905 = vmatpush1.msra.mxu0 0.0
      %1906 = vmatprep.subr.mxu0 0.0
      %1907 = vmatpush1.msra.mxu0 0.0
      %1908 = vmatprep.subr.mxu0 0.0
      %1909 = vmatpush1.msra.mxu0 0.0
      %1910 = vmatprep.subr.mxu0 0.0
      %1911 = vmatpush1.msra.mxu0 0.0
      %1912 = vmatprep.subr.mxu0 0.0
      %1913 = vmatpush1.msra.mxu0 %v1358
      %1914 = vmatprep.subr.mxu0 0.0
      %1915 = vmatpush1.msra.mxu0 %v1357
      %1916 = vmatprep.subr.mxu0 0.0
      %1917 = vmatpush1.msra.mxu0 %v1356
      %1918 = vmatprep.subr.mxu0 0.0
      %1919 = vmatpush1.msra.mxu0 %v1355
      %1920 = vmatprep.subr.mxu0 0.0
      %1921 = vmatpush1.msra.mxu0 %v1354
      %1922 = vmatprep.subr.mxu0 0.0
      %1923 = vmatpush1.msra.mxu0 %v1353
      %1924 = vmatprep.subr.mxu0 0.0
      %1925 = vmatpush1.msra.mxu0 %v1352
      %1926 = vmatprep.subr.mxu0 0.0
      %1927 = vmatpush1.msra.mxu0 %v1351
      %1928 = vmatprep.subr.mxu0 0.0
      %1929 = vmatpush2.msra.mxu0 0.0
      %1930 = vmatprep.subr.mxu0 0.0
      %1931 = vmatpush2.msra.mxu0 0.0
      %1932 = vmatprep.subr.mxu0 0.0
      %1933 = vmatpush2.msra.mxu0 0.0
      %1934 = vmatprep.subr.mxu0 0.0
      %1935 = vmatpush2.msra.mxu0 0.0
      %1936 = vmatprep.subr.mxu0 0.0
      %1937 = vmatpush2.msra.mxu0 0.0
      %1938 = vmatprep.subr.mxu0 0.0
      %1939 = vmatpush2.msra.mxu0 0.0
      %1940 = vmatprep.subr.mxu0 0.0
      %1941 = vmatpush2.msra.mxu0 0.0
      %1942 = vmatprep.subr.mxu0 0.0
      %1943 = vmatpush2.msra.mxu0 0.0
      %1944 = vmatprep.subr.mxu0 0.0
      %1945 = vmatpush2.msra.mxu0 0.0
      %1946 = vmatprep.subr.mxu0 0.0
      %1947 = vmatpush2.msra.mxu0 0.0
      %1948 = vmatprep.subr.mxu0 0.0
      %1949 = vmatpush2.msra.mxu0 0.0
      %1950 = vmatprep.subr.mxu0 0.0
      %1951 = vmatpush2.msra.mxu0 0.0
      %1952 = vmatprep.subr.mxu0 0.0
      %1953 = vmatpush2.msra.mxu0 0.0
      %1954 = vmatprep.subr.mxu0 0.0
      %1955 = vmatpush2.msra.mxu0 0.0
      %1956 = vmatprep.subr.mxu0 0.0
      %1957 = vmatpush2.msra.mxu0 0.0
      %1958 = vmatprep.subr.mxu0 0.0
      %1959 = vmatpush2.msra.mxu0 0.0
      %1960 = vmatprep.mubr.f32.mxu0 0.0
      %1961 = vmatmul.mubr.f32.gmra.mxu0 %v1873
      %v1962 = vpop.f32.mrf.mxu0
      %v1963 = vadd.f32 0.0, %v1962
      %v1964 = vpop.f32.mrf.mxu0
      %1965 = vmatprep.mubr.f32.mxu0 0.0
      %1966 = vmatmul.mubr.f32.gmra.mxu0 %v1876
      %v1967 = vpop.f32.mrf.mxu0
      %v1968 = vadd.f32 0.0, %v1967
      %v1969 = vpop.f32.mrf.mxu0
      %1970 = vmatprep.mubr.f32.mxu0 0.0
      %1971 = vmatmul.mubr.f32.gmra.mxu0 %v1879
      %v1972 = vpop.f32.mrf.mxu0
      %v1973 = vadd.f32 0.0, %v1972
      %v1974 = vpop.f32.mrf.mxu0
      %1975 = vmatprep.mubr.f32.mxu0 0.0
      %1976 = vmatmul.mubr.f32.gmra.mxu0 %v1882
      %v1977 = vpop.f32.mrf.mxu0
      %v1978 = vadd.f32 0.0, %v1977
      %v1979 = vpop.f32.mrf.mxu0
      %1980 = vmatprep.mubr.f32.mxu0 0.0
      %1981 = vmatmul.mubr.f32.gmra.mxu0 %v1885
      %v1982 = vpop.f32.mrf.mxu0
      %v1983 = vadd.f32 0.0, %v1982
      %v1984 = vpop.f32.mrf.mxu0
      %1985 = vmatprep.mubr.f32.mxu0 0.0
      %1986 = vmatmul.mubr.f32.gmra.mxu0 %v1888
      %v1987 = vpop.f32.mrf.mxu0
      %v1988 = vadd.f32 0.0, %v1987
      %v1989 = vpop.f32.mrf.mxu0
      %1990 = vmatprep.mubr.f32.mxu0 0.0
      %1991 = vmatmul.mubr.f32.gmra.mxu0 %v1891
      %v1992 = vpop.f32.mrf.mxu0
      %v1993 = vadd.f32 0.0, %v1992
      %v1994 = vpop.f32.mrf.mxu0
      %1995 = vmatprep.mubr.f32.mxu0 0.0
      %1996 = vmatmul.mubr.f32.gmra.mxu0 %v1894
      %v1997 = vpop.f32.mrf.mxu0
      %v1998 = vadd.f32 0.0, %v1997
      %v1999 = vpop.f32.mrf.mxu0
      %2000 = vdwg.mxu0
      %v2001 = vrcp.pop %v1963
      %v2002 = vrcp.pop %v1968
      %v2003 = vrcp.pop %v1973
      %v2004 = vrcp.pop %v1978
      %v2005 = vrcp.pop %v1983
      %v2006 = vrcp.pop %v1988
      %v2007 = vrcp.pop %v1993
      %v2008 = vrcp.pop %v1998
      %v2009 = vmul.f32 %v1857, %v2001
      %v2010 = vmul.f32 %v1859, %v2002
      %v2011 = vmul.f32 %v1861, %v2003
      %v2012 = vmul.f32 %v1863, %v2004
      %v2013 = vmul.f32 %v1865, %v2005
      %v2014 = vmul.f32 %v1867, %v2006
      %v2015 = vmul.f32 %v1869, %v2007
      %v2016 = vmul.f32 %v1871, %v2008
      %v2017 = vpack.c.bf16 %v2010, %v2009
      %v2018 = vpack.c.bf16 %v2012, %v2011
      %v2019 = vpack.c.bf16 %v2014, %v2013
      %v2020 = vpack.c.bf16 %v2016, %v2015
      %v2021 = vpack.c.bf16 %v1740, %v1739
      %v2022 = vpack.c.bf16 %v1742, %v1741
      %v2023 = vpack.c.bf16 %v1744, %v1743
      %v2024 = vpack.c.bf16 %v1746, %v1745
      %v2026 = vsel %vm1391, %v2017, 0
      %v2029 = vsel %vm1391, %v2018, 0
      %v2032 = vsel %vm1391, %v2019, 0
      %v2035 = vsel %vm1391, %v2020, 0
      %2037 = vmatprep.subr.bf16.mxu0 0
      %2038 = vmatpush1.bf16.msra.mxu0 0
      %2039 = vmatprep.subr.bf16.mxu0 0
      %2040 = vmatpush1.bf16.msra.mxu0 0
      %2041 = vmatprep.subr.bf16.mxu0 0
      %2042 = vmatpush1.bf16.msra.mxu0 0
      %2043 = vmatprep.subr.bf16.mxu0 0
      %2044 = vmatpush1.bf16.msra.mxu0 0
      %2045 = vmatprep.subr.bf16.mxu0 0
      %2046 = vmatpush1.bf16.msra.mxu0 %v2024
      %2047 = vmatprep.subr.bf16.mxu0 0
      %2048 = vmatpush1.bf16.msra.mxu0 %v2023
      %2049 = vmatprep.subr.bf16.mxu0 0
      %2050 = vmatpush1.bf16.msra.mxu0 %v2022
      %2051 = vmatprep.subr.bf16.mxu0 0
      %2052 = vmatpush1.bf16.msra.mxu0 %v2021
      %2053 = vmatprep.subr.bf16.mxu0 0
      %2054 = vmatpush2.bf16.msra.mxu0 0
      %2055 = vmatprep.subr.bf16.mxu0 0
      %2056 = vmatpush2.bf16.msra.mxu0 0
      %2057 = vmatprep.subr.bf16.mxu0 0
      %2058 = vmatpush2.bf16.msra.mxu0 0
      %2059 = vmatprep.subr.bf16.mxu0 0
      %2060 = vmatpush2.bf16.msra.mxu0 0
      %2061 = vmatprep.subr.bf16.mxu0 0
      %2062 = vmatpush2.bf16.msra.mxu0 0
      %2063 = vmatprep.subr.bf16.mxu0 0
      %2064 = vmatpush2.bf16.msra.mxu0 0
      %2065 = vmatprep.subr.bf16.mxu0 0
      %2066 = vmatpush2.bf16.msra.mxu0 0
      %2067 = vmatprep.subr.bf16.mxu0 0
      %2068 = vmatpush2.bf16.msra.mxu0 0
      %2069 = vmatprep.mubr.bf16.mxu0 0
      %2070 = vmatmul.mubr.bf16.gmra.mxu0 %v2026
      %v2071 = vpop.f32.mrf.mxu0
      %v2072 = vadd.f32 0.0, %v2071
      %v2073 = vpop.f32.mrf.mxu0
      %v2074 = vpop.f32.mrf.mxu0
      %v2075 = vadd.f32 0.0, %v2074
      %v2076 = vpop.f32.mrf.mxu0
      %2077 = vmatprep.mubr.bf16.mxu0 0
      %2078 = vmatmul.mubr.bf16.gmra.mxu0 %v2029
      %v2079 = vpop.f32.mrf.mxu0
      %v2080 = vadd.f32 0.0, %v2079
      %v2081 = vpop.f32.mrf.mxu0
      %v2082 = vpop.f32.mrf.mxu0
      %v2083 = vadd.f32 0.0, %v2082
      %v2084 = vpop.f32.mrf.mxu0
      %2085 = vmatprep.mubr.bf16.mxu0 0
      %2086 = vmatmul.mubr.bf16.gmra.mxu0 %v2032
      %v2087 = vpop.f32.mrf.mxu0
      %v2088 = vadd.f32 0.0, %v2087
      %v2089 = vpop.f32.mrf.mxu0
      %v2090 = vpop.f32.mrf.mxu0
      %v2091 = vadd.f32 0.0, %v2090
      %v2092 = vpop.f32.mrf.mxu0
      %2093 = vmatprep.mubr.bf16.mxu0 0
      %2094 = vmatmul.mubr.bf16.gmra.mxu0 %v2035
      %v2095 = vpop.f32.mrf.mxu0
      %v2096 = vadd.f32 0.0, %v2095
      %v2097 = vpop.f32.mrf.mxu0
      %v2098 = vpop.f32.mrf.mxu0
      %v2099 = vadd.f32 0.0, %v2098
      %v2100 = vpop.f32.mrf.mxu0
      %2101 = vdwg.mxu0
      %v2102 = vpack.c.bf16 %v558, %v555
      %v2103 = vpack.c.bf16 %v566, %v563
      %v2104 = vpack.c.bf16 %v574, %v571
      %v2105 = vpack.c.bf16 %v582, %v579
      %v2106 = vpack.c.bf16 %v671, %v668
      %v2107 = vpack.c.bf16 %v679, %v676
      %v2108 = vpack.c.bf16 %v687, %v684
      %v2109 = vpack.c.bf16 %v695, %v692
      %v2110 = vpack.c.bf16 %v784, %v781
      %v2111 = vpack.c.bf16 %v792, %v789
      %v2112 = vpack.c.bf16 %v800, %v797
      %v2113 = vpack.c.bf16 %v808, %v805
      %2114 = vmatprep.subr.bf16.mxu0 0
      %2115 = vmatpush1.bf16.msra.mxu0 0
      %2116 = vmatprep.subr.bf16.mxu0 0
      %2117 = vmatpush1.bf16.msra.mxu0 0
      %2118 = vmatprep.subr.bf16.mxu0 0
      %2119 = vmatpush1.bf16.msra.mxu0 0
      %2120 = vmatprep.subr.bf16.mxu0 0
      %2121 = vmatpush1.bf16.msra.mxu0 0
      %2122 = vmatprep.subr.bf16.mxu0 0
      %2123 = vmatpush1.bf16.msra.mxu0 %v2105
      %2124 = vmatprep.subr.bf16.mxu0 0
      %2125 = vmatpush1.bf16.msra.mxu0 %v2104
      %2126 = vmatprep.subr.bf16.mxu0 0
      %2127 = vmatpush1.bf16.msra.mxu0 %v2103
      %2128 = vmatprep.subr.bf16.mxu0 0
      %2129 = vmatpush1.bf16.msra.mxu0 %v2102
      %2130 = vmatprep.subr.bf16.mxu0 0
      %2131 = vmatpush2.bf16.msra.mxu0 0
      %2132 = vmatprep.subr.bf16.mxu0 0
      %2133 = vmatpush2.bf16.msra.mxu0 0
      %2134 = vmatprep.subr.bf16.mxu0 0
      %2135 = vmatpush2.bf16.msra.mxu0 0
      %2136 = vmatprep.subr.bf16.mxu0 0
      %2137 = vmatpush2.bf16.msra.mxu0 0
      %2138 = vmatprep.subr.bf16.mxu0 0
      %2139 = vmatpush2.bf16.msra.mxu0 0
      %2140 = vmatprep.subr.bf16.mxu0 0
      %2141 = vmatpush2.bf16.msra.mxu0 0
      %2142 = vmatprep.subr.bf16.mxu0 0
      %2143 = vmatpush2.bf16.msra.mxu0 0
      %2144 = vmatprep.subr.bf16.mxu0 0
      %2145 = vmatpush2.bf16.msra.mxu0 0
      %2146 = vmatprep.mubr.bf16.mxu0 0
      %2147 = vmatmul.mubr.bf16.gmra.mxu0 %v1393
      %v2148 = vpop.f32.mrf.mxu0
      %v2149 = vadd.f32 0.0, %v2148
      %v2150 = vpop.f32.mrf.mxu0
      %v2151 = vpop.f32.mrf.mxu0
      %v2152 = vadd.f32 0.0, %v2151
      %v2153 = vpop.f32.mrf.mxu0
      %2154 = vmatprep.mubr.bf16.mxu0 0
      %2155 = vmatmul.mubr.bf16.gmra.mxu0 %v1396
      %v2156 = vpop.f32.mrf.mxu0
      %v2157 = vadd.f32 0.0, %v2156
      %v2158 = vpop.f32.mrf.mxu0
      %v2159 = vpop.f32.mrf.mxu0
      %v2160 = vadd.f32 0.0, %v2159
      %v2161 = vpop.f32.mrf.mxu0
      %2162 = vmatprep.mubr.bf16.mxu0 0
      %2163 = vmatmul.mubr.bf16.gmra.mxu0 %v1399
      %v2164 = vpop.f32.mrf.mxu0
      %v2165 = vadd.f32 0.0, %v2164
      %v2166 = vpop.f32.mrf.mxu0
      %v2167 = vpop.f32.mrf.mxu0
      %v2168 = vadd.f32 0.0, %v2167
      %v2169 = vpop.f32.mrf.mxu0
      %2170 = vmatprep.mubr.bf16.mxu0 0
      %2171 = vmatmul.mubr.bf16.gmra.mxu0 %v1402
      %v2172 = vpop.f32.mrf.mxu0
      %v2173 = vadd.f32 0.0, %v2172
      %v2174 = vpop.f32.mrf.mxu0
      %v2175 = vpop.f32.mrf.mxu0
      %v2176 = vadd.f32 0.0, %v2175
      %v2177 = vpop.f32.mrf.mxu0
      %2178 = vdwg.mxu0
      %v2179 = vmul.f32 %v2149, %v1327
      %v2180 = vmul.f32 %v2152, %v1328
      %v2181 = vmul.f32 %v2157, %v1329
      %v2182 = vmul.f32 %v2160, %v1330
      %v2183 = vmul.f32 %v2165, %v1331
      %v2184 = vmul.f32 %v2168, %v1332
      %v2185 = vmul.f32 %v2173, %v1333
      %v2186 = vmul.f32 %v2176, %v1334
      %v2187 = vpack.c.bf16 %v2180, %v2179
      %v2188 = vpack.c.bf16 %v2182, %v2181
      %v2189 = vpack.c.bf16 %v2184, %v2183
      %v2190 = vpack.c.bf16 %v2186, %v2185
      %v2192 = vsel %vm463, %v2187, 0
      %v2195 = vsel %vm463, %v2188, 0
      %v2198 = vsel %vm463, %v2189, 0
      %v2201 = vsel %vm463, %v2190, 0
      %v2204 = vsel %vm463, %v2106, 0
      %v2207 = vsel %vm463, %v2107, 0
      %v2210 = vsel %vm463, %v2108, 0
      %v2213 = vsel %vm463, %v2109, 0
      %2215 = vmatprep.subr.bf16.mxu0 0
      %2216 = vmatpush1.bf16.xpose.msra.mxu0 0
      %2217 = vmatprep.subr.bf16.mxu0 0
      %2218 = vmatpush1.bf16.xpose.msra.mxu0 0
      %2219 = vmatprep.subr.bf16.mxu0 0
      %2220 = vmatpush1.bf16.xpose.msra.mxu0 0
      %2221 = vmatprep.subr.bf16.mxu0 0
      %2222 = vmatpush1.bf16.xpose.msra.mxu0 0
      %2223 = vmatprep.subr.bf16.mxu0 0
      %2224 = vmatpush1.bf16.xpose.msra.mxu0 %v2213
      %2225 = vmatprep.subr.bf16.mxu0 0
      %2226 = vmatpush1.bf16.xpose.msra.mxu0 %v2210
      %2227 = vmatprep.subr.bf16.mxu0 0
      %2228 = vmatpush1.bf16.xpose.msra.mxu0 %v2207
      %2229 = vmatprep.subr.bf16.mxu0 0
      %2230 = vmatpush1.bf16.xpose.msra.mxu0 %v2204
      %2231 = vmatprep.subr.bf16.mxu0 0
      %2232 = vmatpush2.bf16.xpose.msra.mxu0 0
      %2233 = vmatprep.subr.bf16.mxu0 0
      %2234 = vmatpush2.bf16.xpose.msra.mxu0 0
      %2235 = vmatprep.subr.bf16.mxu0 0
      %2236 = vmatpush2.bf16.xpose.msra.mxu0 0
      %2237 = vmatprep.subr.bf16.mxu0 0
      %2238 = vmatpush2.bf16.xpose.msra.mxu0 0
      %2239 = vmatprep.subr.bf16.mxu0 0
      %2240 = vmatpush2.bf16.xpose.msra.mxu0 0
      %2241 = vmatprep.subr.bf16.mxu0 0
      %2242 = vmatpush2.bf16.xpose.msra.mxu0 0
      %2243 = vmatprep.subr.bf16.mxu0 0
      %2244 = vmatpush2.bf16.xpose.msra.mxu0 0
      %2245 = vmatprep.subr.bf16.mxu0 0
      %2246 = vmatpush2.bf16.xpose.msra.mxu0 0
      %2247 = vmatprep.mubr.bf16.mxu0 0
      %2248 = vmatmul.mubr.bf16.gmra.mxu0 %v2192
      %v2249 = vpop.f32.mrf.mxu0
      %v2250 = vadd.f32 %v1335, %v2249
      %v2251 = vpop.f32.mrf.mxu0
      %v2252 = vpop.f32.mrf.mxu0
      %v2253 = vadd.f32 %v1336, %v2252
      %v2254 = vpop.f32.mrf.mxu0
      %2255 = vmatprep.mubr.bf16.mxu0 0
      %2256 = vmatmul.mubr.bf16.gmra.mxu0 %v2195
      %v2257 = vpop.f32.mrf.mxu0
      %v2258 = vadd.f32 %v1337, %v2257
      %v2259 = vpop.f32.mrf.mxu0
      %v2260 = vpop.f32.mrf.mxu0
      %v2261 = vadd.f32 %v1338, %v2260
      %v2262 = vpop.f32.mrf.mxu0
      %2263 = vmatprep.mubr.bf16.mxu0 0
      %2264 = vmatmul.mubr.bf16.gmra.mxu0 %v2198
      %v2265 = vpop.f32.mrf.mxu0
      %v2266 = vadd.f32 %v1339, %v2265
      %v2267 = vpop.f32.mrf.mxu0
      %v2268 = vpop.f32.mrf.mxu0
      %v2269 = vadd.f32 %v1340, %v2268
      %v2270 = vpop.f32.mrf.mxu0
      %2271 = vmatprep.mubr.bf16.mxu0 0
      %2272 = vmatmul.mubr.bf16.gmra.mxu0 %v2201
      %v2273 = vpop.f32.mrf.mxu0
      %v2274 = vadd.f32 %v1341, %v2273
      %v2275 = vpop.f32.mrf.mxu0
      %v2276 = vpop.f32.mrf.mxu0
      %v2277 = vadd.f32 %v1342, %v2276
      %v2278 = vpop.f32.mrf.mxu0
      %2279 = vdwg.mxu0
      %v2280 = vsel %vm1391, %v2250, -inf
      %2281 = vmax.xlane.f32.xlu0 %v2280
      %v2282 = vpop.xlane.xlu0 %2281
      %v2283 = vsel %vm1391, %v2253, -inf
      %2284 = vmax.xlane.f32.xlu0 %v2283
      %v2285 = vpop.xlane.xlu0 %2284
      %v2286 = vsel %vm1391, %v2258, -inf
      %2287 = vmax.xlane.f32.xlu0 %v2286
      %v2288 = vpop.xlane.xlu0 %2287
      %v2289 = vsel %vm1391, %v2261, -inf
      %2290 = vmax.xlane.f32.xlu0 %v2289
      %v2291 = vpop.xlane.xlu0 %2290
      %v2292 = vsel %vm1391, %v2266, -inf
      %2293 = vmax.xlane.f32.xlu0 %v2292
      %v2294 = vpop.xlane.xlu0 %2293
      %v2295 = vsel %vm1391, %v2269, -inf
      %2296 = vmax.xlane.f32.xlu0 %v2295
      %v2297 = vpop.xlane.xlu0 %2296
      %v2298 = vsel %vm1391, %v2274, -inf
      %2299 = vmax.xlane.f32.xlu0 %v2298
      %v2300 = vpop.xlane.xlu0 %2299
      %v2301 = vsel %vm1391, %v2277, -inf
      %2302 = vmax.xlane.f32.xlu0 %v2301
      %v2303 = vpop.xlane.xlu0 %2302
      %v2304 = vsub.f32 %v2250, %v2282
      %v2305 = vsub.f32 %v2253, %v2285
      %v2306 = vsub.f32 %v2258, %v2288
      %v2307 = vsub.f32 %v2261, %v2291
      %v2308 = vsub.f32 %v2266, %v2294
      %v2309 = vsub.f32 %v2269, %v2297
      %v2310 = vsub.f32 %v2274, %v2300
      %v2311 = vsub.f32 %v2277, %v2303
      %v2312 = vmul.f32 %v2304, 1.442695
      %v2313 = vpow.pop %v2312
      %v2314 = vmul.f32 %v2305, 1.442695
      %v2315 = vpow.pop %v2314
      %v2316 = vmul.f32 %v2306, 1.442695
      %v2317 = vpow.pop %v2316
      %v2318 = vmul.f32 %v2307, 1.442695
      %v2319 = vpow.pop %v2318
      %v2320 = vmul.f32 %v2308, 1.442695
      %v2321 = vpow.pop %v2320
      %v2322 = vmul.f32 %v2309, 1.442695
      %v2323 = vpow.pop %v2322
      %v2324 = vmul.f32 %v2310, 1.442695
      %v2325 = vpow.pop %v2324
      %v2326 = vmul.f32 %v2311, 1.442695
      %v2327 = vpow.pop %v2326
      %v2328 = vsel %vm1391, %v2313, 0.0
      %2329 = vadd.xlane.f32.xlu0 %v2328
      %v2330 = vpop.xlane.xlu0 %2329
      %v2331 = vsel %vm1391, %v2315, 0.0
      %2332 = vadd.xlane.f32.xlu0 %v2331
      %v2333 = vpop.xlane.xlu0 %2332
      %v2334 = vsel %vm1391, %v2317, 0.0
      %2335 = vadd.xlane.f32.xlu0 %v2334
      %v2336 = vpop.xlane.xlu0 %2335
      %v2337 = vsel %vm1391, %v2319, 0.0
      %2338 = vadd.xlane.f32.xlu0 %v2337
      %v2339 = vpop.xlane.xlu0 %2338
      %v2340 = vsel %vm1391, %v2321, 0.0
      %2341 = vadd.xlane.f32.xlu0 %v2340
      %v2342 = vpop.xlane.xlu0 %2341
      %v2343 = vsel %vm1391, %v2323, 0.0
      %2344 = vadd.xlane.f32.xlu0 %v2343
      %v2345 = vpop.xlane.xlu0 %2344
      %v2346 = vsel %vm1391, %v2325, 0.0
      %2347 = vadd.xlane.f32.xlu0 %v2346
      %v2348 = vpop.xlane.xlu0 %2347
      %v2349 = vsel %vm1391, %v2327, 0.0
      %2350 = vadd.xlane.f32.xlu0 %v2349
      %v2351 = vpop.xlane.xlu0 %2350
      %v2352 = vrcp.pop %v2330
      %v2353 = vrcp.pop %v2333
      %v2354 = vrcp.pop %v2336
      %v2355 = vrcp.pop %v2339
      %v2356 = vrcp.pop %v2342
      %v2357 = vrcp.pop %v2345
      %v2358 = vrcp.pop %v2348
      %v2359 = vrcp.pop %v2351
      %v2360 = vmul.f32 %v2313, %v2352
      %v2361 = vmul.f32 %v2315, %v2353
      %v2362 = vmul.f32 %v2317, %v2354
      %v2363 = vmul.f32 %v2319, %v2355
      %v2364 = vmul.f32 %v2321, %v2356
      %v2365 = vmul.f32 %v2323, %v2357
      %v2366 = vmul.f32 %v2325, %v2358
      %v2367 = vmul.f32 %v2327, %v2359
      %v2368 = vpack.c.bf16 %v2361, %v2360
      %v2369 = vpack.c.bf16 %v2363, %v2362
      %v2370 = vpack.c.bf16 %v2365, %v2364
      %v2371 = vpack.c.bf16 %v2367, %v2366
      %v2373 = vsel %vm1391, %v2368, 0
      %v2376 = vsel %vm1391, %v2369, 0
      %v2379 = vsel %vm1391, %v2370, 0
      %v2382 = vsel %vm1391, %v2371, 0
      %2384 = vmatprep.subr.bf16.mxu0 0
      %2385 = vmatpush1.bf16.msra.mxu0 0
      %2386 = vmatprep.subr.bf16.mxu0 0
      %2387 = vmatpush1.bf16.msra.mxu0 0
      %2388 = vmatprep.subr.bf16.mxu0 0
      %2389 = vmatpush1.bf16.msra.mxu0 0
      %2390 = vmatprep.subr.bf16.mxu0 0
      %2391 = vmatpush1.bf16.msra.mxu0 0
      %2392 = vmatprep.subr.bf16.mxu0 0
      %2393 = vmatpush1.bf16.msra.mxu0 %v2113
      %2394 = vmatprep.subr.bf16.mxu0 0
      %2395 = vmatpush1.bf16.msra.mxu0 %v2112
      %2396 = vmatprep.subr.bf16.mxu0 0
      %2397 = vmatpush1.bf16.msra.mxu0 %v2111
      %2398 = vmatprep.subr.bf16.mxu0 0
      %2399 = vmatpush1.bf16.msra.mxu0 %v2110
      %2400 = vmatprep.subr.bf16.mxu0 0
      %2401 = vmatpush2.bf16.msra.mxu0 0
      %2402 = vmatprep.subr.bf16.mxu0 0
      %2403 = vmatpush2.bf16.msra.mxu0 0
      %2404 = vmatprep.subr.bf16.mxu0 0
      %2405 = vmatpush2.bf16.msra.mxu0 0
      %2406 = vmatprep.subr.bf16.mxu0 0
      %2407 = vmatpush2.bf16.msra.mxu0 0
      %2408 = vmatprep.subr.bf16.mxu0 0
      %2409 = vmatpush2.bf16.msra.mxu0 0
      %2410 = vmatprep.subr.bf16.mxu0 0
      %2411 = vmatpush2.bf16.msra.mxu0 0
      %2412 = vmatprep.subr.bf16.mxu0 0
      %2413 = vmatpush2.bf16.msra.mxu0 0
      %2414 = vmatprep.subr.bf16.mxu0 0
      %2415 = vmatpush2.bf16.msra.mxu0 0
      %2416 = vmatprep.mubr.bf16.mxu0 0
      %2417 = vmatmul.mubr.bf16.gmra.mxu0 %v2373
      %v2418 = vpop.f32.mrf.mxu0
      %v2419 = vadd.f32 0.0, %v2418
      %v2420 = vpop.f32.mrf.mxu0
      %v2421 = vpop.f32.mrf.mxu0
      %v2422 = vadd.f32 0.0, %v2421
      %v2423 = vpop.f32.mrf.mxu0
      %2424 = vmatprep.mubr.bf16.mxu0 0
      %2425 = vmatmul.mubr.bf16.gmra.mxu0 %v2376
      %v2426 = vpop.f32.mrf.mxu0
      %v2427 = vadd.f32 0.0, %v2426
      %v2428 = vpop.f32.mrf.mxu0
      %v2429 = vpop.f32.mrf.mxu0
      %v2430 = vadd.f32 0.0, %v2429
      %v2431 = vpop.f32.mrf.mxu0
      %2432 = vmatprep.mubr.bf16.mxu0 0
      %2433 = vmatmul.mubr.bf16.gmra.mxu0 %v2379
      %v2434 = vpop.f32.mrf.mxu0
      %v2435 = vadd.f32 0.0, %v2434
      %v2436 = vpop.f32.mrf.mxu0
      %v2437 = vpop.f32.mrf.mxu0
      %v2438 = vadd.f32 0.0, %v2437
      %v2439 = vpop.f32.mrf.mxu0
      %2440 = vmatprep.mubr.bf16.mxu0 0
      %2441 = vmatmul.mubr.bf16.gmra.mxu0 %v2382
      %v2442 = vpop.f32.mrf.mxu0
      %v2443 = vadd.f32 0.0, %v2442
      %v2444 = vpop.f32.mrf.mxu0
      %v2445 = vpop.f32.mrf.mxu0
      %v2446 = vadd.f32 0.0, %v2445
      %v2447 = vpop.f32.mrf.mxu0
      %2448 = vdwg.mxu0
      %v2449 = vmul.f32 %v2419, %v1327
      %v2450 = vmul.f32 %v2422, %v1328
      %v2451 = vmul.f32 %v2427, %v1329
      %v2452 = vmul.f32 %v2430, %v1330
      %v2453 = vmul.f32 %v2435, %v1331
      %v2454 = vmul.f32 %v2438, %v1332
      %v2455 = vmul.f32 %v2443, %v1333
      %v2456 = vmul.f32 %v2446, %v1334
      %v2458 = vsel %vm463, %v2102, 0
      %v2461 = vsel %vm463, %v2103, 0
      %v2464 = vsel %vm463, %v2104, 0
      %v2467 = vsel %vm463, %v2105, 0
      %2469 = vmatprep.subr.bf16.mxu0 0
      %2470 = vmatpush1.bf16.xpose.msra.mxu0 0
      %2471 = vmatprep.subr.bf16.mxu0 0
      %2472 = vmatpush1.bf16.xpose.msra.mxu0 0
      %2473 = vmatprep.subr.bf16.mxu0 0
      %2474 = vmatpush1.bf16.xpose.msra.mxu0 0
      %2475 = vmatprep.subr.bf16.mxu0 0
      %2476 = vmatpush1.bf16.xpose.msra.mxu0 0
      %2477 = vmatprep.subr.bf16.mxu0 0
      %2478 = vmatpush1.bf16.xpose.msra.mxu0 %v2201
      %2479 = vmatprep.subr.bf16.mxu0 0
      %2480 = vmatpush1.bf16.xpose.msra.mxu0 %v2198
      %2481 = vmatprep.subr.bf16.mxu0 0
      %2482 = vmatpush1.bf16.xpose.msra.mxu0 %v2195
      %2483 = vmatprep.subr.bf16.mxu0 0
      %2484 = vmatpush1.bf16.xpose.msra.mxu0 %v2192
      %2485 = vmatprep.subr.bf16.mxu0 0
      %2486 = vmatpush2.bf16.xpose.msra.mxu0 0
      %2487 = vmatprep.subr.bf16.mxu0 0
      %2488 = vmatpush2.bf16.xpose.msra.mxu0 0
      %2489 = vmatprep.subr.bf16.mxu0 0
      %2490 = vmatpush2.bf16.xpose.msra.mxu0 0
      %2491 = vmatprep.subr.bf16.mxu0 0
      %2492 = vmatpush2.bf16.xpose.msra.mxu0 0
      %2493 = vmatprep.subr.bf16.mxu0 0
      %2494 = vmatpush2.bf16.xpose.msra.mxu0 0
      %2495 = vmatprep.subr.bf16.mxu0 0
      %2496 = vmatpush2.bf16.xpose.msra.mxu0 0
      %2497 = vmatprep.subr.bf16.mxu0 0
      %2498 = vmatpush2.bf16.xpose.msra.mxu0 0
      %2499 = vmatprep.subr.bf16.mxu0 0
      %2500 = vmatpush2.bf16.xpose.msra.mxu0 0
      %2501 = vmatprep.mubr.bf16.mxu0 0
      %2502 = vmatmul.mubr.bf16.gmra.mxu0 %v2458
      %v2503 = vpop.f32.mrf.mxu0
      %v2504 = vadd.f32 %v1343, %v2503
      %v2505 = vpop.f32.mrf.mxu0
      %v2506 = vpop.f32.mrf.mxu0
      %v2507 = vadd.f32 %v1344, %v2506
      %v2508 = vpop.f32.mrf.mxu0
      %2509 = vmatprep.mubr.bf16.mxu0 0
      %2510 = vmatmul.mubr.bf16.gmra.mxu0 %v2461
      %v2511 = vpop.f32.mrf.mxu0
      %v2512 = vadd.f32 %v1345, %v2511
      %v2513 = vpop.f32.mrf.mxu0
      %v2514 = vpop.f32.mrf.mxu0
      %v2515 = vadd.f32 %v1346, %v2514
      %v2516 = vpop.f32.mrf.mxu0
      %2517 = vmatprep.mubr.bf16.mxu0 0
      %2518 = vmatmul.mubr.bf16.gmra.mxu0 %v2464
      %v2519 = vpop.f32.mrf.mxu0
      %v2520 = vadd.f32 %v1347, %v2519
      %v2521 = vpop.f32.mrf.mxu0
      %v2522 = vpop.f32.mrf.mxu0
      %v2523 = vadd.f32 %v1348, %v2522
      %v2524 = vpop.f32.mrf.mxu0
      %2525 = vmatprep.mubr.bf16.mxu0 0
      %2526 = vmatmul.mubr.bf16.gmra.mxu0 %v2467
      %v2527 = vpop.f32.mrf.mxu0
      %v2528 = vadd.f32 %v1349, %v2527
      %v2529 = vpop.f32.mrf.mxu0
      %v2530 = vpop.f32.mrf.mxu0
      %v2531 = vadd.f32 %v1350, %v2530
      %v2532 = vpop.f32.mrf.mxu0
      %2533 = vdwg.mxu0
      %v2534 = vsel %vm1391, %v2504, -inf
      %2535 = vmax.xlane.f32.xlu0 %v2534
      %v2536 = vpop.xlane.xlu0 %2535
      %v2537 = vsel %vm1391, %v2507, -inf
      %2538 = vmax.xlane.f32.xlu0 %v2537
      %v2539 = vpop.xlane.xlu0 %2538
      %v2540 = vsel %vm1391, %v2512, -inf
      %2541 = vmax.xlane.f32.xlu0 %v2540
      %v2542 = vpop.xlane.xlu0 %2541
      %v2543 = vsel %vm1391, %v2515, -inf
      %2544 = vmax.xlane.f32.xlu0 %v2543
      %v2545 = vpop.xlane.xlu0 %2544
      %v2546 = vsel %vm1391, %v2520, -inf
      %2547 = vmax.xlane.f32.xlu0 %v2546
      %v2548 = vpop.xlane.xlu0 %2547
      %v2549 = vsel %vm1391, %v2523, -inf
      %2550 = vmax.xlane.f32.xlu0 %v2549
      %v2551 = vpop.xlane.xlu0 %2550
      %v2552 = vsel %vm1391, %v2528, -inf
      %2553 = vmax.xlane.f32.xlu0 %v2552
      %v2554 = vpop.xlane.xlu0 %2553
      %v2555 = vsel %vm1391, %v2531, -inf
      %2556 = vmax.xlane.f32.xlu0 %v2555
      %v2557 = vpop.xlane.xlu0 %2556
      %v2558 = vsub.f32 %v2504, %v2536
      %v2559 = vsub.f32 %v2507, %v2539
      %v2560 = vsub.f32 %v2512, %v2542
      %v2561 = vsub.f32 %v2515, %v2545
      %v2562 = vsub.f32 %v2520, %v2548
      %v2563 = vsub.f32 %v2523, %v2551
      %v2564 = vsub.f32 %v2528, %v2554
      %v2565 = vsub.f32 %v2531, %v2557
      %v2566 = vmul.f32 %v2558, 1.442695
      %v2567 = vpow.pop %v2566
      %v2568 = vmul.f32 %v2559, 1.442695
      %v2569 = vpow.pop %v2568
      %v2570 = vmul.f32 %v2560, 1.442695
      %v2571 = vpow.pop %v2570
      %v2572 = vmul.f32 %v2561, 1.442695
      %v2573 = vpow.pop %v2572
      %v2574 = vmul.f32 %v2562, 1.442695
      %v2575 = vpow.pop %v2574
      %v2576 = vmul.f32 %v2563, 1.442695
      %v2577 = vpow.pop %v2576
      %v2578 = vmul.f32 %v2564, 1.442695
      %v2579 = vpow.pop %v2578
      %v2580 = vmul.f32 %v2565, 1.442695
      %v2581 = vpow.pop %v2580
      %v2583 = vsel %vm1391, %v2567, 0
      %v2586 = vsel %vm1391, %v2569, 0
      %v2589 = vsel %vm1391, %v2571, 0
      %v2592 = vsel %vm1391, %v2573, 0
      %v2595 = vsel %vm1391, %v2575, 0
      %v2598 = vsel %vm1391, %v2577, 0
      %v2601 = vsel %vm1391, %v2579, 0
      %v2604 = vsel %vm1391, %v2581, 0
      %2606 = vmatprep.subr.mxu0 0.0
      %2607 = vmatpush1.msra.mxu0 0.0
      %2608 = vmatprep.subr.mxu0 0.0
      %2609 = vmatpush1.msra.mxu0 0.0
      %2610 = vmatprep.subr.mxu0 0.0
      %2611 = vmatpush1.msra.mxu0 0.0
      %2612 = vmatprep.subr.mxu0 0.0
      %2613 = vmatpush1.msra.mxu0 0.0
      %2614 = vmatprep.subr.mxu0 0.0
      %2615 = vmatpush1.msra.mxu0 0.0
      %2616 = vmatprep.subr.mxu0 0.0
      %2617 = vmatpush1.msra.mxu0 0.0
      %2618 = vmatprep.subr.mxu0 0.0
      %2619 = vmatpush1.msra.mxu0 0.0
      %2620 = vmatprep.subr.mxu0 0.0
      %2621 = vmatpush1.msra.mxu0 0.0
      %2622 = vmatprep.subr.mxu0 0.0
      %2623 = vmatpush1.msra.mxu0 %v1358
      %2624 = vmatprep.subr.mxu0 0.0
      %2625 = vmatpush1.msra.mxu0 %v1357
      %2626 = vmatprep.subr.mxu0 0.0
      %2627 = vmatpush1.msra.mxu0 %v1356
      %2628 = vmatprep.subr.mxu0 0.0
      %2629 = vmatpush1.msra.mxu0 %v1355
      %2630 = vmatprep.subr.mxu0 0.0
      %2631 = vmatpush1.msra.mxu0 %v1354
      %2632 = vmatprep.subr.mxu0 0.0
      %2633 = vmatpush1.msra.mxu0 %v1353
      %2634 = vmatprep.subr.mxu0 0.0
      %2635 = vmatpush1.msra.mxu0 %v1352
      %2636 = vmatprep.subr.mxu0 0.0
      %2637 = vmatpush1.msra.mxu0 %v1351
      %2638 = vmatprep.subr.mxu0 0.0
      %2639 = vmatpush2.msra.mxu0 0.0
      %2640 = vmatprep.subr.mxu0 0.0
      %2641 = vmatpush2.msra.mxu0 0.0
      %2642 = vmatprep.subr.mxu0 0.0
      %2643 = vmatpush2.msra.mxu0 0.0
      %2644 = vmatprep.subr.mxu0 0.0
      %2645 = vmatpush2.msra.mxu0 0.0
      %2646 = vmatprep.subr.mxu0 0.0
      %2647 = vmatpush2.msra.mxu0 0.0
      %2648 = vmatprep.subr.mxu0 0.0
      %2649 = vmatpush2.msra.mxu0 0.0
      %2650 = vmatprep.subr.mxu0 0.0
      %2651 = vmatpush2.msra.mxu0 0.0
      %2652 = vmatprep.subr.mxu0 0.0
      %2653 = vmatpush2.msra.mxu0 0.0
      %2654 = vmatprep.subr.mxu0 0.0
      %2655 = vmatpush2.msra.mxu0 0.0
      %2656 = vmatprep.subr.mxu0 0.0
      %2657 = vmatpush2.msra.mxu0 0.0
      %2658 = vmatprep.subr.mxu0 0.0
      %2659 = vmatpush2.msra.mxu0 0.0
      %2660 = vmatprep.subr.mxu0 0.0
      %2661 = vmatpush2.msra.mxu0 0.0
      %2662 = vmatprep.subr.mxu0 0.0
      %2663 = vmatpush2.msra.mxu0 0.0
      %2664 = vmatprep.subr.mxu0 0.0
      %2665 = vmatpush2.msra.mxu0 0.0
      %2666 = vmatprep.subr.mxu0 0.0
      %2667 = vmatpush2.msra.mxu0 0.0
      %2668 = vmatprep.subr.mxu0 0.0
      %2669 = vmatpush2.msra.mxu0 0.0
      %2670 = vmatprep.mubr.f32.mxu0 0.0
      %2671 = vmatmul.mubr.f32.gmra.mxu0 %v2583
      %v2672 = vpop.f32.mrf.mxu0
      %v2673 = vadd.f32 0.0, %v2672
      %v2674 = vpop.f32.mrf.mxu0
      %2675 = vmatprep.mubr.f32.mxu0 0.0
      %2676 = vmatmul.mubr.f32.gmra.mxu0 %v2586
      %v2677 = vpop.f32.mrf.mxu0
      %v2678 = vadd.f32 0.0, %v2677
      %v2679 = vpop.f32.mrf.mxu0
      %2680 = vmatprep.mubr.f32.mxu0 0.0
      %2681 = vmatmul.mubr.f32.gmra.mxu0 %v2589
      %v2682 = vpop.f32.mrf.mxu0
      %v2683 = vadd.f32 0.0, %v2682
      %v2684 = vpop.f32.mrf.mxu0
      %2685 = vmatprep.mubr.f32.mxu0 0.0
      %2686 = vmatmul.mubr.f32.gmra.mxu0 %v2592
      %v2687 = vpop.f32.mrf.mxu0
      %v2688 = vadd.f32 0.0, %v2687
      %v2689 = vpop.f32.mrf.mxu0
      %2690 = vmatprep.mubr.f32.mxu0 0.0
      %2691 = vmatmul.mubr.f32.gmra.mxu0 %v2595
      %v2692 = vpop.f32.mrf.mxu0
      %v2693 = vadd.f32 0.0, %v2692
      %v2694 = vpop.f32.mrf.mxu0
      %2695 = vmatprep.mubr.f32.mxu0 0.0
      %2696 = vmatmul.mubr.f32.gmra.mxu0 %v2598
      %v2697 = vpop.f32.mrf.mxu0
      %v2698 = vadd.f32 0.0, %v2697
      %v2699 = vpop.f32.mrf.mxu0
      %2700 = vmatprep.mubr.f32.mxu0 0.0
      %2701 = vmatmul.mubr.f32.gmra.mxu0 %v2601
      %v2702 = vpop.f32.mrf.mxu0
      %v2703 = vadd.f32 0.0, %v2702
      %v2704 = vpop.f32.mrf.mxu0
      %2705 = vmatprep.mubr.f32.mxu0 0.0
      %2706 = vmatmul.mubr.f32.gmra.mxu0 %v2604
      %v2707 = vpop.f32.mrf.mxu0
      %v2708 = vadd.f32 0.0, %v2707
      %v2709 = vpop.f32.mrf.mxu0
      %2710 = vdwg.mxu0
      %v2711 = vrcp.pop %v2673
      %v2712 = vrcp.pop %v2678
      %v2713 = vrcp.pop %v2683
      %v2714 = vrcp.pop %v2688
      %v2715 = vrcp.pop %v2693
      %v2716 = vrcp.pop %v2698
      %v2717 = vrcp.pop %v2703
      %v2718 = vrcp.pop %v2708
      %v2719 = vmul.f32 %v2567, %v2711
      %v2720 = vmul.f32 %v2569, %v2712
      %v2721 = vmul.f32 %v2571, %v2713
      %v2722 = vmul.f32 %v2573, %v2714
      %v2723 = vmul.f32 %v2575, %v2715
      %v2724 = vmul.f32 %v2577, %v2716
      %v2725 = vmul.f32 %v2579, %v2717
      %v2726 = vmul.f32 %v2581, %v2718
      %v2727 = vpack.c.bf16 %v2720, %v2719
      %v2728 = vpack.c.bf16 %v2722, %v2721
      %v2729 = vpack.c.bf16 %v2724, %v2723
      %v2730 = vpack.c.bf16 %v2726, %v2725
      %v2731 = vpack.c.bf16 %v2450, %v2449
      %v2732 = vpack.c.bf16 %v2452, %v2451
      %v2733 = vpack.c.bf16 %v2454, %v2453
      %v2734 = vpack.c.bf16 %v2456, %v2455
      %v2736 = vsel %vm1391, %v2727, 0
      %v2739 = vsel %vm1391, %v2728, 0
      %v2742 = vsel %vm1391, %v2729, 0
      %v2745 = vsel %vm1391, %v2730, 0
      %2747 = vmatprep.subr.bf16.mxu0 0
      %2748 = vmatpush1.bf16.msra.mxu0 0
      %2749 = vmatprep.subr.bf16.mxu0 0
      %2750 = vmatpush1.bf16.msra.mxu0 0
      %2751 = vmatprep.subr.bf16.mxu0 0
      %2752 = vmatpush1.bf16.msra.mxu0 0
      %2753 = vmatprep.subr.bf16.mxu0 0
      %2754 = vmatpush1.bf16.msra.mxu0 0
      %2755 = vmatprep.subr.bf16.mxu0 0
      %2756 = vmatpush1.bf16.msra.mxu0 %v2734
      %2757 = vmatprep.subr.bf16.mxu0 0
      %2758 = vmatpush1.bf16.msra.mxu0 %v2733
      %2759 = vmatprep.subr.bf16.mxu0 0
      %2760 = vmatpush1.bf16.msra.mxu0 %v2732
      %2761 = vmatprep.subr.bf16.mxu0 0
      %2762 = vmatpush1.bf16.msra.mxu0 %v2731
      %2763 = vmatprep.subr.bf16.mxu0 0
      %2764 = vmatpush2.bf16.msra.mxu0 0
      %2765 = vmatprep.subr.bf16.mxu0 0
      %2766 = vmatpush2.bf16.msra.mxu0 0
      %2767 = vmatprep.subr.bf16.mxu0 0
      %2768 = vmatpush2.bf16.msra.mxu0 0
      %2769 = vmatprep.subr.bf16.mxu0 0
      %2770 = vmatpush2.bf16.msra.mxu0 0
      %2771 = vmatprep.subr.bf16.mxu0 0
      %2772 = vmatpush2.bf16.msra.mxu0 0
      %2773 = vmatprep.subr.bf16.mxu0 0
      %2774 = vmatpush2.bf16.msra.mxu0 0
      %2775 = vmatprep.subr.bf16.mxu0 0
      %2776 = vmatpush2.bf16.msra.mxu0 0
      %2777 = vmatprep.subr.bf16.mxu0 0
      %2778 = vmatpush2.bf16.msra.mxu0 0
      %2779 = vmatprep.mubr.bf16.mxu0 0
      %2780 = vmatmul.mubr.bf16.gmra.mxu0 %v2736
      %v2781 = vpop.f32.mrf.mxu0
      %v2782 = vadd.f32 0.0, %v2781
      %v2783 = vpop.f32.mrf.mxu0
      %v2784 = vpop.f32.mrf.mxu0
      %v2785 = vadd.f32 0.0, %v2784
      %v2786 = vpop.f32.mrf.mxu0
      %2787 = vmatprep.mubr.bf16.mxu0 0
      %2788 = vmatmul.mubr.bf16.gmra.mxu0 %v2739
      %v2789 = vpop.f32.mrf.mxu0
      %v2790 = vadd.f32 0.0, %v2789
      %v2791 = vpop.f32.mrf.mxu0
      %v2792 = vpop.f32.mrf.mxu0
      %v2793 = vadd.f32 0.0, %v2792
      %v2794 = vpop.f32.mrf.mxu0
      %2795 = vmatprep.mubr.bf16.mxu0 0
      %2796 = vmatmul.mubr.bf16.gmra.mxu0 %v2742
      %v2797 = vpop.f32.mrf.mxu0
      %v2798 = vadd.f32 0.0, %v2797
      %v2799 = vpop.f32.mrf.mxu0
      %v2800 = vpop.f32.mrf.mxu0
      %v2801 = vadd.f32 0.0, %v2800
      %v2802 = vpop.f32.mrf.mxu0
      %2803 = vmatprep.mubr.bf16.mxu0 0
      %2804 = vmatmul.mubr.bf16.gmra.mxu0 %v2745
      %v2805 = vpop.f32.mrf.mxu0
      %v2806 = vadd.f32 0.0, %v2805
      %v2807 = vpop.f32.mrf.mxu0
      %v2808 = vpop.f32.mrf.mxu0
      %v2809 = vadd.f32 0.0, %v2808
      %v2810 = vpop.f32.mrf.mxu0
      %2811 = vdwg.mxu0
      %v2812 = vadd.f32 %v2072, %v1303
      %v2813 = vadd.f32 %v2075, %v1304
      %v2814 = vadd.f32 %v2080, %v1305
      %v2815 = vadd.f32 %v2083, %v1306
      %v2816 = vadd.f32 %v2088, %v1307
      %v2817 = vadd.f32 %v2091, %v1308
      %v2818 = vadd.f32 %v2096, %v1309
      %v2819 = vadd.f32 %v2099, %v1310
      %v2820 = vadd.f32 %v2782, %v1311
      %v2821 = vadd.f32 %v2785, %v1312
      %v2822 = vadd.f32 %v2790, %v1313
      %v2823 = vadd.f32 %v2793, %v1314
      %v2824 = vadd.f32 %v2798, %v1315
      %v2825 = vadd.f32 %v2801, %v1316
      %v2826 = vadd.f32 %v2806, %v1317
      %v2827 = vadd.f32 %v2809, %v1318
      %v2828 = vpack.c.bf16 %v2813, %v2812
      %v2829 = vpack.c.bf16 %v2815, %v2814
      %v2830 = vpack.c.bf16 %v2817, %v2816
      %v2831 = vpack.c.bf16 %v2819, %v2818
      %v2832 = vpack.c.bf16 %v2821, %v2820
      %v2833 = vpack.c.bf16 %v2823, %v2822
      %v2834 = vpack.c.bf16 %v2825, %v2824
      %v2835 = vpack.c.bf16 %v2827, %v2826
      %v2836 = vld [vmem:[%s4] sm:$0xf]
      %v2837 = vld [vmem:[%s4 + $0x4] sm:$0xf]
      %v2838 = vld [vmem:[%s4 + $0x8] sm:$0xf]
      %v2839 = vld [vmem:[%s4 + $0xc] sm:$0xf]
      %v2840 = vld [vmem:[%s5] sm:$0x1]
      %v2842 = vlaneseq
      %v2843 = vshrl.u32 %v2842, 7
      %v2844 = vsub.s32 0, %v2843
      %v2845 = vrot.slane %v2840, %v2844
      %v2851 = vunpack.c.l.b16 %v2836
      %v2852 = vunpack.c.l.b16 %v2837
      %v2853 = vunpack.c.l.b16 %v2838
      %v2854 = vunpack.c.l.b16 %v2839
      %v2855 = vpack.c.b16 %v2852, %v2851
      %v2856 = vpack.c.b16 %v2854, %v2853
      %v2860 = vsel %vm463, %v2828, 0
      %v2863 = vsel %vm463, %v2829, 0
      %v2866 = vsel %vm463, %v2830, 0
      %v2869 = vsel %vm463, %v2831, 0
      %v2872 = vsel %vm463, %v2832, 0
      %v2875 = vsel %vm463, %v2833, 0
      %v2878 = vsel %vm463, %v2834, 0
      %v2881 = vsel %vm463, %v2835, 0
      %2883 = vmatprep.subr.bf16.mxu0 0
      %2884 = vmatpush1.bf16.msra.mxu0 0
      %2885 = vmatprep.subr.bf16.mxu0 0
      %2886 = vmatpush1.bf16.msra.mxu0 0
      %2887 = vmatprep.subr.bf16.mxu0 0
      %2888 = vmatpush1.bf16.msra.mxu0 0
      %2889 = vmatprep.subr.bf16.mxu0 0
      %2890 = vmatpush1.bf16.msra.mxu0 0
      %2891 = vmatprep.subr.bf16.mxu0 0
      %2892 = vmatpush1.bf16.msra.mxu0 0
      %2893 = vmatprep.subr.bf16.mxu0 0
      %2894 = vmatpush1.bf16.msra.mxu0 0
      %2895 = vmatprep.subr.bf16.mxu0 0
      %2896 = vmatpush1.bf16.msra.mxu0 %v2856
      %2897 = vmatprep.subr.bf16.mxu0 0
      %2898 = vmatpush1.bf16.msra.mxu0 %v2855
      %2899 = vmatprep.subr.bf16.mxu0 0
      %2900 = vmatpush2.bf16.msra.mxu0 0
      %2901 = vmatprep.subr.bf16.mxu0 0
      %2902 = vmatpush2.bf16.msra.mxu0 0
      %2903 = vmatprep.subr.bf16.mxu0 0
      %2904 = vmatpush2.bf16.msra.mxu0 0
      %2905 = vmatprep.subr.bf16.mxu0 0
      %2906 = vmatpush2.bf16.msra.mxu0 0
      %2907 = vmatprep.subr.bf16.mxu0 0
      %2908 = vmatpush2.bf16.msra.mxu0 0
      %2909 = vmatprep.subr.bf16.mxu0 0
      %2910 = vmatpush2.bf16.msra.mxu0 0
      %2911 = vmatprep.subr.bf16.mxu0 0
      %2912 = vmatpush2.bf16.msra.mxu0 0
      %2913 = vmatprep.subr.bf16.mxu0 0
      %2914 = vmatpush2.bf16.msra.mxu0 0
      %2915 = vmatprep.mubr.bf16.mxu0 0
      %2916 = vmatmul.mubr.bf16.gmra.mxu0 %v2860
      %v2917 = vpop.f32.mrf.mxu0
      %v2918 = vadd.f32 %v2845, %v2917
      %v2919 = vpop.f32.mrf.mxu0
      %v2920 = vpop.f32.mrf.mxu0
      %v2921 = vadd.f32 %v2845, %v2920
      %v2922 = vpop.f32.mrf.mxu0
      %2923 = vmatprep.mubr.bf16.mxu0 0
      %2924 = vmatmul.mubr.bf16.gmra.mxu0 %v2863
      %v2925 = vpop.f32.mrf.mxu0
      %v2926 = vadd.f32 %v2845, %v2925
      %v2927 = vpop.f32.mrf.mxu0
      %v2928 = vpop.f32.mrf.mxu0
      %v2929 = vadd.f32 %v2845, %v2928
      %v2930 = vpop.f32.mrf.mxu0
      %2931 = vmatprep.mubr.bf16.mxu0 0
      %2932 = vmatmul.mubr.bf16.gmra.mxu0 %v2866
      %v2933 = vpop.f32.mrf.mxu0
      %v2934 = vadd.f32 %v2845, %v2933
      %v2935 = vpop.f32.mrf.mxu0
      %v2936 = vpop.f32.mrf.mxu0
      %v2937 = vadd.f32 %v2845, %v2936
      %v2938 = vpop.f32.mrf.mxu0
      %2939 = vmatprep.mubr.bf16.mxu0 0
      %2940 = vmatmul.mubr.bf16.gmra.mxu0 %v2869
      %v2941 = vpop.f32.mrf.mxu0
      %v2942 = vadd.f32 %v2845, %v2941
      %v2943 = vpop.f32.mrf.mxu0
      %v2944 = vpop.f32.mrf.mxu0
      %v2945 = vadd.f32 %v2845, %v2944
      %v2946 = vpop.f32.mrf.mxu0
      %2947 = vmatprep.mubr.bf16.mxu0 0
      %2948 = vmatmul.mubr.bf16.gmra.mxu0 %v2872
      %v2949 = vpop.f32.mrf.mxu0
      %v2950 = vadd.f32 %v2845, %v2949
      %v2951 = vpop.f32.mrf.mxu0
      %v2952 = vpop.f32.mrf.mxu0
      %v2953 = vadd.f32 %v2845, %v2952
      %v2954 = vpop.f32.mrf.mxu0
      %2955 = vmatprep.mubr.bf16.mxu0 0
      %2956 = vmatmul.mubr.bf16.gmra.mxu0 %v2875
      %v2957 = vpop.f32.mrf.mxu0
      %v2958 = vadd.f32 %v2845, %v2957
      %v2959 = vpop.f32.mrf.mxu0
      %v2960 = vpop.f32.mrf.mxu0
      %v2961 = vadd.f32 %v2845, %v2960
      %v2962 = vpop.f32.mrf.mxu0
      %2963 = vmatprep.mubr.bf16.mxu0 0
      %2964 = vmatmul.mubr.bf16.gmra.mxu0 %v2878
      %v2965 = vpop.f32.mrf.mxu0
      %v2966 = vadd.f32 %v2845, %v2965
      %v2967 = vpop.f32.mrf.mxu0
      %v2968 = vpop.f32.mrf.mxu0
      %v2969 = vadd.f32 %v2845, %v2968
      %v2970 = vpop.f32.mrf.mxu0
      %2971 = vmatprep.mubr.bf16.mxu0 0
      %2972 = vmatmul.mubr.bf16.gmra.mxu0 %v2881
      %v2973 = vpop.f32.mrf.mxu0
      %v2974 = vadd.f32 %v2845, %v2973
      %v2975 = vpop.f32.mrf.mxu0
      %v2976 = vpop.f32.mrf.mxu0
      %v2977 = vadd.f32 %v2845, %v2976
      %v2978 = vpop.f32.mrf.mxu0
      %2979 = vdwg.mxu0
      %2980 = vst.msk [vmem:[%s420] sm:$0xff] %vm463, %v2918
      %2981 = vst.msk [vmem:[%s420 + $0x8] sm:$0xff] %vm463, %v2921
      %2982 = vst.msk [vmem:[%s420 + $0x10] sm:$0xff] %vm463, %v2926
      %2983 = vst.msk [vmem:[%s420 + $0x18] sm:$0xff] %vm463, %v2929
      %2984 = vst.msk [vmem:[%s420 + $0x20] sm:$0xff] %vm463, %v2934
      %2985 = vst.msk [vmem:[%s420 + $0x28] sm:$0xff] %vm463, %v2937
      %2986 = vst.msk [vmem:[%s420 + $0x30] sm:$0xff] %vm463, %v2942
      %2987 = vst.msk [vmem:[%s420 + $0x38] sm:$0xff] %vm463, %v2945
      %2988 = vst.msk [vmem:[%s420 + $0x40] sm:$0xff] %vm463, %v2950
      %2989 = vst.msk [vmem:[%s420 + $0x48] sm:$0xff] %vm463, %v2953
      %2990 = vst.msk [vmem:[%s420 + $0x50] sm:$0xff] %vm463, %v2958
      %2991 = vst.msk [vmem:[%s420 + $0x58] sm:$0xff] %vm463, %v2961
      %2992 = vst.msk [vmem:[%s420 + $0x60] sm:$0xff] %vm463, %v2966
      %2993 = vst.msk [vmem:[%s420 + $0x68] sm:$0xff] %vm463, %v2969
      %2994 = vst.msk [vmem:[%s420 + $0x70] sm:$0xff] %vm463, %v2974
      %2995 = vst.msk [vmem:[%s420 + $0x78] sm:$0xff] %vm463, %v2977
      %s2996 = smul.u32 2, %s23
      %p2997 = scmp.lt.s32.totalorder %s2996, 3
      %s2998 = scalar_select %p2997, %s2996, 3
      %s2999 = smul.addr %s2998, 8
      %s3000 = smul.addr %s2999, 8
      %s3001 = scalar_lea.vmem %s12, %s3000
      // Predicated region
      $region69: #{tpu_custom_call.1} parent=67 // pred_check
        %p3002 = pneg %p298
      $region70: #{tpu_custom_call.1} parent=67 // pred_check_branch
        %3004 = sbr.rel (%p3002) target = $region72
      $region71: #{tpu_custom_call.1} parent=67 // pred_region
        %s3005 = smul.u32 2, %s23
      $region72: #{tpu_custom_call.1} parent=67 // pred_fallthru
        _
    $region68: #{tpu_custom_call.1} parent=5 // pred_fallthru
      _
    %p3006 = scmp.le.s32.totalorder 2, %s18
    // Predicated region
    $region73: #{tpu_custom_call.1} parent=5 // pred_check
      %p3007 = pneg %p3006
    $region74: #{tpu_custom_call.1} parent=5 // pred_check_branch
      %3009 = sbr.rel (%p3007) target = $region76
    $region75: #{tpu_custom_call.1} parent=5 // pred_region
      %s3010 = ssub.s32 %s18, 2
      // Predicated region
      $region77: #{tpu_custom_call.1} parent=75 // pred_check
        %p3011 = pneg %p304
      $region78: #{tpu_custom_call.1} parent=75 // pred_check_branch
        %3013 = sbr.rel (%p3011) target = $region80
      $region79: #{tpu_custom_call.1} parent=75 // pred_region
        %s3014 = smul.u32 2, %s24
        %p3015 = scmp.lt.s32.totalorder %s3014, 3
        %s3016 = scalar_select %p3015, %s3014, 3
        %s3017 = smul.addr %s3016, 8
        %s3018 = smul.addr %s3017, 8
        %s3019 = scalar_lea.vmem %s12, %s3018
      $region80: #{tpu_custom_call.1} parent=75 // pred_fallthru
        _
    $region76: #{tpu_custom_call.1} parent=5 // pred_fallthru
      _
  $region6: #{tpu_custom_call.1} parent=0 // loop_footer
    %s22 = sadd.s32 1, %s18
  $region7: #{tpu_custom_call.1} parent=0 // loop_footer_branch
    %17 = sbr.rel target = $region3
  $region8: #{tpu_custom_call.1} parent=0 // loop_exit
    _

</llo_original>
